<compile_context>
chip_gen: v5e
topology: v5e:2x2
jax: 0.10.0
libtpu: 0.0.40
codegen_flags: <defaults>
</compile_context>

<pallas_src>
import jax
import jax.numpy as jnp
from jax import lax
from jax.experimental import pallas as pl
from jax.experimental.pallas import tpu as pltpu

USE_TAG = True        # mirrors config.use_tag
NUM_LAYERS = 2        # forward's h.view(2, 2, b, d) implies num_layers == 2


def _vmem_limit_bytes():
    """Raise the scoped-VMEM cap toward physical capacity (review: 32 MiB was too low
    for v5e/v6e whose physical VMEM is 128 MiB); stay conservative if query fails."""
    try:
        cap = int(pltpu.get_tpu_info().vmem_capacity_bytes)
        return max(32 * 1024 * 1024, min(100 * 1024 * 1024, (cap * 3) // 4))
    except Exception:
        return 48 * 1024 * 1024


def _num_chunks(B):
    # 2 chunks -> both TensorCores on v7x; harmless at demo sizes on single-TC chips.
    return 2 if (B >= 2 and B % 2 == 0) else 1


# ---------------------------------------------------------------------------
# Fused bidirectional LSTM layer kernel (one batch chunk per grid step).
#   xw_ref   : (T, Bblk, 8H) f32   x @ Wih, direction-major columns
#              [fwd i,f,g,o | bwd i,f,g,o]; the bwd 4H columns are TIME-REVERSED
#              (row s holds x[T-1-s] @ Wih_b), so each step reads one row.
#   len_ref  : (Bblk, 1) int32     sequence lengths.
#   bias_ref : (1, 8H) f32         fused b_ih + b_hh, same column order.
#   whh_f/b  : (H, 4H) bf16        per-direction recurrent weights.
#   out_ref  : (T, Bblk, 2H) f32   [fwd | bwd] hidden states, zeroed past length.
#   hN/cN    : (Bblk, 2H) f32      final states (fwd at t=len-1, bwd at t=0).
# ---------------------------------------------------------------------------
def _bilstm_kernel(xw_ref, len_ref, bias_ref, whh_f_ref, whh_b_ref,
                   out_ref, hN_ref, cN_ref,
                   hf_scr, cf_scr, hb_scr, cb_scr):
    T = xw_ref.shape[0]
    H = whh_f_ref.shape[0]
    G4 = 4 * H

    hf_scr[...] = jnp.zeros_like(hf_scr)
    cf_scr[...] = jnp.zeros_like(cf_scr)
    hb_scr[...] = jnp.zeros_like(hb_scr)
    cb_scr[...] = jnp.zeros_like(cb_scr)

    # Loop-invariant loads hoisted out of the serial recurrence.
    lens = len_ref[...]                      # (Bblk, 1) i32
    bias = bias_ref[...]                     # (1, 8H) f32
    w_f = whh_f_ref[...]                     # (H, 4H) bf16
    w_b = whh_b_ref[...]

    def cell(gates, c_prev):
        i_g = jax.nn.sigmoid(gates[:, 0 * H:1 * H])
        f_g = jax.nn.sigmoid(gates[:, 1 * H:2 * H])
        g_g = jnp.tanh(gates[:, 2 * H:3 * H])
        o_g = jax.nn.sigmoid(gates[:, 3 * H:4 * H])
        c_new = f_g * c_prev + i_g * g_g
        h_new = o_g * jnp.tanh(c_new)
        return h_new, c_new

    def step(s, carry):
        t_f = s                    # forward global time
        t_b = T - 1 - s            # backward global time
        # Single contiguous row: fwd columns for time t_f, (pre-flipped) bwd columns
        # for time t_b.  Bias folded in here (loop-invariant broadcast add).
        row = xw_ref[s] + bias                                   # (Bblk, 8H) f32
        gx_f = row[:, 0:G4]
        gx_b = row[:, G4:2 * G4]

        hf_prev = hf_scr[...]; cf_prev = cf_scr[...]
        hb_prev = hb_scr[...]; cb_prev = cb_scr[...]

        gates_f = gx_f + jnp.dot(hf_prev.astype(jnp.bfloat16), w_f,
                                 preferred_element_type=jnp.float32)
        gates_b = gx_b + jnp.dot(hb_prev.astype(jnp.bfloat16), w_b,
                                 preferred_element_type=jnp.float32)

        hf_new, cf_new = cell(gates_f, cf_prev)
        hb_new, cb_new = cell(gates_b, cb_prev)

        # Packed-sequence semantics: freeze state past each sequence's length.
        valid_f = t_f < lens                                     # (Bblk, 1) bool
        valid_b = t_b < lens
        hf_scr[...] = jnp.where(valid_f, hf_new, hf_prev)
        cf_scr[...] = jnp.where(valid_f, cf_new, cf_prev)
        hb_scr[...] = jnp.where(valid_b, hb_new, hb_prev)
        cb_scr[...] = jnp.where(valid_b, cb_new, cb_prev)

        # Outputs: zero past length; each direction writes its half at its own time.
        out_ref[t_f, :, 0:H] = jnp.where(valid_f, hf_new, 0.0)
        out_ref[t_b, :, H:2 * H] = jnp.where(valid_b, hb_new, 0.0)
        return carry

    # Bounded unroll: full unroll only for short T (avoids vreg-spill cliff at long T).
    lax.fori_loop(0, T, step, 0, unroll=(True if T <= 16 else 4))

    hN_ref[:, 0:H] = hf_scr[...]
    hN_ref[:, H:2 * H] = hb_scr[...]
    cN_ref[:, 0:H] = cf_scr[...]
    cN_ref[:, H:2 * H] = cb_scr[...]


def _prep_bilstm_weights(layer):
    """Per-direction (In,4H)/(H,4H) bf16 weights + fused (1,8H) f32 bias.
    Column order inside each direction follows PyTorch's [i, f, g, o]."""
    wih_f = jnp.transpose(layer['w_ih_f']).astype(jnp.bfloat16)   # (In, 4H)
    wih_b = jnp.transpose(layer['w_ih_b']).astype(jnp.bfloat16)
    whh_f = jnp.transpose(layer['w_hh_f']).astype(jnp.bfloat16)   # (H, 4H)
    whh_b = jnp.transpose(layer['w_hh_b']).astype(jnp.bfloat16)
    bias = jnp.concatenate([layer['b_ih_f'] + layer['b_hh_f'],
                            layer['b_ih_b'] + layer['b_hh_b']]
                           ).reshape(1, -1).astype(jnp.float32)    # (1, 8H)
    return wih_f, wih_b, whh_f, whh_b, bias


def bilstm_layer(x_tbi, lens_b, wih_f, wih_b, whh_f, whh_b, bias,
                 *, num_batch_chunks=None):
    """One fused bidirectional LSTM layer on time-major input (T, B, In)."""
    T, B, In = x_tbi.shape
    H = whh_f.shape[0]
    H2, G4, G8 = 2 * H, 4 * H, 8 * H
    nb = _num_chunks(B) if num_batch_chunks is None else num_batch_chunks
    Bblk = B // nb

    # Hoisted input projection: big bf16 MXU matmuls over all T*B rows, f32 accum.
    # The backward projection is computed from the TIME-FLIPPED input, so the kernel
    # reads a single contiguous row per step (no per-step reverse gather / select).
    xb = x_tbi.astype(jnp.bfloat16)
    xw_f = jnp.dot(xb.reshape(T * B, In), wih_f,
                   preferred_element_type=jnp.float32).reshape(T, B, G4)
    xw_b = jnp.dot(jnp.flip(xb, axis=0).reshape(T * B, In), wih_b,
                   preferred_element_type=jnp.float32).reshape(T, B, G4)
    xw = jnp.concatenate([xw_f, xw_b], axis=-1)                   # (T, B, 8H)

    # Free reshapes exposing the batch-chunk axis; all blocks keep full trailing dims.
    xw = xw.reshape(T, nb, Bblk, G8)
    lens_r = lens_b.astype(jnp.int32).reshape(nb, Bblk, 1)

    out, hN, cN = pl.pallas_call(
        _bilstm_kernel,
        out_shape=(jax.ShapeDtypeStruct((T, nb, Bblk, H2), jnp.float32),
                   jax.ShapeDtypeStruct((nb, Bblk, H2), jnp.float32),
                   jax.ShapeDtypeStruct((nb, Bblk, H2), jnp.float32)),
        grid=(nb,),
        in_specs=[
            pl.BlockSpec((T, None, Bblk, G8), lambda c: (0, c, 0, 0)),   # xw
            pl.BlockSpec((None, Bblk, 1), lambda c: (c, 0, 0)),          # lens
            pl.BlockSpec((1, G8), lambda c: (0, 0)),                     # bias
            pl.BlockSpec((H, G4), lambda c: (0, 0)),                     # whh fwd
            pl.BlockSpec((H, G4), lambda c: (0, 0)),                     # whh bwd
        ],
        out_specs=(
            pl.BlockSpec((T, None, Bblk, H2), lambda c: (0, c, 0, 0)),   # outputs
            pl.BlockSpec((None, Bblk, H2), lambda c: (c, 0, 0)),         # hN
            pl.BlockSpec((None, Bblk, H2), lambda c: (c, 0, 0)),         # cN
        ),
        scratch_shapes=[pltpu.VMEM((Bblk, H), jnp.float32)] * 4,         # h/c fwd/bwd
        compiler_params=pltpu.CompilerParams(
            dimension_semantics=("parallel",),          # batch chunks -> both v7x TCs
            vmem_limit_bytes=_vmem_limit_bytes()),
    )(xw, lens_r, bias, whh_f, whh_b)
    return (out.reshape(T, B, H2), hN.reshape(B, H2), cN.reshape(B, H2))


# ---------------------------------------------------------------------------
# Gated self-attention kernel, gridded over batch CHUNKS (parallel axis).
# Per chunk: rows are folded into the matmul M dim; energies/softmax stay per
# batch element via batched dot_general.  Update/gate weights are fused into
# two (2H, 4H) matmuls (lane-dense N) instead of four (2H, 2H) ones.
# ---------------------------------------------------------------------------
def _gated_attn_kernel(q_ref, bias_ref, wlt_ref, blt_ref, wq_ref, wc_ref, out_ref):
    Bb, T, D2 = q_ref.shape
    q = q_ref[...]                                            # (Bb, T, 2H) f32
    qb = q.astype(jnp.bfloat16)
    q2 = qb.reshape(Bb * T, D2)                               # rows folded into M

    mem = (jnp.dot(q2, wlt_ref[...], preferred_element_type=jnp.float32)
           + blt_ref[...])                                    # (Bb*T, 2H) f32
    mem_b = mem.astype(jnp.bfloat16).reshape(Bb, T, D2)

    energies = jnp.einsum('btd,bsd->bts', qb, mem_b,
                          preferred_element_type=jnp.float32)  # (Bb, T, T)
    energies = energies + bias_ref[...]                        # additive key mask (Bb,1,T)
    e_max = jnp.max(energies, axis=-1, keepdims=True)
    p = jnp.exp(energies - e_max)
    denom = jnp.sum(p, axis=-1, keepdims=True)
    scores = p * pl.reciprocal(denom, approx=True)             # EUP reciprocal
    context = jnp.einsum('bts,bsd->btd', scores.astype(jnp.bfloat16), qb,
                         preferred_element_type=jnp.float32)   # (Bb, T, 2H)

    cb = context.astype(jnp.bfloat16).reshape(Bb * T, D2)
    pre = (jnp.dot(q2, wq_ref[...], preferred_element_type=jnp.float32)
           + jnp.dot(cb, wc_ref[...], preferred_element_type=jnp.float32))  # (Bb*T, 4H)
    f_t = jnp.tanh(pre[:, 0:D2]).reshape(Bb, T, D2)
    g_t = jax.nn.sigmoid(pre[:, D2:2 * D2]).reshape(Bb, T, D2)
    out_ref[...] = g_t * f_t + (1.0 - g_t) * q


def gated_self_attn(outputs_btd, attn_bias_b1t, w_lt, b_lt, w_upd, w_gate,
                    *, num_batch_chunks=None):
    B, T, D2 = outputs_btd.shape
    nb = _num_chunks(B) if num_batch_chunks is None else num_batch_chunks
    Bblk = B // nb

    wlt = jnp.transpose(w_lt).astype(jnp.bfloat16)            # (2H, 2H)
    blt = b_lt.reshape(1, D2).astype(jnp.float32)
    wu = jnp.transpose(w_upd)                                  # (4H_in, 2H_out)
    wg = jnp.transpose(w_gate)
    # Fused [update | gate] weights, split by input half (q vs context).
    w_q = jnp.concatenate([wu[:D2], wg[:D2]], axis=1).astype(jnp.bfloat16)   # (2H, 4H)
    w_c = jnp.concatenate([wu[D2:], wg[D2:]], axis=1).astype(jnp.bfloat16)   # (2H, 4H)

    # TODO(synk): optionally feed queries/bias as bf16 (upcast in-kernel) once B*T is
    # large enough for this kernel to be HBM-bound.
    return pl.pallas_call(
        _gated_attn_kernel,
        out_shape=jax.ShapeDtypeStruct((B, T, D2), jnp.float32),
        grid=(nb,),
        in_specs=[
            pl.BlockSpec((Bblk, T, D2), lambda c: (c, 0, 0)),   # queries (batch chunk)
            pl.BlockSpec((Bblk, 1, T), lambda c: (c, 0, 0)),    # additive mask
            pl.BlockSpec((D2, D2), lambda c: (0, 0)),           # wlt
            pl.BlockSpec((1, D2), lambda c: (0, 0)),            # blt
            pl.BlockSpec((D2, 2 * D2), lambda c: (0, 0)),       # fused q-half weights
            pl.BlockSpec((D2, 2 * D2), lambda c: (0, 0)),       # fused context-half weights
        ],
        out_specs=pl.BlockSpec((Bblk, T, D2), lambda c: (c, 0, 0)),
        compiler_params=pltpu.CompilerParams(
            dimension_semantics=("parallel",),                  # 2 TCs on v7x
            vmem_limit_bytes=_vmem_limit_bytes()),
    )(outputs_btd.astype(jnp.float32), attn_bias_b1t.astype(jnp.float32),
      wlt, blt, w_q, w_c)


# ---------------------------------------------------------------------------
# Plain-JAX glue (embedding gathers, parameter prep).
# ---------------------------------------------------------------------------
def init_params(key, vocab_size, embedding_size, hidden_size, num_layers):
    ks = iter(jax.random.split(key, 64))
    s = 0.1
    H = hidden_size
    lstm_in0 = embedding_size + (3 if USE_TAG else 0)
    params = {
        'embedding': s * jax.random.normal(next(ks), (vocab_size, embedding_size), jnp.float32),
        'tag_embedding': s * jax.random.normal(next(ks), (3, 3), jnp.float32),
        'w_lt': s * jax.random.normal(next(ks), (2 * H, 2 * H), jnp.float32),
        'b_lt': s * jax.random.normal(next(ks), (2 * H,), jnp.float32),
        'w_upd': s * jax.random.normal(next(ks), (2 * H, 4 * H), jnp.float32),
        'w_gate': s * jax.random.normal(next(ks), (2 * H, 4 * H), jnp.float32),
        'lstm': [],
    }
    for l in range(num_layers):
        in_size = lstm_in0 if l == 0 else 2 * H
        layer = {}
        for d in ('f', 'b'):
            layer[f'w_ih_{d}'] = s * jax.random.normal(next(ks), (4 * H, in_size), jnp.float32)
            layer[f'w_hh_{d}'] = s * jax.random.normal(next(ks), (4 * H, H), jnp.float32)
            layer[f'b_ih_{d}'] = s * jax.random.normal(next(ks), (4 * H,), jnp.float32)
            layer[f'b_hh_{d}'] = s * jax.random.normal(next(ks), (4 * H,), jnp.float32)
        params['lstm'].append(layer)
    return params


def encoder_forward(params, src_seq, src_len, tag_seq):
    B, T = src_seq.shape
    H = params['lstm'][0]['w_hh_f'].shape[1]

    # Embedding gathers emit time-major activations directly (no transpose pass).
    src_tm = jnp.transpose(src_seq)                              # (T, B)
    emb = params['embedding'][src_tm]                            # (T, B, E)
    if USE_TAG and tag_seq is not None:
        tag_emb = params['tag_embedding'][jnp.transpose(tag_seq)]  # (T, B, 3)
        emb = jnp.concatenate([emb, tag_emb], axis=-1)

    lens = src_len.astype(jnp.int32)

    layer_in = emb                                               # (T, B, In)
    h_list, c_list = [], []
    for l in range(len(params['lstm'])):
        wih_f, wih_b, whh_f, whh_b, bias = _prep_bilstm_weights(params['lstm'][l])
        layer_in, hN, cN = bilstm_layer(layer_in, lens, wih_f, wih_b,
                                        whh_f, whh_b, bias)
        h_list.append(hN)                                        # (B, 2H) = [fwd|bwd]
        c_list.append(cN)
        # TODO(synk): inter-layer LSTM dropout is training-only randomness; omitted.

    # Single boundary transpose back to batch-major for attention / module output.
    outputs_btd = jnp.transpose(layer_in, (1, 0, 2))             # (B, T, 2H)
    # mask = (src_seq == 0) exactly as the reference (token id 0 == PAD).
    attn_bias = jnp.where(src_seq == 0, jnp.float32(-1e12),
                          jnp.float32(0.0))[:, None, :]          # (B, 1, T)
    outputs = gated_self_attn(outputs_btd, attn_bias,
                              params['w_lt'], params['b_lt'],
                              params['w_upd'], params['w_gate'])

    h = jnp.stack(h_list, axis=0)                                # (num_layers, B, 2H)
    c = jnp.stack(c_list, axis=0)
    return outputs, (h, c)


if __name__ == "__main__":
    B, T = 2, 8
    vocab_size, embedding_size, hidden_size = 50, 32, 32

    key = jax.random.PRNGKey(0)
    k_tok, k_tag, k_par = jax.random.split(key, 3)

    src_len = jnp.array([8, 5], dtype=jnp.int32)                 # sorted descending
    tokens = jax.random.randint(k_tok, (B, T), 1, vocab_size, dtype=jnp.int32)
    valid = jnp.arange(T)[None, :] < src_len[:, None]
    src_seq = jnp.where(valid, tokens, 0)                        # 0 = pad token
    tag_seq = jax.random.randint(k_tag, (B, T), 0, 3, dtype=jnp.int32)

    params = init_params(k_par, vocab_size, embedding_size, hidden_size, NUM_LAYERS)

    fwd = jax.jit(encoder_forward)
    outputs, (h, c) = fwd(params, src_seq, src_len, tag_seq)
    jax.block_until_ready((outputs, h, c))

    assert outputs.shape == (B, T, 2 * hidden_size)
    assert h.shape == (NUM_LAYERS, B, 2 * hidden_size)
    assert c.shape == (NUM_LAYERS, B, 2 * hidden_size)
    assert bool(jnp.all(jnp.isfinite(outputs)))
    print("KERNEL_OK")
</pallas_src>

<mosaic_0001>
module attributes {stable_mosaic.version = 11 : i64} {
  func.func @_bilstm_kernel(%arg0: i32, %arg1: memref<8x1x1x256xf32, #tpu.memory_space<vmem>>, %arg2: memref<1x1x1xi32, #tpu.memory_space<vmem>>, %arg3: memref<1x256xf32, #tpu.memory_space<vmem>>, %arg4: memref<32x128xbf16, #tpu.memory_space<vmem>>, %arg5: memref<32x128xbf16, #tpu.memory_space<vmem>>, %arg6: memref<8x1x1x64xf32, #tpu.memory_space<vmem>>, %arg7: memref<1x1x64xf32, #tpu.memory_space<vmem>>, %arg8: memref<1x1x64xf32, #tpu.memory_space<vmem>>, %arg9: memref<1x32xf32, #tpu.memory_space<vmem>>, %arg10: memref<1x32xf32, #tpu.memory_space<vmem>>, %arg11: memref<1x32xf32, #tpu.memory_space<vmem>>, %arg12: memref<1x32xf32, #tpu.memory_space<vmem>>) attributes {dimension_semantics = [#tpu.dimension_semantics<parallel>], iteration_bounds = array<i64: 2>, scalar_prefetch = 0 : i64, scratch_operands = 4 : i64, tpu.core_type = #tpu.core_type<tc>, window_params = [{transform_indices = @transform_0, window_bounds = array<i64: 8, 1, 1, 256>}, {transform_indices = @transform_1, window_bounds = array<i64: 1, 1, 1>}, {pipeline_mode = #tpu.pipeline_mode<synchronous>, transform_indices = @transform_2, window_bounds = array<i64: 1, 256>}, {pipeline_mode = #tpu.pipeline_mode<synchronous>, transform_indices = @transform_3, window_bounds = array<i64: 32, 128>}, {pipeline_mode = #tpu.pipeline_mode<synchronous>, transform_indices = @transform_4, window_bounds = array<i64: 32, 128>}, {transform_indices = @transform_5, window_bounds = array<i64: 8, 1, 1, 64>}, {transform_indices = @transform_6, window_bounds = array<i64: 1, 1, 64>}, {transform_indices = @transform_7, window_bounds = array<i64: 1, 1, 64>}]} {
    %cst = arith.constant 0.000000e+00 : f32
    %0 = vector.broadcast %cst : f32 to vector<1x32xf32>
    %c0 = arith.constant 0 : index
    %c0_0 = arith.constant 0 : index
    %1 = vector.load %arg9[%c0, %c0_0] : memref<1x32xf32, #tpu.memory_space<vmem>>, vector<1x32xf32>
    tpu.vector_store %arg9[%c0, %c0_0], %0 {strides = array<i32>} : memref<1x32xf32, #tpu.memory_space<vmem>>, vector<1x32xf32>,
    %cst_1 = arith.constant 0.000000e+00 : f32
    %2 = vector.broadcast %cst_1 : f32 to vector<1x32xf32>
    %c0_2 = arith.constant 0 : index
    %c0_3 = arith.constant 0 : index
    %3 = vector.load %arg10[%c0_2, %c0_3] : memref<1x32xf32, #tpu.memory_space<vmem>>, vector<1x32xf32>
    tpu.vector_store %arg10[%c0_2, %c0_3], %2 {strides = array<i32>} : memref<1x32xf32, #tpu.memory_space<vmem>>, vector<1x32xf32>,
    %cst_4 = arith.constant 0.000000e+00 : f32
    %4 = vector.broadcast %cst_4 : f32 to vector<1x32xf32>
    %c0_5 = arith.constant 0 : index
    %c0_6 = arith.constant 0 : index
    %5 = vector.load %arg11[%c0_5, %c0_6] : memref<1x32xf32, #tpu.memory_space<vmem>>, vector<1x32xf32>
    tpu.vector_store %arg11[%c0_5, %c0_6], %4 {strides = array<i32>} : memref<1x32xf32, #tpu.memory_space<vmem>>, vector<1x32xf32>,
    %cst_7 = arith.constant 0.000000e+00 : f32
    %6 = vector.broadcast %cst_7 : f32 to vector<1x32xf32>
    %c0_8 = arith.constant 0 : index
    %c0_9 = arith.constant 0 : index
    %7 = vector.load %arg12[%c0_8, %c0_9] : memref<1x32xf32, #tpu.memory_space<vmem>>, vector<1x32xf32>
    tpu.vector_store %arg12[%c0_8, %c0_9], %6 {strides = array<i32>} : memref<1x32xf32, #tpu.memory_space<vmem>>, vector<1x32xf32>,
    %c0_10 = arith.constant 0 : index
    %c0_11 = arith.constant 0 : index
    %c0_12 = arith.constant 0 : index
    %8 = vector.load %arg2[%c0_10, %c0_11, %c0_12] : memref<1x1x1xi32, #tpu.memory_space<vmem>>, vector<1x1x1xi32>
    %9 = vector.shape_cast %8 : vector<1x1x1xi32> to vector<1x1xi32>
    %c0_13 = arith.constant 0 : index
    %c0_14 = arith.constant 0 : index
    %10 = vector.load %arg3[%c0_13, %c0_14] : memref<1x256xf32, #tpu.memory_space<vmem>>, vector<1x256xf32>
    %c0_15 = arith.constant 0 : index
    %c0_16 = arith.constant 0 : index
    %11 = vector.load %arg4[%c0_15, %c0_16] : memref<32x128xbf16, #tpu.memory_space<vmem>>, vector<32x128xbf16>
    %c0_17 = arith.constant 0 : index
    %c0_18 = arith.constant 0 : index
    %12 = vector.load %arg5[%c0_17, %c0_18] : memref<32x128xbf16, #tpu.memory_space<vmem>>, vector<32x128xbf16>
    %c0_i32 = arith.constant 0 : i32
    %c7_i32 = arith.constant 7 : i32
    %13 = arith.subi %c7_i32, %c0_i32 : i32
    %14 = arith.index_cast %c0_i32 : i32 to index
    %c0_19 = arith.constant 0 : index
    %c0_20 = arith.constant 0 : index
    %c0_21 = arith.constant 0 : index
    %15 = vector.load %arg1[%14, %c0_19, %c0_20, %c0_21] : memref<8x1x1x256xf32, #tpu.memory_space<vmem>>, vector<1x1x1x256xf32>
    %16 = vector.shape_cast %15 : vector<1x1x1x256xf32> to vector<1x256xf32>
    %17 = arith.addf %16, %10 : vector<1x256xf32>
    %18 = vector.extract_strided_slice %17 {offsets = [0, 0], sizes = [1, 128], strides = [1, 1]} : vector<1x256xf32> to vector<1x128xf32>
    %19 = vector.extract_strided_slice %17 {offsets = [0, 128], sizes = [1, 128], strides = [1, 1]} : vector<1x256xf32> to vector<1x128xf32>
    %c0_22 = arith.constant 0 : index
    %c0_23 = arith.constant 0 : index
    %20 = vector.load %arg9[%c0_22, %c0_23] : memref<1x32xf32, #tpu.memory_space<vmem>>, vector<1x32xf32>
    %c0_24 = arith.constant 0 : index
    %c0_25 = arith.constant 0 : index
    %21 = vector.load %arg10[%c0_24, %c0_25] : memref<1x32xf32, #tpu.memory_space<vmem>>, vector<1x32xf32>
    %c0_26 = arith.constant 0 : index
    %c0_27 = arith.constant 0 : index
    %22 = vector.load %arg11[%c0_26, %c0_27] : memref<1x32xf32, #tpu.memory_space<vmem>>, vector<1x32xf32>
    %c0_28 = arith.constant 0 : index
    %c0_29 = arith.constant 0 : index
    %23 = vector.load %arg12[%c0_28, %c0_29] : memref<1x32xf32, #tpu.memory_space<vmem>>, vector<1x32xf32>
    %24 = arith.truncf %20 : vector<1x32xf32> to vector<1x32xbf16>
    %cst_30 = arith.constant dense<0.000000e+00> : vector<1x128xf32>
    %25 = tpu.matmul %24, %11, %cst_30 {dimension_numbers = #tpu.dot_dimension_numbers<[1], [0], [0], [1], [0, 0, 1, 1], [], []>} : vector<1x32xbf16>, vector<32x128xbf16>, vector<1x128xf32> -> vector<1x128xf32>
    %26 = arith.addf %18, %25 : vector<1x128xf32>
    %27 = arith.truncf %22 : vector<1x32xf32> to vector<1x32xbf16>
    %cst_31 = arith.constant dense<0.000000e+00> : vector<1x128xf32>
    %28 = tpu.matmul %27, %12, %cst_31 {dimension_numbers = #tpu.dot_dimension_numbers<[1], [0], [0], [1], [0, 0, 1, 1], [], []>} : vector<1x32xbf16>, vector<32x128xbf16>, vector<1x128xf32> -> vector<1x128xf32>
    %29 = arith.addf %19, %28 : vector<1x128xf32>
    %30 = vector.extract_strided_slice %26 {offsets = [0, 0], sizes = [1, 32], strides = [1, 1]} : vector<1x128xf32> to vector<1x32xf32>
    %31 = arith.negf %30 : vector<1x32xf32>
    %32 = math.exp %31 : vector<1x32xf32>
    %cst_32 = arith.constant 1.000000e+00 : f32
    %33 = vector.broadcast %cst_32 : f32 to vector<1x32xf32>
    %34 = arith.addf %33, %32 : vector<1x32xf32>
    %35 = arith.divf %33, %34 : vector<1x32xf32>
    %36 = vector.extract_strided_slice %26 {offsets = [0, 32], sizes = [1, 32], strides = [1, 1]} : vector<1x128xf32> to vector<1x32xf32>
    %37 = arith.negf %36 : vector<1x32xf32>
    %38 = math.exp %37 : vector<1x32xf32>
    %cst_33 = arith.constant 1.000000e+00 : f32
    %39 = vector.broadcast %cst_33 : f32 to vector<1x32xf32>
    %40 = arith.addf %39, %38 : vector<1x32xf32>
    %41 = arith.divf %39, %40 : vector<1x32xf32>
    %42 = vector.extract_strided_slice %26 {offsets = [0, 64], sizes = [1, 32], strides = [1, 1]} : vector<1x128xf32> to vector<1x32xf32>
    %43 = math.tanh %42 : vector<1x32xf32>
    %44 = vector.extract_strided_slice %26 {offsets = [0, 96], sizes = [1, 32], strides = [1, 1]} : vector<1x128xf32> to vector<1x32xf32>
    %45 = arith.negf %44 : vector<1x32xf32>
    %46 = math.exp %45 : vector<1x32xf32>
    %cst_34 = arith.constant 1.000000e+00 : f32
    %47 = vector.broadcast %cst_34 : f32 to vector<1x32xf32>
    %48 = arith.addf %47, %46 : vector<1x32xf32>
    %49 = arith.divf %47, %48 : vector<1x32xf32>
    %50 = arith.mulf %41, %21 : vector<1x32xf32>
    %51 = arith.mulf %35, %43 : vector<1x32xf32>
    %52 = arith.addf %50, %51 : vector<1x32xf32>
    %53 = math.tanh %52 : vector<1x32xf32>
    %54 = arith.mulf %49, %53 : vector<1x32xf32>
    %55 = vector.extract_strided_slice %29 {offsets = [0, 0], sizes = [1, 32], strides = [1, 1]} : vector<1x128xf32> to vector<1x32xf32>
    %56 = arith.negf %55 : vector<1x32xf32>
    %57 = math.exp %56 : vector<1x32xf32>
    %cst_35 = arith.constant 1.000000e+00 : f32
    %58 = vector.broadcast %cst_35 : f32 to vector<1x32xf32>
    %59 = arith.addf %58, %57 : vector<1x32xf32>
    %60 = arith.divf %58, %59 : vector<1x32xf32>
    %61 = vector.extract_strided_slice %29 {offsets = [0, 32], sizes = [1, 32], strides = [1, 1]} : vector<1x128xf32> to vector<1x32xf32>
    %62 = arith.negf %61 : vector<1x32xf32>
    %63 = math.exp %62 : vector<1x32xf32>
    %cst_36 = arith.constant 1.000000e+00 : f32
    %64 = vector.broadcast %cst_36 : f32 to vector<1x32xf32>
    %65 = arith.addf %64, %63 : vector<1x32xf32>
    %66 = arith.divf %64, %65 : vector<1x32xf32>
    %67 = vector.extract_strided_slice %29 {offsets = [0, 64], sizes = [1, 32], strides = [1, 1]} : vector<1x128xf32> to vector<1x32xf32>
    %68 = math.tanh %67 : vector<1x32xf32>
    %69 = vector.extract_strided_slice %29 {offsets = [0, 96], sizes = [1, 32], strides = [1, 1]} : vector<1x128xf32> to vector<1x32xf32>
    %70 = arith.negf %69 : vector<1x32xf32>
    %71 = math.exp %70 : vector<1x32xf32>
    %cst_37 = arith.constant 1.000000e+00 : f32
    %72 = vector.broadcast %cst_37 : f32 to vector<1x32xf32>
    %73 = arith.addf %72, %71 : vector<1x32xf32>
    %74 = arith.divf %72, %73 : vector<1x32xf32>
    %75 = arith.mulf %66, %23 : vector<1x32xf32>
    %76 = arith.mulf %60, %68 : vector<1x32xf32>
    %77 = arith.addf %75, %76 : vector<1x32xf32>
    %78 = math.tanh %77 : vector<1x32xf32>
    %79 = arith.mulf %74, %78 : vector<1x32xf32>
    %80 = vector.broadcast %c0_i32 : i32 to vector<1x1xi32>
    %81 = arith.cmpi slt, %80, %9 : vector<1x1xi32>
    %82 = vector.broadcast %13 : i32 to vector<1x1xi32>
    %83 = arith.cmpi slt, %82, %9 : vector<1x1xi32>
    %84 = vector.shape_cast %81 : vector<1x1xi1> to vector<1x1xi1>
    %85 = vector.broadcast %84 : vector<1x1xi1> to vector<1x32xi1>
    %86 = arith.select %85, %54, %20 : vector<1x32xi1>, vector<1x32xf32>
    %c0_38 = arith.constant 0 : index
    %c0_39 = arith.constant 0 : index
    %87 = vector.load %arg9[%c0_38, %c0_39] : memref<1x32xf32, #tpu.memory_space<vmem>>, vector<1x32xf32>
    tpu.vector_store %arg9[%c0_38, %c0_39], %86 {strides = array<i32>} : memref<1x32xf32, #tpu.memory_space<vmem>>, vector<1x32xf32>,
    %88 = vector.shape_cast %81 : vector<1x1xi1> to vector<1x1xi1>
    %89 = vector.broadcast %88 : vector<1x1xi1> to vector<1x32xi1>
    %90 = arith.select %89, %52, %21 : vector<1x32xi1>, vector<1x32xf32>
    %c0_40 = arith.constant 0 : index
    %c0_41 = arith.constant 0 : index
    %91 = vector.load %arg10[%c0_40, %c0_41] : memref<1x32xf32, #tpu.memory_space<vmem>>, vector<1x32xf32>
    tpu.vector_store %arg10[%c0_40, %c0_41], %90 {strides = array<i32>} : memref<1x32xf32, #tpu.memory_space<vmem>>, vector<1x32xf32>,
    %92 = vector.shape_cast %83 : vector<1x1xi1> to vector<1x1xi1>
    %93 = vector.broadcast %92 : vector<1x1xi1> to vector<1x32xi1>
    %94 = arith.select %93, %79, %22 : vector<1x32xi1>, vector<1x32xf32>
    %c0_42 = arith.constant 0 : index
    %c0_43 = arith.constant 0 : index
    %95 = vector.load %arg11[%c0_42, %c0_43] : memref<1x32xf32, #tpu.memory_space<vmem>>, vector<1x32xf32>
    tpu.vector_store %arg11[%c0_42, %c0_43], %94 {strides = array<i32>} : memref<1x32xf32, #tpu.memory_space<vmem>>, vector<1x32xf32>,
    %96 = vector.shape_cast %83 : vector<1x1xi1> to vector<1x1xi1>
    %97 = vector.broadcast %96 : vector<1x1xi1> to vector<1x32xi1>
    %98 = arith.select %97, %77, %23 : vector<1x32xi1>, vector<1x32xf32>
    %c0_44 = arith.constant 0 : index
    %c0_45 = arith.constant 0 : index
    %99 = vector.load %arg12[%c0_44, %c0_45] : memref<1x32xf32, #tpu.memory_space<vmem>>, vector<1x32xf32>
    tpu.vector_store %arg12[%c0_44, %c0_45], %98 {strides = array<i32>} : memref<1x32xf32, #tpu.memory_space<vmem>>, vector<1x32xf32>,
    %cst_46 = arith.constant 0.000000e+00 : f32
    %100 = vector.shape_cast %81 : vector<1x1xi1> to vector<1x1xi1>
    %101 = vector.broadcast %100 : vector<1x1xi1> to vector<1x32xi1>
    %102 = vector.broadcast %cst_46 : f32 to vector<1x32xf32>
    %103 = arith.select %101, %54, %102 : vector<1x32xi1>, vector<1x32xf32>
    %104 = arith.index_cast %c0_i32 : i32 to index
    %c0_47 = arith.constant 0 : index
    %c0_48 = arith.constant 0 : index
    %c0_49 = arith.constant 0 : index
    %105 = vector.load %arg6[%104, %c0_47, %c0_48, %c0_49] : memref<8x1x1x64xf32, #tpu.memory_space<vmem>>, vector<1x1x1x32xf32>
    %106 = vector.shape_cast %105 : vector<1x1x1x32xf32> to vector<1x32xf32>
    %107 = vector.shape_cast %103 : vector<1x32xf32> to vector<1x1x1x32xf32>
    tpu.vector_store %arg6[%104, %c0_47, %c0_48, %c0_49], %107 {strides = array<i32>} : memref<8x1x1x64xf32, #tpu.memory_space<vmem>>, vector<1x1x1x32xf32>,
    %cst_50 = arith.constant 0.000000e+00 : f32
    %108 = vector.shape_cast %83 : vector<1x1xi1> to vector<1x1xi1>
    %109 = vector.broadcast %108 : vector<1x1xi1> to vector<1x32xi1>
    %110 = vector.broadcast %cst_50 : f32 to vector<1x32xf32>
    %111 = arith.select %109, %79, %110 : vector<1x32xi1>, vector<1x32xf32>
    %112 = arith.index_cast %13 : i32 to index
    %c0_51 = arith.constant 0 : index
    %c0_52 = arith.constant 0 : index
    %c32 = arith.constant 32 : index
    %113 = vector.load %arg6[%112, %c0_51, %c0_52, %c32] : memref<8x1x1x64xf32, #tpu.memory_space<vmem>>, vector<1x1x1x32xf32>
    %114 = vector.shape_cast %113 : vector<1x1x1x32xf32> to vector<1x32xf32>
    %115 = vector.shape_cast %111 : vector<1x32xf32> to vector<1x1x1x32xf32>
    tpu.vector_store %arg6[%112, %c0_51, %c0_52, %c32], %115 {strides = array<i32>} : memref<8x1x1x64xf32, #tpu.memory_space<vmem>>, vector<1x1x1x32xf32>,
    %c1_i32 = arith.constant 1 : i32
    %c7_i32_53 = arith.constant 7 : i32
    %116 = arith.subi %c7_i32_53, %c1_i32 : i32
    %117 = arith.index_cast %c1_i32 : i32 to index
    %c0_54 = arith.constant 0 : index
    %c0_55 = arith.constant 0 : index
    %c0_56 = arith.constant 0 : index
    %118 = vector.load %arg1[%117, %c0_54, %c0_55, %c0_56] : memref<8x1x1x256xf32, #tpu.memory_space<vmem>>, vector<1x1x1x256xf32>
    %119 = vector.shape_cast %118 : vector<1x1x1x256xf32> to vector<1x256xf32>
    %120 = arith.addf %119, %10 : vector<1x256xf32>
    %121 = vector.extract_strided_slice %120 {offsets = [0, 0], sizes = [1, 128], strides = [1, 1]} : vector<1x256xf32> to vector<1x128xf32>
    %122 = vector.extract_strided_slice %120 {offsets = [0, 128], sizes = [1, 128], strides = [1, 1]} : vector<1x256xf32> to vector<1x128xf32>
    %c0_57 = arith.constant 0 : index
    %c0_58 = arith.constant 0 : index
    %123 = vector.load %arg9[%c0_57, %c0_58] : memref<1x32xf32, #tpu.memory_space<vmem>>, vector<1x32xf32>
    %c0_59 = arith.constant 0 : index
    %c0_60 = arith.constant 0 : index
    %124 = vector.load %arg10[%c0_59, %c0_60] : memref<1x32xf32, #tpu.memory_space<vmem>>, vector<1x32xf32>
    %c0_61 = arith.constant 0 : index
    %c0_62 = arith.constant 0 : index
    %125 = vector.load %arg11[%c0_61, %c0_62] : memref<1x32xf32, #tpu.memory_space<vmem>>, vector<1x32xf32>
    %c0_63 = arith.constant 0 : index
    %c0_64 = arith.constant 0 : index
    %126 = vector.load %arg12[%c0_63, %c0_64] : memref<1x32xf32, #tpu.memory_space<vmem>>, vector<1x32xf32>
    %127 = arith.truncf %123 : vector<1x32xf32> to vector<1x32xbf16>
    %cst_65 = arith.constant dense<0.000000e+00> : vector<1x128xf32>
    %128 = tpu.matmul %127, %11, %cst_65 {dimension_numbers = #tpu.dot_dimension_numbers<[1], [0], [0], [1], [0, 0, 1, 1], [], []>} : vector<1x32xbf16>, vector<32x128xbf16>, vector<1x128xf32> -> vector<1x128xf32>
    %129 = arith.addf %121, %128 : vector<1x128xf32>
    %130 = arith.truncf %125 : vector<1x32xf32> to vector<1x32xbf16>
    %cst_66 = arith.constant dense<0.000000e+00> : vector<1x128xf32>
    %131 = tpu.matmul %130, %12, %cst_66 {dimension_numbers = #tpu.dot_dimension_numbers<[1], [0], [0], [1], [0, 0, 1, 1], [], []>} : vector<1x32xbf16>, vector<32x128xbf16>, vector<1x128xf32> -> vector<1x128xf32>
    %132 = arith.addf %122, %131 : vector<1x128xf32>
    %133 = vector.extract_strided_slice %129 {offsets = [0, 0], sizes = [1, 32], strides = [1, 1]} : vector<1x128xf32> to vector<1x32xf32>
    %134 = arith.negf %133 : vector<1x32xf32>
    %135 = math.exp %134 : vector<1x32xf32>
    %cst_67 = arith.constant 1.000000e+00 : f32
    %136 = vector.broadcast %cst_67 : f32 to vector<1x32xf32>
    %137 = arith.addf %136, %135 : vector<1x32xf32>
    %138 = arith.divf %136, %137 : vector<1x32xf32>
    %139 = vector.extract_strided_slice %129 {offsets = [0, 32], sizes = [1, 32], strides = [1, 1]} : vector<1x128xf32> to vector<1x32xf32>
    %140 = arith.negf %139 : vector<1x32xf32>
    %141 = math.exp %140 : vector<1x32xf32>
    %cst_68 = arith.constant 1.000000e+00 : f32
    %142 = vector.broadcast %cst_68 : f32 to vector<1x32xf32>
    %143 = arith.addf %142, %141 : vector<1x32xf32>
    %144 = arith.divf %142, %143 : vector<1x32xf32>
    %145 = vector.extract_strided_slice %129 {offsets = [0, 64], sizes = [1, 32], strides = [1, 1]} : vector<1x128xf32> to vector<1x32xf32>
    %146 = math.tanh %145 : vector<1x32xf32>
    %147 = vector.extract_strided_slice %129 {offsets = [0, 96], sizes = [1, 32], strides = [1, 1]} : vector<1x128xf32> to vector<1x32xf32>
    %148 = arith.negf %147 : vector<1x32xf32>
    %149 = math.exp %148 : vector<1x32xf32>
    %cst_69 = arith.constant 1.000000e+00 : f32
    %150 = vector.broadcast %cst_69 : f32 to vector<1x32xf32>
    %151 = arith.addf %150, %149 : vector<1x32xf32>
    %152 = arith.divf %150, %151 : vector<1x32xf32>
    %153 = arith.mulf %144, %124 : vector<1x32xf32>
    %154 = arith.mulf %138, %146 : vector<1x32xf32>
    %155 = arith.addf %153, %154 : vector<1x32xf32>
    %156 = math.tanh %155 : vector<1x32xf32>
    %157 = arith.mulf %152, %156 : vector<1x32xf32>
    %158 = vector.extract_strided_slice %132 {offsets = [0, 0], sizes = [1, 32], strides = [1, 1]} : vector<1x128xf32> to vector<1x32xf32>
    %159 = arith.negf %158 : vector<1x32xf32>
    %160 = math.exp %159 : vector<1x32xf32>
    %cst_70 = arith.constant 1.000000e+00 : f32
    %161 = vector.broadcast %cst_70 : f32 to vector<1x32xf32>
    %162 = arith.addf %161, %160 : vector<1x32xf32>
    %163 = arith.divf %161, %162 : vector<1x32xf32>
    %164 = vector.extract_strided_slice %132 {offsets = [0, 32], sizes = [1, 32], strides = [1, 1]} : vector<1x128xf32> to vector<1x32xf32>
    %165 = arith.negf %164 : vector<1x32xf32>
    %166 = math.exp %165 : vector<1x32xf32>
    %cst_71 = arith.constant 1.000000e+00 : f32
    %167 = vector.broadcast %cst_71 : f32 to vector<1x32xf32>
    %168 = arith.addf %167, %166 : vector<1x32xf32>
    %169 = arith.divf %167, %168 : vector<1x32xf32>
    %170 = vector.extract_strided_slice %132 {offsets = [0, 64], sizes = [1, 32], strides = [1, 1]} : vector<1x128xf32> to vector<1x32xf32>
    %171 = math.tanh %170 : vector<1x32xf32>
    %172 = vector.extract_strided_slice %132 {offsets = [0, 96], sizes = [1, 32], strides = [1, 1]} : vector<1x128xf32> to vector<1x32xf32>
    %173 = arith.negf %172 : vector<1x32xf32>
    %174 = math.exp %173 : vector<1x32xf32>
    %cst_72 = arith.constant 1.000000e+00 : f32
    %175 = vector.broadcast %cst_72 : f32 to vector<1x32xf32>
    %176 = arith.addf %175, %174 : vector<1x32xf32>
    %177 = arith.divf %175, %176 : vector<1x32xf32>
    %178 = arith.mulf %169, %126 : vector<1x32xf32>
    %179 = arith.mulf %163, %171 : vector<1x32xf32>
    %180 = arith.addf %178, %179 : vector<1x32xf32>
    %181 = math.tanh %180 : vector<1x32xf32>
    %182 = arith.mulf %177, %181 : vector<1x32xf32>
    %183 = vector.broadcast %c1_i32 : i32 to vector<1x1xi32>
    %184 = arith.cmpi slt, %183, %9 : vector<1x1xi32>
    %185 = vector.broadcast %116 : i32 to vector<1x1xi32>
    %186 = arith.cmpi slt, %185, %9 : vector<1x1xi32>
    %187 = vector.shape_cast %184 : vector<1x1xi1> to vector<1x1xi1>
    %188 = vector.broadcast %187 : vector<1x1xi1> to vector<1x32xi1>
    %189 = arith.select %188, %157, %123 : vector<1x32xi1>, vector<1x32xf32>
    %c0_73 = arith.constant 0 : index
    %c0_74 = arith.constant 0 : index
    %190 = vector.load %arg9[%c0_73, %c0_74] : memref<1x32xf32, #tpu.memory_space<vmem>>, vector<1x32xf32>
    tpu.vector_store %arg9[%c0_73, %c0_74], %189 {strides = array<i32>} : memref<1x32xf32, #tpu.memory_space<vmem>>, vector<1x32xf32>,
    %191 = vector.shape_cast %184 : vector<1x1xi1> to vector<1x1xi1>
    %192 = vector.broadcast %191 : vector<1x1xi1> to vector<1x32xi1>
    %193 = arith.select %192, %155, %124 : vector<1x32xi1>, vector<1x32xf32>
    %c0_75 = arith.constant 0 : index
    %c0_76 = arith.constant 0 : index
    %194 = vector.load %arg10[%c0_75, %c0_76] : memref<1x32xf32, #tpu.memory_space<vmem>>, vector<1x32xf32>
    tpu.vector_store %arg10[%c0_75, %c0_76], %193 {strides = array<i32>} : memref<1x32xf32, #tpu.memory_space<vmem>>, vector<1x32xf32>,
    %195 = vector.shape_cast %186 : vector<1x1xi1> to vector<1x1xi1>
    %196 = vector.broadcast %195 : vector<1x1xi1> to vector<1x32xi1>
    %197 = arith.select %196, %182, %125 : vector<1x32xi1>, vector<1x32xf32>
    %c0_77 = arith.constant 0 : index
    %c0_78 = arith.constant 0 : index
    %198 = vector.load %arg11[%c0_77, %c0_78] : memref<1x32xf32, #tpu.memory_space<vmem>>, vector<1x32xf32>
    tpu.vector_store %arg11[%c0_77, %c0_78], %197 {strides = array<i32>} : memref<1x32xf32, #tpu.memory_space<vmem>>, vector<1x32xf32>,
    %199 = vector.shape_cast %186 : vector<1x1xi1> to vector<1x1xi1>
    %200 = vector.broadcast %199 : vector<1x1xi1> to vector<1x32xi1>
    %201 = arith.select %200, %180, %126 : vector<1x32xi1>, vector<1x32xf32>
    %c0_79 = arith.constant 0 : index
    %c0_80 = arith.constant 0 : index
    %202 = vector.load %arg12[%c0_79, %c0_80] : memref<1x32xf32, #tpu.memory_space<vmem>>, vector<1x32xf32>
    tpu.vector_store %arg12[%c0_79, %c0_80], %201 {strides = array<i32>} : memref<1x32xf32, #tpu.memory_space<vmem>>, vector<1x32xf32>,
    %cst_81 = arith.constant 0.000000e+00 : f32
    %203 = vector.shape_cast %184 : vector<1x1xi1> to vector<1x1xi1>
    %204 = vector.broadcast %203 : vector<1x1xi1> to vector<1x32xi1>
    %205 = vector.broadcast %cst_81 : f32 to vector<1x32xf32>
    %206 = arith.select %204, %157, %205 : vector<1x32xi1>, vector<1x32xf32>
    %207 = arith.index_cast %c1_i32 : i32 to index
    %c0_82 = arith.constant 0 : index
    %c0_83 = arith.constant 0 : index
    %c0_84 = arith.constant 0 : index
    %208 = vector.load %arg6[%207, %c0_82, %c0_83, %c0_84] : memref<8x1x1x64xf32, #tpu.memory_space<vmem>>, vector<1x1x1x32xf32>
    %209 = vector.shape_cast %208 : vector<1x1x1x32xf32> to vector<1x32xf32>
    %210 = vector.shape_cast %206 : vector<1x32xf32> to vector<1x1x1x32xf32>
    tpu.vector_store %arg6[%207, %c0_82, %c0_83, %c0_84], %210 {strides = array<i32>} : memref<8x1x1x64xf32, #tpu.memory_space<vmem>>, vector<1x1x1x32xf32>,
    %cst_85 = arith.constant 0.000000e+00 : f32
    %211 = vector.shape_cast %186 : vector<1x1xi1> to vector<1x1xi1>
    %212 = vector.broadcast %211 : vector<1x1xi1> to vector<1x32xi1>
    %213 = vector.broadcast %cst_85 : f32 to vector<1x32xf32>
    %214 = arith.select %212, %182, %213 : vector<1x32xi1>, vector<1x32xf32>
    %215 = arith.index_cast %116 : i32 to index
    %c0_86 = arith.constant 0 : index
    %c0_87 = arith.constant 0 : index
    %c32_88 = arith.constant 32 : index
    %216 = vector.load %arg6[%215, %c0_86, %c0_87, %c32_88] : memref<8x1x1x64xf32, #tpu.memory_space<vmem>>, vector<1x1x1x32xf32>
    %217 = vector.shape_cast %216 : vector<1x1x1x32xf32> to vector<1x32xf32>
    %218 = vector.shape_cast %214 : vector<1x32xf32> to vector<1x1x1x32xf32>
    tpu.vector_store %arg6[%215, %c0_86, %c0_87, %c32_88], %218 {strides = array<i32>} : memref<8x1x1x64xf32, #tpu.memory_space<vmem>>, vector<1x1x1x32xf32>,
    %c2_i32 = arith.constant 2 : i32
    %c7_i32_89 = arith.constant 7 : i32
    %219 = arith.subi %c7_i32_89, %c2_i32 : i32
    %220 = arith.index_cast %c2_i32 : i32 to index
    %c0_90 = arith.constant 0 : index
    %c0_91 = arith.constant 0 : index
    %c0_92 = arith.constant 0 : index
    %221 = vector.load %arg1[%220, %c0_90, %c0_91, %c0_92] : memref<8x1x1x256xf32, #tpu.memory_space<vmem>>, vector<1x1x1x256xf32>
    %222 = vector.shape_cast %221 : vector<1x1x1x256xf32> to vector<1x256xf32>
    %223 = arith.addf %222, %10 : vector<1x256xf32>
    %224 = vector.extract_strided_slice %223 {offsets = [0, 0], sizes = [1, 128], strides = [1, 1]} : vector<1x256xf32> to vector<1x128xf32>
    %225 = vector.extract_strided_slice %223 {offsets = [0, 128], sizes = [1, 128], strides = [1, 1]} : vector<1x256xf32> to vector<1x128xf32>
    %c0_93 = arith.constant 0 : index
    %c0_94 = arith.constant 0 : index
    %226 = vector.load %arg9[%c0_93, %c0_94] : memref<1x32xf32, #tpu.memory_space<vmem>>, vector<1x32xf32>
    %c0_95 = arith.constant 0 : index
    %c0_96 = arith.constant 0 : index
    %227 = vector.load %arg10[%c0_95, %c0_96] : memref<1x32xf32, #tpu.memory_space<vmem>>, vector<1x32xf32>
    %c0_97 = arith.constant 0 : index
    %c0_98 = arith.constant 0 : index
    %228 = vector.load %arg11[%c0_97, %c0_98] : memref<1x32xf32, #tpu.memory_space<vmem>>, vector<1x32xf32>
    %c0_99 = arith.constant 0 : index
    %c0_100 = arith.constant 0 : index
    %229 = vector.load %arg12[%c0_99, %c0_100] : memref<1x32xf32, #tpu.memory_space<vmem>>, vector<1x32xf32>
    %230 = arith.truncf %226 : vector<1x32xf32> to vector<1x32xbf16>
    %cst_101 = arith.constant dense<0.000000e+00> : vector<1x128xf32>
    %231 = tpu.matmul %230, %11, %cst_101 {dimension_numbers = #tpu.dot_dimension_numbers<[1], [0], [0], [1], [0, 0, 1, 1], [], []>} : vector<1x32xbf16>, vector<32x128xbf16>, vector<1x128xf32> -> vector<1x128xf32>
    %232 = arith.addf %224, %231 : vector<1x128xf32>
    %233 = arith.truncf %228 : vector<1x32xf32> to vector<1x32xbf16>
    %cst_102 = arith.constant dense<0.000000e+00> : vector<1x128xf32>
    %234 = tpu.matmul %233, %12, %cst_102 {dimension_numbers = #tpu.dot_dimension_numbers<[1], [0], [0], [1], [0, 0, 1, 1], [], []>} : vector<1x32xbf16>, vector<32x128xbf16>, vector<1x128xf32> -> vector<1x128xf32>
    %235 = arith.addf %225, %234 : vector<1x128xf32>
    %236 = vector.extract_strided_slice %232 {offsets = [0, 0], sizes = [1, 32], strides = [1, 1]} : vector<1x128xf32> to vector<1x32xf32>
    %237 = arith.negf %236 : vector<1x32xf32>
    %238 = math.exp %237 : vector<1x32xf32>
    %cst_103 = arith.constant 1.000000e+00 : f32
    %239 = vector.broadcast %cst_103 : f32 to vector<1x32xf32>
    %240 = arith.addf %239, %238 : vector<1x32xf32>
    %241 = arith.divf %239, %240 : vector<1x32xf32>
    %242 = vector.extract_strided_slice %232 {offsets = [0, 32], sizes = [1, 32], strides = [1, 1]} : vector<1x128xf32> to vector<1x32xf32>
    %243 = arith.negf %242 : vector<1x32xf32>
    %244 = math.exp %243 : vector<1x32xf32>
    %cst_104 = arith.constant 1.000000e+00 : f32
    %245 = vector.broadcast %cst_104 : f32 to vector<1x32xf32>
    %246 = arith.addf %245, %244 : vector<1x32xf32>
    %247 = arith.divf %245, %246 : vector<1x32xf32>
    %248 = vector.extract_strided_slice %232 {offsets = [0, 64], sizes = [1, 32], strides = [1, 1]} : vector<1x128xf32> to vector<1x32xf32>
    %249 = math.tanh %248 : vector<1x32xf32>
    %250 = vector.extract_strided_slice %232 {offsets = [0, 96], sizes = [1, 32], strides = [1, 1]} : vector<1x128xf32> to vector<1x32xf32>
    %251 = arith.negf %250 : vector<1x32xf32>
    %252 = math.exp %251 : vector<1x32xf32>
    %cst_105 = arith.constant 1.000000e+00 : f32
    %253 = vector.broadcast %cst_105 : f32 to vector<1x32xf32>
    %254 = arith.addf %253, %252 : vector<1x32xf32>
    %255 = arith.divf %253, %254 : vector<1x32xf32>
    %256 = arith.mulf %247, %227 : vector<1x32xf32>
    %257 = arith.mulf %241, %249 : vector<1x32xf32>
    %258 = arith.addf %256, %257 : vector<1x32xf32>
    %259 = math.tanh %258 : vector<1x32xf32>
    %260 = arith.mulf %255, %259 : vector<1x32xf32>
    %261 = vector.extract_strided_slice %235 {offsets = [0, 0], sizes = [1, 32], strides = [1, 1]} : vector<1x128xf32> to vector<1x32xf32>
    %262 = arith.negf %261 : vector<1x32xf32>
    %263 = math.exp %262 : vector<1x32xf32>
    %cst_106 = arith.constant 1.000000e+00 : f32
    %264 = vector.broadcast %cst_106 : f32 to vector<1x32xf32>
    %265 = arith.addf %264, %263 : vector<1x32xf32>
    %266 = arith.divf %264, %265 : vector<1x32xf32>
    %267 = vector.extract_strided_slice %235 {offsets = [0, 32], sizes = [1, 32], strides = [1, 1]} : vector<1x128xf32> to vector<1x32xf32>
    %268 = arith.negf %267 : vector<1x32xf32>
    %269 = math.exp %268 : vector<1x32xf32>
    %cst_107 = arith.constant 1.000000e+00 : f32
    %270 = vector.broadcast %cst_107 : f32 to vector<1x32xf32>
    %271 = arith.addf %270, %269 : vector<1x32xf32>
    %272 = arith.divf %270, %271 : vector<1x32xf32>
    %273 = vector.extract_strided_slice %235 {offsets = [0, 64], sizes = [1, 32], strides = [1, 1]} : vector<1x128xf32> to vector<1x32xf32>
    %274 = math.tanh %273 : vector<1x32xf32>
    %275 = vector.extract_strided_slice %235 {offsets = [0, 96], sizes = [1, 32], strides = [1, 1]} : vector<1x128xf32> to vector<1x32xf32>
    %276 = arith.negf %275 : vector<1x32xf32>
    %277 = math.exp %276 : vector<1x32xf32>
    %cst_108 = arith.constant 1.000000e+00 : f32
    %278 = vector.broadcast %cst_108 : f32 to vector<1x32xf32>
    %279 = arith.addf %278, %277 : vector<1x32xf32>
    %280 = arith.divf %278, %279 : vector<1x32xf32>
    %281 = arith.mulf %272, %229 : vector<1x32xf32>
    %282 = arith.mulf %266, %274 : vector<1x32xf32>
    %283 = arith.addf %281, %282 : vector<1x32xf32>
    %284 = math.tanh %283 : vector<1x32xf32>
    %285 = arith.mulf %280, %284 : vector<1x32xf32>
    %286 = vector.broadcast %c2_i32 : i32 to vector<1x1xi32>
    %287 = arith.cmpi slt, %286, %9 : vector<1x1xi32>
    %288 = vector.broadcast %219 : i32 to vector<1x1xi32>
    %289 = arith.cmpi slt, %288, %9 : vector<1x1xi32>
    %290 = vector.shape_cast %287 : vector<1x1xi1> to vector<1x1xi1>
    %291 = vector.broadcast %290 : vector<1x1xi1> to vector<1x32xi1>
    %292 = arith.select %291, %260, %226 : vector<1x32xi1>, vector<1x32xf32>
    %c0_109 = arith.constant 0 : index
    %c0_110 = arith.constant 0 : index
    %293 = vector.load %arg9[%c0_109, %c0_110] : memref<1x32xf32, #tpu.memory_space<vmem>>, vector<1x32xf32>
    tpu.vector_store %arg9[%c0_109, %c0_110], %292 {strides = array<i32>} : memref<1x32xf32, #tpu.memory_space<vmem>>, vector<1x32xf32>,
    %294 = vector.shape_cast %287 : vector<1x1xi1> to vector<1x1xi1>
    %295 = vector.broadcast %294 : vector<1x1xi1> to vector<1x32xi1>
    %296 = arith.select %295, %258, %227 : vector<1x32xi1>, vector<1x32xf32>
    %c0_111 = arith.constant 0 : index
    %c0_112 = arith.constant 0 : index
    %297 = vector.load %arg10[%c0_111, %c0_112] : memref<1x32xf32, #tpu.memory_space<vmem>>, vector<1x32xf32>
    tpu.vector_store %arg10[%c0_111, %c0_112], %296 {strides = array<i32>} : memref<1x32xf32, #tpu.memory_space<vmem>>, vector<1x32xf32>,
    %298 = vector.shape_cast %289 : vector<1x1xi1> to vector<1x1xi1>
    %299 = vector.broadcast %298 : vector<1x1xi1> to vector<1x32xi1>
    %300 = arith.select %299, %285, %228 : vector<1x32xi1>, vector<1x32xf32>
    %c0_113 = arith.constant 0 : index
    %c0_114 = arith.constant 0 : index
    %301 = vector.load %arg11[%c0_113, %c0_114] : memref<1x32xf32, #tpu.memory_space<vmem>>, vector<1x32xf32>
    tpu.vector_store %arg11[%c0_113, %c0_114], %300 {strides = array<i32>} : memref<1x32xf32, #tpu.memory_space<vmem>>, vector<1x32xf32>,
    %302 = vector.shape_cast %289 : vector<1x1xi1> to vector<1x1xi1>
    %303 = vector.broadcast %302 : vector<1x1xi1> to vector<1x32xi1>
    %304 = arith.select %303, %283, %229 : vector<1x32xi1>, vector<1x32xf32>
    %c0_115 = arith.constant 0 : index
    %c0_116 = arith.constant 0 : index
    %305 = vector.load %arg12[%c0_115, %c0_116] : memref<1x32xf32, #tpu.memory_space<vmem>>, vector<1x32xf32>
    tpu.vector_store %arg12[%c0_115, %c0_116], %304 {strides = array<i32>} : memref<1x32xf32, #tpu.memory_space<vmem>>, vector<1x32xf32>,
    %cst_117 = arith.constant 0.000000e+00 : f32
    %306 = vector.shape_cast %287 : vector<1x1xi1> to vector<1x1xi1>
    %307 = vector.broadcast %306 : vector<1x1xi1> to vector<1x32xi1>
    %308 = vector.broadcast %cst_117 : f32 to vector<1x32xf32>
    %309 = arith.select %307, %260, %308 : vector<1x32xi1>, vector<1x32xf32>
    %310 = arith.index_cast %c2_i32 : i32 to index
    %c0_118 = arith.constant 0 : index
    %c0_119 = arith.constant 0 : index
    %c0_120 = arith.constant 0 : index
    %311 = vector.load %arg6[%310, %c0_118, %c0_119, %c0_120] : memref<8x1x1x64xf32, #tpu.memory_space<vmem>>, vector<1x1x1x32xf32>
    %312 = vector.shape_cast %311 : vector<1x1x1x32xf32> to vector<1x32xf32>
    %313 = vector.shape_cast %309 : vector<1x32xf32> to vector<1x1x1x32xf32>
    tpu.vector_store %arg6[%310, %c0_118, %c0_119, %c0_120], %313 {strides = array<i32>} : memref<8x1x1x64xf32, #tpu.memory_space<vmem>>, vector<1x1x1x32xf32>,
    %cst_121 = arith.constant 0.000000e+00 : f32
    %314 = vector.shape_cast %289 : vector<1x1xi1> to vector<1x1xi1>
    %315 = vector.broadcast %314 : vector<1x1xi1> to vector<1x32xi1>
    %316 = vector.broadcast %cst_121 : f32 to vector<1x32xf32>
    %317 = arith.select %315, %285, %316 : vector<1x32xi1>, vector<1x32xf32>
    %318 = arith.index_cast %219 : i32 to index
    %c0_122 = arith.constant 0 : index
    %c0_123 = arith.constant 0 : index
    %c32_124 = arith.constant 32 : index
    %319 = vector.load %arg6[%318, %c0_122, %c0_123, %c32_124] : memref<8x1x1x64xf32, #tpu.memory_space<vmem>>, vector<1x1x1x32xf32>
    %320 = vector.shape_cast %319 : vector<1x1x1x32xf32> to vector<1x32xf32>
    %321 = vector.shape_cast %317 : vector<1x32xf32> to vector<1x1x1x32xf32>
    tpu.vector_store %arg6[%318, %c0_122, %c0_123, %c32_124], %321 {strides = array<i32>} : memref<8x1x1x64xf32, #tpu.memory_space<vmem>>, vector<1x1x1x32xf32>,
    %c3_i32 = arith.constant 3 : i32
    %c7_i32_125 = arith.constant 7 : i32
    %322 = arith.subi %c7_i32_125, %c3_i32 : i32
    %323 = arith.index_cast %c3_i32 : i32 to index
    %c0_126 = arith.constant 0 : index
    %c0_127 = arith.constant 0 : index
    %c0_128 = arith.constant 0 : index
    %324 = vector.load %arg1[%323, %c0_126, %c0_127, %c0_128] : memref<8x1x1x256xf32, #tpu.memory_space<vmem>>, vector<1x1x1x256xf32>
    %325 = vector.shape_cast %324 : vector<1x1x1x256xf32> to vector<1x256xf32>
    %326 = arith.addf %325, %10 : vector<1x256xf32>
    %327 = vector.extract_strided_slice %326 {offsets = [0, 0], sizes = [1, 128], strides = [1, 1]} : vector<1x256xf32> to vector<1x128xf32>
    %328 = vector.extract_strided_slice %326 {offsets = [0, 128], sizes = [1, 128], strides = [1, 1]} : vector<1x256xf32> to vector<1x128xf32>
    %c0_129 = arith.constant 0 : index
    %c0_130 = arith.constant 0 : index
    %329 = vector.load %arg9[%c0_129, %c0_130] : memref<1x32xf32, #tpu.memory_space<vmem>>, vector<1x32xf32>
    %c0_131 = arith.constant 0 : index
    %c0_132 = arith.constant 0 : index
    %330 = vector.load %arg10[%c0_131, %c0_132] : memref<1x32xf32, #tpu.memory_space<vmem>>, vector<1x32xf32>
    %c0_133 = arith.constant 0 : index
    %c0_134 = arith.constant 0 : index
    %331 = vector.load %arg11[%c0_133, %c0_134] : memref<1x32xf32, #tpu.memory_space<vmem>>, vector<1x32xf32>
    %c0_135 = arith.constant 0 : index
    %c0_136 = arith.constant 0 : index
    %332 = vector.load %arg12[%c0_135, %c0_136] : memref<1x32xf32, #tpu.memory_space<vmem>>, vector<1x32xf32>
    %333 = arith.truncf %329 : vector<1x32xf32> to vector<1x32xbf16>
    %cst_137 = arith.constant dense<0.000000e+00> : vector<1x128xf32>
    %334 = tpu.matmul %333, %11, %cst_137 {dimension_numbers = #tpu.dot_dimension_numbers<[1], [0], [0], [1], [0, 0, 1, 1], [], []>} : vector<1x32xbf16>, vector<32x128xbf16>, vector<1x128xf32> -> vector<1x128xf32>
    %335 = arith.addf %327, %334 : vector<1x128xf32>
    %336 = arith.truncf %331 : vector<1x32xf32> to vector<1x32xbf16>
    %cst_138 = arith.constant dense<0.000000e+00> : vector<1x128xf32>
    %337 = tpu.matmul %336, %12, %cst_138 {dimension_numbers = #tpu.dot_dimension_numbers<[1], [0], [0], [1], [0, 0, 1, 1], [], []>} : vector<1x32xbf16>, vector<32x128xbf16>, vector<1x128xf32> -> vector<1x128xf32>
    %338 = arith.addf %328, %337 : vector<1x128xf32>
    %339 = vector.extract_strided_slice %335 {offsets = [0, 0], sizes = [1, 32], strides = [1, 1]} : vector<1x128xf32> to vector<1x32xf32>
    %340 = arith.negf %339 : vector<1x32xf32>
    %341 = math.exp %340 : vector<1x32xf32>
    %cst_139 = arith.constant 1.000000e+00 : f32
    %342 = vector.broadcast %cst_139 : f32 to vector<1x32xf32>
    %343 = arith.addf %342, %341 : vector<1x32xf32>
    %344 = arith.divf %342, %343 : vector<1x32xf32>
    %345 = vector.extract_strided_slice %335 {offsets = [0, 32], sizes = [1, 32], strides = [1, 1]} : vector<1x128xf32> to vector<1x32xf32>
    %346 = arith.negf %345 : vector<1x32xf32>
    %347 = math.exp %346 : vector<1x32xf32>
    %cst_140 = arith.constant 1.000000e+00 : f32
    %348 = vector.broadcast %cst_140 : f32 to vector<1x32xf32>
    %349 = arith.addf %348, %347 : vector<1x32xf32>
    %350 = arith.divf %348, %349 : vector<1x32xf32>
    %351 = vector.extract_strided_slice %335 {offsets = [0, 64], sizes = [1, 32], strides = [1, 1]} : vector<1x128xf32> to vector<1x32xf32>
    %352 = math.tanh %351 : vector<1x32xf32>
    %353 = vector.extract_strided_slice %335 {offsets = [0, 96], sizes = [1, 32], strides = [1, 1]} : vector<1x128xf32> to vector<1x32xf32>
    %354 = arith.negf %353 : vector<1x32xf32>
    %355 = math.exp %354 : vector<1x32xf32>
    %cst_141 = arith.constant 1.000000e+00 : f32
    %356 = vector.broadcast %cst_141 : f32 to vector<1x32xf32>
    %357 = arith.addf %356, %355 : vector<1x32xf32>
    %358 = arith.divf %356, %357 : vector<1x32xf32>
    %359 = arith.mulf %350, %330 : vector<1x32xf32>
    %360 = arith.mulf %344, %352 : vector<1x32xf32>
    %361 = arith.addf %359, %360 : vector<1x32xf32>
    %362 = math.tanh %361 : vector<1x32xf32>
    %363 = arith.mulf %358, %362 : vector<1x32xf32>
    %364 = vector.extract_strided_slice %338 {offsets = [0, 0], sizes = [1, 32], strides = [1, 1]} : vector<1x128xf32> to vector<1x32xf32>
    %365 = arith.negf %364 : vector<1x32xf32>
    %366 = math.exp %365 : vector<1x32xf32>
    %cst_142 = arith.constant 1.000000e+00 : f32
    %367 = vector.broadcast %cst_142 : f32 to vector<1x32xf32>
    %368 = arith.addf %367, %366 : vector<1x32xf32>
    %369 = arith.divf %367, %368 : vector<1x32xf32>
    %370 = vector.extract_strided_slice %338 {offsets = [0, 32], sizes = [1, 32], strides = [1, 1]} : vector<1x128xf32> to vector<1x32xf32>
    %371 = arith.negf %370 : vector<1x32xf32>
    %372 = math.exp %371 : vector<1x32xf32>
    %cst_143 = arith.constant 1.000000e+00 : f32
    %373 = vector.broadcast %cst_143 : f32 to vector<1x32xf32>
    %374 = arith.addf %373, %372 : vector<1x32xf32>
    %375 = arith.divf %373, %374 : vector<1x32xf32>
    %376 = vector.extract_strided_slice %338 {offsets = [0, 64], sizes = [1, 32], strides = [1, 1]} : vector<1x128xf32> to vector<1x32xf32>
    %377 = math.tanh %376 : vector<1x32xf32>
    %378 = vector.extract_strided_slice %338 {offsets = [0, 96], sizes = [1, 32], strides = [1, 1]} : vector<1x128xf32> to vector<1x32xf32>
    %379 = arith.negf %378 : vector<1x32xf32>
    %380 = math.exp %379 : vector<1x32xf32>
    %cst_144 = arith.constant 1.000000e+00 : f32
    %381 = vector.broadcast %cst_144 : f32 to vector<1x32xf32>
    %382 = arith.addf %381, %380 : vector<1x32xf32>
    %383 = arith.divf %381, %382 : vector<1x32xf32>
    %384 = arith.mulf %375, %332 : vector<1x32xf32>
    %385 = arith.mulf %369, %377 : vector<1x32xf32>
    %386 = arith.addf %384, %385 : vector<1x32xf32>
    %387 = math.tanh %386 : vector<1x32xf32>
    %388 = arith.mulf %383, %387 : vector<1x32xf32>
    %389 = vector.broadcast %c3_i32 : i32 to vector<1x1xi32>
    %390 = arith.cmpi slt, %389, %9 : vector<1x1xi32>
    %391 = vector.broadcast %322 : i32 to vector<1x1xi32>
    %392 = arith.cmpi slt, %391, %9 : vector<1x1xi32>
    %393 = vector.shape_cast %390 : vector<1x1xi1> to vector<1x1xi1>
    %394 = vector.broadcast %393 : vector<1x1xi1> to vector<1x32xi1>
    %395 = arith.select %394, %363, %329 : vector<1x32xi1>, vector<1x32xf32>
    %c0_145 = arith.constant 0 : index
    %c0_146 = arith.constant 0 : index
    %396 = vector.load %arg9[%c0_145, %c0_146] : memref<1x32xf32, #tpu.memory_space<vmem>>, vector<1x32xf32>
    tpu.vector_store %arg9[%c0_145, %c0_146], %395 {strides = array<i32>} : memref<1x32xf32, #tpu.memory_space<vmem>>, vector<1x32xf32>,
    %397 = vector.shape_cast %390 : vector<1x1xi1> to vector<1x1xi1>
    %398 = vector.broadcast %397 : vector<1x1xi1> to vector<1x32xi1>
    %399 = arith.select %398, %361, %330 : vector<1x32xi1>, vector<1x32xf32>
    %c0_147 = arith.constant 0 : index
    %c0_148 = arith.constant 0 : index
    %400 = vector.load %arg10[%c0_147, %c0_148] : memref<1x32xf32, #tpu.memory_space<vmem>>, vector<1x32xf32>
    tpu.vector_store %arg10[%c0_147, %c0_148], %399 {strides = array<i32>} : memref<1x32xf32, #tpu.memory_space<vmem>>, vector<1x32xf32>,
    %401 = vector.shape_cast %392 : vector<1x1xi1> to vector<1x1xi1>
    %402 = vector.broadcast %401 : vector<1x1xi1> to vector<1x32xi1>
    %403 = arith.select %402, %388, %331 : vector<1x32xi1>, vector<1x32xf32>
    %c0_149 = arith.constant 0 : index
    %c0_150 = arith.constant 0 : index
    %404 = vector.load %arg11[%c0_149, %c0_150] : memref<1x32xf32, #tpu.memory_space<vmem>>, vector<1x32xf32>
    tpu.vector_store %arg11[%c0_149, %c0_150], %403 {strides = array<i32>} : memref<1x32xf32, #tpu.memory_space<vmem>>, vector<1x32xf32>,
    %405 = vector.shape_cast %392 : vector<1x1xi1> to vector<1x1xi1>
    %406 = vector.broadcast %405 : vector<1x1xi1> to vector<1x32xi1>
    %407 = arith.select %406, %386, %332 : vector<1x32xi1>, vector<1x32xf32>
    %c0_151 = arith.constant 0 : index
    %c0_152 = arith.constant 0 : index
    %408 = vector.load %arg12[%c0_151, %c0_152] : memref<1x32xf32, #tpu.memory_space<vmem>>, vector<1x32xf32>
    tpu.vector_store %arg12[%c0_151, %c0_152], %407 {strides = array<i32>} : memref<1x32xf32, #tpu.memory_space<vmem>>, vector<1x32xf32>,
    %cst_153 = arith.constant 0.000000e+00 : f32
    %409 = vector.shape_cast %390 : vector<1x1xi1> to vector<1x1xi1>
    %410 = vector.broadcast %409 : vector<1x1xi1> to vector<1x32xi1>
    %411 = vector.broadcast %cst_153 : f32 to vector<1x32xf32>
    %412 = arith.select %410, %363, %411 : vector<1x32xi1>, vector<1x32xf32>
    %413 = arith.index_cast %c3_i32 : i32 to index
    %c0_154 = arith.constant 0 : index
    %c0_155 = arith.constant 0 : index
    %c0_156 = arith.constant 0 : index
    %414 = vector.load %arg6[%413, %c0_154, %c0_155, %c0_156] : memref<8x1x1x64xf32, #tpu.memory_space<vmem>>, vector<1x1x1x32xf32>
    %415 = vector.shape_cast %414 : vector<1x1x1x32xf32> to vector<1x32xf32>
    %416 = vector.shape_cast %412 : vector<1x32xf32> to vector<1x1x1x32xf32>
    tpu.vector_store %arg6[%413, %c0_154, %c0_155, %c0_156], %416 {strides = array<i32>} : memref<8x1x1x64xf32, #tpu.memory_space<vmem>>, vector<1x1x1x32xf32>,
    %cst_157 = arith.constant 0.000000e+00 : f32
    %417 = vector.shape_cast %392 : vector<1x1xi1> to vector<1x1xi1>
    %418 = vector.broadcast %417 : vector<1x1xi1> to vector<1x32xi1>
    %419 = vector.broadcast %cst_157 : f32 to vector<1x32xf32>
    %420 = arith.select %418, %388, %419 : vector<1x32xi1>, vector<1x32xf32>
    %421 = arith.index_cast %322 : i32 to index
    %c0_158 = arith.constant 0 : index
    %c0_159 = arith.constant 0 : index
    %c32_160 = arith.constant 32 : index
    %422 = vector.load %arg6[%421, %c0_158, %c0_159, %c32_160] : memref<8x1x1x64xf32, #tpu.memory_space<vmem>>, vector<1x1x1x32xf32>
    %423 = vector.shape_cast %422 : vector<1x1x1x32xf32> to vector<1x32xf32>
    %424 = vector.shape_cast %420 : vector<1x32xf32> to vector<1x1x1x32xf32>
    tpu.vector_store %arg6[%421, %c0_158, %c0_159, %c32_160], %424 {strides = array<i32>} : memref<8x1x1x64xf32, #tpu.memory_space<vmem>>, vector<1x1x1x32xf32>,
    %c4_i32 = arith.constant 4 : i32
    %c7_i32_161 = arith.constant 7 : i32
    %425 = arith.subi %c7_i32_161, %c4_i32 : i32
    %426 = arith.index_cast %c4_i32 : i32 to index
    %c0_162 = arith.constant 0 : index
    %c0_163 = arith.constant 0 : index
    %c0_164 = arith.constant 0 : index
    %427 = vector.load %arg1[%426, %c0_162, %c0_163, %c0_164] : memref<8x1x1x256xf32, #tpu.memory_space<vmem>>, vector<1x1x1x256xf32>
    %428 = vector.shape_cast %427 : vector<1x1x1x256xf32> to vector<1x256xf32>
    %429 = arith.addf %428, %10 : vector<1x256xf32>
    %430 = vector.extract_strided_slice %429 {offsets = [0, 0], sizes = [1, 128], strides = [1, 1]} : vector<1x256xf32> to vector<1x128xf32>
    %431 = vector.extract_strided_slice %429 {offsets = [0, 128], sizes = [1, 128], strides = [1, 1]} : vector<1x256xf32> to vector<1x128xf32>
    %c0_165 = arith.constant 0 : index
    %c0_166 = arith.constant 0 : index
    %432 = vector.load %arg9[%c0_165, %c0_166] : memref<1x32xf32, #tpu.memory_space<vmem>>, vector<1x32xf32>
    %c0_167 = arith.constant 0 : index
    %c0_168 = arith.constant 0 : index
    %433 = vector.load %arg10[%c0_167, %c0_168] : memref<1x32xf32, #tpu.memory_space<vmem>>, vector<1x32xf32>
    %c0_169 = arith.constant 0 : index
    %c0_170 = arith.constant 0 : index
    %434 = vector.load %arg11[%c0_169, %c0_170] : memref<1x32xf32, #tpu.memory_space<vmem>>, vector<1x32xf32>
    %c0_171 = arith.constant 0 : index
    %c0_172 = arith.constant 0 : index
    %435 = vector.load %arg12[%c0_171, %c0_172] : memref<1x32xf32, #tpu.memory_space<vmem>>, vector<1x32xf32>
    %436 = arith.truncf %432 : vector<1x32xf32> to vector<1x32xbf16>
    %cst_173 = arith.constant dense<0.000000e+00> : vector<1x128xf32>
    %437 = tpu.matmul %436, %11, %cst_173 {dimension_numbers = #tpu.dot_dimension_numbers<[1], [0], [0], [1], [0, 0, 1, 1], [], []>} : vector<1x32xbf16>, vector<32x128xbf16>, vector<1x128xf32> -> vector<1x128xf32>
    %438 = arith.addf %430, %437 : vector<1x128xf32>
    %439 = arith.truncf %434 : vector<1x32xf32> to vector<1x32xbf16>
    %cst_174 = arith.constant dense<0.000000e+00> : vector<1x128xf32>
    %440 = tpu.matmul %439, %12, %cst_174 {dimension_numbers = #tpu.dot_dimension_numbers<[1], [0], [0], [1], [0, 0, 1, 1], [], []>} : vector<1x32xbf16>, vector<32x128xbf16>, vector<1x128xf32> -> vector<1x128xf32>
    %441 = arith.addf %431, %440 : vector<1x128xf32>
    %442 = vector.extract_strided_slice %438 {offsets = [0, 0], sizes = [1, 32], strides = [1, 1]} : vector<1x128xf32> to vector<1x32xf32>
    %443 = arith.negf %442 : vector<1x32xf32>
    %444 = math.exp %443 : vector<1x32xf32>
    %cst_175 = arith.constant 1.000000e+00 : f32
    %445 = vector.broadcast %cst_175 : f32 to vector<1x32xf32>
    %446 = arith.addf %445, %444 : vector<1x32xf32>
    %447 = arith.divf %445, %446 : vector<1x32xf32>
    %448 = vector.extract_strided_slice %438 {offsets = [0, 32], sizes = [1, 32], strides = [1, 1]} : vector<1x128xf32> to vector<1x32xf32>
    %449 = arith.negf %448 : vector<1x32xf32>
    %450 = math.exp %449 : vector<1x32xf32>
    %cst_176 = arith.constant 1.000000e+00 : f32
    %451 = vector.broadcast %cst_176 : f32 to vector<1x32xf32>
    %452 = arith.addf %451, %450 : vector<1x32xf32>
    %453 = arith.divf %451, %452 : vector<1x32xf32>
    %454 = vector.extract_strided_slice %438 {offsets = [0, 64], sizes = [1, 32], strides = [1, 1]} : vector<1x128xf32> to vector<1x32xf32>
    %455 = math.tanh %454 : vector<1x32xf32>
    %456 = vector.extract_strided_slice %438 {offsets = [0, 96], sizes = [1, 32], strides = [1, 1]} : vector<1x128xf32> to vector<1x32xf32>
    %457 = arith.negf %456 : vector<1x32xf32>
    %458 = math.exp %457 : vector<1x32xf32>
    %cst_177 = arith.constant 1.000000e+00 : f32
    %459 = vector.broadcast %cst_177 : f32 to vector<1x32xf32>
    %460 = arith.addf %459, %458 : vector<1x32xf32>
    %461 = arith.divf %459, %460 : vector<1x32xf32>
    %462 = arith.mulf %453, %433 : vector<1x32xf32>
    %463 = arith.mulf %447, %455 : vector<1x32xf32>
    %464 = arith.addf %462, %463 : vector<1x32xf32>
    %465 = math.tanh %464 : vector<1x32xf32>
    %466 = arith.mulf %461, %465 : vector<1x32xf32>
    %467 = vector.extract_strided_slice %441 {offsets = [0, 0], sizes = [1, 32], strides = [1, 1]} : vector<1x128xf32> to vector<1x32xf32>
    %468 = arith.negf %467 : vector<1x32xf32>
    %469 = math.exp %468 : vector<1x32xf32>
    %cst_178 = arith.constant 1.000000e+00 : f32
    %470 = vector.broadcast %cst_178 : f32 to vector<1x32xf32>
    %471 = arith.addf %470, %469 : vector<1x32xf32>
    %472 = arith.divf %470, %471 : vector<1x32xf32>
    %473 = vector.extract_strided_slice %441 {offsets = [0, 32], sizes = [1, 32], strides = [1, 1]} : vector<1x128xf32> to vector<1x32xf32>
    %474 = arith.negf %473 : vector<1x32xf32>
    %475 = math.exp %474 : vector<1x32xf32>
    %cst_179 = arith.constant 1.000000e+00 : f32
    %476 = vector.broadcast %cst_179 : f32 to vector<1x32xf32>
    %477 = arith.addf %476, %475 : vector<1x32xf32>
    %478 = arith.divf %476, %477 : vector<1x32xf32>
    %479 = vector.extract_strided_slice %441 {offsets = [0, 64], sizes = [1, 32], strides = [1, 1]} : vector<1x128xf32> to vector<1x32xf32>
    %480 = math.tanh %479 : vector<1x32xf32>
    %481 = vector.extract_strided_slice %441 {offsets = [0, 96], sizes = [1, 32], strides = [1, 1]} : vector<1x128xf32> to vector<1x32xf32>
    %482 = arith.negf %481 : vector<1x32xf32>
    %483 = math.exp %482 : vector<1x32xf32>
    %cst_180 = arith.constant 1.000000e+00 : f32
    %484 = vector.broadcast %cst_180 : f32 to vector<1x32xf32>
    %485 = arith.addf %484, %483 : vector<1x32xf32>
    %486 = arith.divf %484, %485 : vector<1x32xf32>
    %487 = arith.mulf %478, %435 : vector<1x32xf32>
    %488 = arith.mulf %472, %480 : vector<1x32xf32>
    %489 = arith.addf %487, %488 : vector<1x32xf32>
    %490 = math.tanh %489 : vector<1x32xf32>
    %491 = arith.mulf %486, %490 : vector<1x32xf32>
    %492 = vector.broadcast %c4_i32 : i32 to vector<1x1xi32>
    %493 = arith.cmpi slt, %492, %9 : vector<1x1xi32>
    %494 = vector.broadcast %425 : i32 to vector<1x1xi32>
    %495 = arith.cmpi slt, %494, %9 : vector<1x1xi32>
    %496 = vector.shape_cast %493 : vector<1x1xi1> to vector<1x1xi1>
    %497 = vector.broadcast %496 : vector<1x1xi1> to vector<1x32xi1>
    %498 = arith.select %497, %466, %432 : vector<1x32xi1>, vector<1x32xf32>
    %c0_181 = arith.constant 0 : index
    %c0_182 = arith.constant 0 : index
    %499 = vector.load %arg9[%c0_181, %c0_182] : memref<1x32xf32, #tpu.memory_space<vmem>>, vector<1x32xf32>
    tpu.vector_store %arg9[%c0_181, %c0_182], %498 {strides = array<i32>} : memref<1x32xf32, #tpu.memory_space<vmem>>, vector<1x32xf32>,
    %500 = vector.shape_cast %493 : vector<1x1xi1> to vector<1x1xi1>
    %501 = vector.broadcast %500 : vector<1x1xi1> to vector<1x32xi1>
    %502 = arith.select %501, %464, %433 : vector<1x32xi1>, vector<1x32xf32>
    %c0_183 = arith.constant 0 : index
    %c0_184 = arith.constant 0 : index
    %503 = vector.load %arg10[%c0_183, %c0_184] : memref<1x32xf32, #tpu.memory_space<vmem>>, vector<1x32xf32>
    tpu.vector_store %arg10[%c0_183, %c0_184], %502 {strides = array<i32>} : memref<1x32xf32, #tpu.memory_space<vmem>>, vector<1x32xf32>,
    %504 = vector.shape_cast %495 : vector<1x1xi1> to vector<1x1xi1>
    %505 = vector.broadcast %504 : vector<1x1xi1> to vector<1x32xi1>
    %506 = arith.select %505, %491, %434 : vector<1x32xi1>, vector<1x32xf32>
    %c0_185 = arith.constant 0 : index
    %c0_186 = arith.constant 0 : index
    %507 = vector.load %arg11[%c0_185, %c0_186] : memref<1x32xf32, #tpu.memory_space<vmem>>, vector<1x32xf32>
    tpu.vector_store %arg11[%c0_185, %c0_186], %506 {strides = array<i32>} : memref<1x32xf32, #tpu.memory_space<vmem>>, vector<1x32xf32>,
    %508 = vector.shape_cast %495 : vector<1x1xi1> to vector<1x1xi1>
    %509 = vector.broadcast %508 : vector<1x1xi1> to vector<1x32xi1>
    %510 = arith.select %509, %489, %435 : vector<1x32xi1>, vector<1x32xf32>
    %c0_187 = arith.constant 0 : index
    %c0_188 = arith.constant 0 : index
    %511 = vector.load %arg12[%c0_187, %c0_188] : memref<1x32xf32, #tpu.memory_space<vmem>>, vector<1x32xf32>
    tpu.vector_store %arg12[%c0_187, %c0_188], %510 {strides = array<i32>} : memref<1x32xf32, #tpu.memory_space<vmem>>, vector<1x32xf32>,
    %cst_189 = arith.constant 0.000000e+00 : f32
    %512 = vector.shape_cast %493 : vector<1x1xi1> to vector<1x1xi1>
    %513 = vector.broadcast %512 : vector<1x1xi1> to vector<1x32xi1>
    %514 = vector.broadcast %cst_189 : f32 to vector<1x32xf32>
    %515 = arith.select %513, %466, %514 : vector<1x32xi1>, vector<1x32xf32>
    %516 = arith.index_cast %c4_i32 : i32 to index
    %c0_190 = arith.constant 0 : index
    %c0_191 = arith.constant 0 : index
    %c0_192 = arith.constant 0 : index
    %517 = vector.load %arg6[%516, %c0_190, %c0_191, %c0_192] : memref<8x1x1x64xf32, #tpu.memory_space<vmem>>, vector<1x1x1x32xf32>
    %518 = vector.shape_cast %517 : vector<1x1x1x32xf32> to vector<1x32xf32>
    %519 = vector.shape_cast %515 : vector<1x32xf32> to vector<1x1x1x32xf32>
    tpu.vector_store %arg6[%516, %c0_190, %c0_191, %c0_192], %519 {strides = array<i32>} : memref<8x1x1x64xf32, #tpu.memory_space<vmem>>, vector<1x1x1x32xf32>,
    %cst_193 = arith.constant 0.000000e+00 : f32
    %520 = vector.shape_cast %495 : vector<1x1xi1> to vector<1x1xi1>
    %521 = vector.broadcast %520 : vector<1x1xi1> to vector<1x32xi1>
    %522 = vector.broadcast %cst_193 : f32 to vector<1x32xf32>
    %523 = arith.select %521, %491, %522 : vector<1x32xi1>, vector<1x32xf32>
    %524 = arith.index_cast %425 : i32 to index
    %c0_194 = arith.constant 0 : index
    %c0_195 = arith.constant 0 : index
    %c32_196 = arith.constant 32 : index
    %525 = vector.load %arg6[%524, %c0_194, %c0_195, %c32_196] : memref<8x1x1x64xf32, #tpu.memory_space<vmem>>, vector<1x1x1x32xf32>
    %526 = vector.shape_cast %525 : vector<1x1x1x32xf32> to vector<1x32xf32>
    %527 = vector.shape_cast %523 : vector<1x32xf32> to vector<1x1x1x32xf32>
    tpu.vector_store %arg6[%524, %c0_194, %c0_195, %c32_196], %527 {strides = array<i32>} : memref<8x1x1x64xf32, #tpu.memory_space<vmem>>, vector<1x1x1x32xf32>,
    %c5_i32 = arith.constant 5 : i32
    %c7_i32_197 = arith.constant 7 : i32
    %528 = arith.subi %c7_i32_197, %c5_i32 : i32
    %529 = arith.index_cast %c5_i32 : i32 to index
    %c0_198 = arith.constant 0 : index
    %c0_199 = arith.constant 0 : index
    %c0_200 = arith.constant 0 : index
    %530 = vector.load %arg1[%529, %c0_198, %c0_199, %c0_200] : memref<8x1x1x256xf32, #tpu.memory_space<vmem>>, vector<1x1x1x256xf32>
    %531 = vector.shape_cast %530 : vector<1x1x1x256xf32> to vector<1x256xf32>
    %532 = arith.addf %531, %10 : vector<1x256xf32>
    %533 = vector.extract_strided_slice %532 {offsets = [0, 0], sizes = [1, 128], strides = [1, 1]} : vector<1x256xf32> to vector<1x128xf32>
    %534 = vector.extract_strided_slice %532 {offsets = [0, 128], sizes = [1, 128], strides = [1, 1]} : vector<1x256xf32> to vector<1x128xf32>
    %c0_201 = arith.constant 0 : index
    %c0_202 = arith.constant 0 : index
    %535 = vector.load %arg9[%c0_201, %c0_202] : memref<1x32xf32, #tpu.memory_space<vmem>>, vector<1x32xf32>
    %c0_203 = arith.constant 0 : index
    %c0_204 = arith.constant 0 : index
    %536 = vector.load %arg10[%c0_203, %c0_204] : memref<1x32xf32, #tpu.memory_space<vmem>>, vector<1x32xf32>
    %c0_205 = arith.constant 0 : index
    %c0_206 = arith.constant 0 : index
    %537 = vector.load %arg11[%c0_205, %c0_206] : memref<1x32xf32, #tpu.memory_space<vmem>>, vector<1x32xf32>
    %c0_207 = arith.constant 0 : index
    %c0_208 = arith.constant 0 : index
    %538 = vector.load %arg12[%c0_207, %c0_208] : memref<1x32xf32, #tpu.memory_space<vmem>>, vector<1x32xf32>
    %539 = arith.truncf %535 : vector<1x32xf32> to vector<1x32xbf16>
    %cst_209 = arith.constant dense<0.000000e+00> : vector<1x128xf32>
    %540 = tpu.matmul %539, %11, %cst_209 {dimension_numbers = #tpu.dot_dimension_numbers<[1], [0], [0], [1], [0, 0, 1, 1], [], []>} : vector<1x32xbf16>, vector<32x128xbf16>, vector<1x128xf32> -> vector<1x128xf32>
    %541 = arith.addf %533, %540 : vector<1x128xf32>
    %542 = arith.truncf %537 : vector<1x32xf32> to vector<1x32xbf16>
    %cst_210 = arith.constant dense<0.000000e+00> : vector<1x128xf32>
    %543 = tpu.matmul %542, %12, %cst_210 {dimension_numbers = #tpu.dot_dimension_numbers<[1], [0], [0], [1], [0, 0, 1, 1], [], []>} : vector<1x32xbf16>, vector<32x128xbf16>, vector<1x128xf32> -> vector<1x128xf32>
    %544 = arith.addf %534, %543 : vector<1x128xf32>
    %545 = vector.extract_strided_slice %541 {offsets = [0, 0], sizes = [1, 32], strides = [1, 1]} : vector<1x128xf32> to vector<1x32xf32>
    %546 = arith.negf %545 : vector<1x32xf32>
    %547 = math.exp %546 : vector<1x32xf32>
    %cst_211 = arith.constant 1.000000e+00 : f32
    %548 = vector.broadcast %cst_211 : f32 to vector<1x32xf32>
    %549 = arith.addf %548, %547 : vector<1x32xf32>
    %550 = arith.divf %548, %549 : vector<1x32xf32>
    %551 = vector.extract_strided_slice %541 {offsets = [0, 32], sizes = [1, 32], strides = [1, 1]} : vector<1x128xf32> to vector<1x32xf32>
    %552 = arith.negf %551 : vector<1x32xf32>
    %553 = math.exp %552 : vector<1x32xf32>
    %cst_212 = arith.constant 1.000000e+00 : f32
    %554 = vector.broadcast %cst_212 : f32 to vector<1x32xf32>
    %555 = arith.addf %554, %553 : vector<1x32xf32>
    %556 = arith.divf %554, %555 : vector<1x32xf32>
    %557 = vector.extract_strided_slice %541 {offsets = [0, 64], sizes = [1, 32], strides = [1, 1]} : vector<1x128xf32> to vector<1x32xf32>
    %558 = math.tanh %557 : vector<1x32xf32>
    %559 = vector.extract_strided_slice %541 {offsets = [0, 96], sizes = [1, 32], strides = [1, 1]} : vector<1x128xf32> to vector<1x32xf32>
    %560 = arith.negf %559 : vector<1x32xf32>
    %561 = math.exp %560 : vector<1x32xf32>
    %cst_213 = arith.constant 1.000000e+00 : f32
    %562 = vector.broadcast %cst_213 : f32 to vector<1x32xf32>
    %563 = arith.addf %562, %561 : vector<1x32xf32>
    %564 = arith.divf %562, %563 : vector<1x32xf32>
    %565 = arith.mulf %556, %536 : vector<1x32xf32>
    %566 = arith.mulf %550, %558 : vector<1x32xf32>
    %567 = arith.addf %565, %566 : vector<1x32xf32>
    %568 = math.tanh %567 : vector<1x32xf32>
    %569 = arith.mulf %564, %568 : vector<1x32xf32>
    %570 = vector.extract_strided_slice %544 {offsets = [0, 0], sizes = [1, 32], strides = [1, 1]} : vector<1x128xf32> to vector<1x32xf32>
    %571 = arith.negf %570 : vector<1x32xf32>
    %572 = math.exp %571 : vector<1x32xf32>
    %cst_214 = arith.constant 1.000000e+00 : f32
    %573 = vector.broadcast %cst_214 : f32 to vector<1x32xf32>
    %574 = arith.addf %573, %572 : vector<1x32xf32>
    %575 = arith.divf %573, %574 : vector<1x32xf32>
    %576 = vector.extract_strided_slice %544 {offsets = [0, 32], sizes = [1, 32], strides = [1, 1]} : vector<1x128xf32> to vector<1x32xf32>
    %577 = arith.negf %576 : vector<1x32xf32>
    %578 = math.exp %577 : vector<1x32xf32>
    %cst_215 = arith.constant 1.000000e+00 : f32
    %579 = vector.broadcast %cst_215 : f32 to vector<1x32xf32>
    %580 = arith.addf %579, %578 : vector<1x32xf32>
    %581 = arith.divf %579, %580 : vector<1x32xf32>
    %582 = vector.extract_strided_slice %544 {offsets = [0, 64], sizes = [1, 32], strides = [1, 1]} : vector<1x128xf32> to vector<1x32xf32>
    %583 = math.tanh %582 : vector<1x32xf32>
    %584 = vector.extract_strided_slice %544 {offsets = [0, 96], sizes = [1, 32], strides = [1, 1]} : vector<1x128xf32> to vector<1x32xf32>
    %585 = arith.negf %584 : vector<1x32xf32>
    %586 = math.exp %585 : vector<1x32xf32>
    %cst_216 = arith.constant 1.000000e+00 : f32
    %587 = vector.broadcast %cst_216 : f32 to vector<1x32xf32>
    %588 = arith.addf %587, %586 : vector<1x32xf32>
    %589 = arith.divf %587, %588 : vector<1x32xf32>
    %590 = arith.mulf %581, %538 : vector<1x32xf32>
    %591 = arith.mulf %575, %583 : vector<1x32xf32>
    %592 = arith.addf %590, %591 : vector<1x32xf32>
    %593 = math.tanh %592 : vector<1x32xf32>
    %594 = arith.mulf %589, %593 : vector<1x32xf32>
    %595 = vector.broadcast %c5_i32 : i32 to vector<1x1xi32>
    %596 = arith.cmpi slt, %595, %9 : vector<1x1xi32>
    %597 = vector.broadcast %528 : i32 to vector<1x1xi32>
    %598 = arith.cmpi slt, %597, %9 : vector<1x1xi32>
    %599 = vector.shape_cast %596 : vector<1x1xi1> to vector<1x1xi1>
    %600 = vector.broadcast %599 : vector<1x1xi1> to vector<1x32xi1>
    %601 = arith.select %600, %569, %535 : vector<1x32xi1>, vector<1x32xf32>
    %c0_217 = arith.constant 0 : index
    %c0_218 = arith.constant 0 : index
    %602 = vector.load %arg9[%c0_217, %c0_218] : memref<1x32xf32, #tpu.memory_space<vmem>>, vector<1x32xf32>
    tpu.vector_store %arg9[%c0_217, %c0_218], %601 {strides = array<i32>} : memref<1x32xf32, #tpu.memory_space<vmem>>, vector<1x32xf32>,
    %603 = vector.shape_cast %596 : vector<1x1xi1> to vector<1x1xi1>
    %604 = vector.broadcast %603 : vector<1x1xi1> to vector<1x32xi1>
    %605 = arith.select %604, %567, %536 : vector<1x32xi1>, vector<1x32xf32>
    %c0_219 = arith.constant 0 : index
    %c0_220 = arith.constant 0 : index
    %606 = vector.load %arg10[%c0_219, %c0_220] : memref<1x32xf32, #tpu.memory_space<vmem>>, vector<1x32xf32>
    tpu.vector_store %arg10[%c0_219, %c0_220], %605 {strides = array<i32>} : memref<1x32xf32, #tpu.memory_space<vmem>>, vector<1x32xf32>,
    %607 = vector.shape_cast %598 : vector<1x1xi1> to vector<1x1xi1>
    %608 = vector.broadcast %607 : vector<1x1xi1> to vector<1x32xi1>
    %609 = arith.select %608, %594, %537 : vector<1x32xi1>, vector<1x32xf32>
    %c0_221 = arith.constant 0 : index
    %c0_222 = arith.constant 0 : index
    %610 = vector.load %arg11[%c0_221, %c0_222] : memref<1x32xf32, #tpu.memory_space<vmem>>, vector<1x32xf32>
    tpu.vector_store %arg11[%c0_221, %c0_222], %609 {strides = array<i32>} : memref<1x32xf32, #tpu.memory_space<vmem>>, vector<1x32xf32>,
    %611 = vector.shape_cast %598 : vector<1x1xi1> to vector<1x1xi1>
    %612 = vector.broadcast %611 : vector<1x1xi1> to vector<1x32xi1>
    %613 = arith.select %612, %592, %538 : vector<1x32xi1>, vector<1x32xf32>
    %c0_223 = arith.constant 0 : index
    %c0_224 = arith.constant 0 : index
    %614 = vector.load %arg12[%c0_223, %c0_224] : memref<1x32xf32, #tpu.memory_space<vmem>>, vector<1x32xf32>
    tpu.vector_store %arg12[%c0_223, %c0_224], %613 {strides = array<i32>} : memref<1x32xf32, #tpu.memory_space<vmem>>, vector<1x32xf32>,
    %cst_225 = arith.constant 0.000000e+00 : f32
    %615 = vector.shape_cast %596 : vector<1x1xi1> to vector<1x1xi1>
    %616 = vector.broadcast %615 : vector<1x1xi1> to vector<1x32xi1>
    %617 = vector.broadcast %cst_225 : f32 to vector<1x32xf32>
    %618 = arith.select %616, %569, %617 : vector<1x32xi1>, vector<1x32xf32>
    %619 = arith.index_cast %c5_i32 : i32 to index
    %c0_226 = arith.constant 0 : index
    %c0_227 = arith.constant 0 : index
    %c0_228 = arith.constant 0 : index
    %620 = vector.load %arg6[%619, %c0_226, %c0_227, %c0_228] : memref<8x1x1x64xf32, #tpu.memory_space<vmem>>, vector<1x1x1x32xf32>
    %621 = vector.shape_cast %620 : vector<1x1x1x32xf32> to vector<1x32xf32>
    %622 = vector.shape_cast %618 : vector<1x32xf32> to vector<1x1x1x32xf32>
    tpu.vector_store %arg6[%619, %c0_226, %c0_227, %c0_228], %622 {strides = array<i32>} : memref<8x1x1x64xf32, #tpu.memory_space<vmem>>, vector<1x1x1x32xf32>,
    %cst_229 = arith.constant 0.000000e+00 : f32
    %623 = vector.shape_cast %598 : vector<1x1xi1> to vector<1x1xi1>
    %624 = vector.broadcast %623 : vector<1x1xi1> to vector<1x32xi1>
    %625 = vector.broadcast %cst_229 : f32 to vector<1x32xf32>
    %626 = arith.select %624, %594, %625 : vector<1x32xi1>, vector<1x32xf32>
    %627 = arith.index_cast %528 : i32 to index
    %c0_230 = arith.constant 0 : index
    %c0_231 = arith.constant 0 : index
    %c32_232 = arith.constant 32 : index
    %628 = vector.load %arg6[%627, %c0_230, %c0_231, %c32_232] : memref<8x1x1x64xf32, #tpu.memory_space<vmem>>, vector<1x1x1x32xf32>
    %629 = vector.shape_cast %628 : vector<1x1x1x32xf32> to vector<1x32xf32>
    %630 = vector.shape_cast %626 : vector<1x32xf32> to vector<1x1x1x32xf32>
    tpu.vector_store %arg6[%627, %c0_230, %c0_231, %c32_232], %630 {strides = array<i32>} : memref<8x1x1x64xf32, #tpu.memory_space<vmem>>, vector<1x1x1x32xf32>,
    %c6_i32 = arith.constant 6 : i32
    %c7_i32_233 = arith.constant 7 : i32
    %631 = arith.subi %c7_i32_233, %c6_i32 : i32
    %632 = arith.index_cast %c6_i32 : i32 to index
    %c0_234 = arith.constant 0 : index
    %c0_235 = arith.constant 0 : index
    %c0_236 = arith.constant 0 : index
    %633 = vector.load %arg1[%632, %c0_234, %c0_235, %c0_236] : memref<8x1x1x256xf32, #tpu.memory_space<vmem>>, vector<1x1x1x256xf32>
    %634 = vector.shape_cast %633 : vector<1x1x1x256xf32> to vector<1x256xf32>
    %635 = arith.addf %634, %10 : vector<1x256xf32>
    %636 = vector.extract_strided_slice %635 {offsets = [0, 0], sizes = [1, 128], strides = [1, 1]} : vector<1x256xf32> to vector<1x128xf32>
    %637 = vector.extract_strided_slice %635 {offsets = [0, 128], sizes = [1, 128], strides = [1, 1]} : vector<1x256xf32> to vector<1x128xf32>
    %c0_237 = arith.constant 0 : index
    %c0_238 = arith.constant 0 : index
    %638 = vector.load %arg9[%c0_237, %c0_238] : memref<1x32xf32, #tpu.memory_space<vmem>>, vector<1x32xf32>
    %c0_239 = arith.constant 0 : index
    %c0_240 = arith.constant 0 : index
    %639 = vector.load %arg10[%c0_239, %c0_240] : memref<1x32xf32, #tpu.memory_space<vmem>>, vector<1x32xf32>
    %c0_241 = arith.constant 0 : index
    %c0_242 = arith.constant 0 : index
    %640 = vector.load %arg11[%c0_241, %c0_242] : memref<1x32xf32, #tpu.memory_space<vmem>>, vector<1x32xf32>
    %c0_243 = arith.constant 0 : index
    %c0_244 = arith.constant 0 : index
    %641 = vector.load %arg12[%c0_243, %c0_244] : memref<1x32xf32, #tpu.memory_space<vmem>>, vector<1x32xf32>
    %642 = arith.truncf %638 : vector<1x32xf32> to vector<1x32xbf16>
    %cst_245 = arith.constant dense<0.000000e+00> : vector<1x128xf32>
    %643 = tpu.matmul %642, %11, %cst_245 {dimension_numbers = #tpu.dot_dimension_numbers<[1], [0], [0], [1], [0, 0, 1, 1], [], []>} : vector<1x32xbf16>, vector<32x128xbf16>, vector<1x128xf32> -> vector<1x128xf32>
    %644 = arith.addf %636, %643 : vector<1x128xf32>
    %645 = arith.truncf %640 : vector<1x32xf32> to vector<1x32xbf16>
    %cst_246 = arith.constant dense<0.000000e+00> : vector<1x128xf32>
    %646 = tpu.matmul %645, %12, %cst_246 {dimension_numbers = #tpu.dot_dimension_numbers<[1], [0], [0], [1], [0, 0, 1, 1], [], []>} : vector<1x32xbf16>, vector<32x128xbf16>, vector<1x128xf32> -> vector<1x128xf32>
    %647 = arith.addf %637, %646 : vector<1x128xf32>
    %648 = vector.extract_strided_slice %644 {offsets = [0, 0], sizes = [1, 32], strides = [1, 1]} : vector<1x128xf32> to vector<1x32xf32>
    %649 = arith.negf %648 : vector<1x32xf32>
    %650 = math.exp %649 : vector<1x32xf32>
    %cst_247 = arith.constant 1.000000e+00 : f32
    %651 = vector.broadcast %cst_247 : f32 to vector<1x32xf32>
    %652 = arith.addf %651, %650 : vector<1x32xf32>
    %653 = arith.divf %651, %652 : vector<1x32xf32>
    %654 = vector.extract_strided_slice %644 {offsets = [0, 32], sizes = [1, 32], strides = [1, 1]} : vector<1x128xf32> to vector<1x32xf32>
    %655 = arith.negf %654 : vector<1x32xf32>
    %656 = math.exp %655 : vector<1x32xf32>
    %cst_248 = arith.constant 1.000000e+00 : f32
    %657 = vector.broadcast %cst_248 : f32 to vector<1x32xf32>
    %658 = arith.addf %657, %656 : vector<1x32xf32>
    %659 = arith.divf %657, %658 : vector<1x32xf32>
    %660 = vector.extract_strided_slice %644 {offsets = [0, 64], sizes = [1, 32], strides = [1, 1]} : vector<1x128xf32> to vector<1x32xf32>
    %661 = math.tanh %660 : vector<1x32xf32>
    %662 = vector.extract_strided_slice %644 {offsets = [0, 96], sizes = [1, 32], strides = [1, 1]} : vector<1x128xf32> to vector<1x32xf32>
    %663 = arith.negf %662 : vector<1x32xf32>
    %664 = math.exp %663 : vector<1x32xf32>
    %cst_249 = arith.constant 1.000000e+00 : f32
    %665 = vector.broadcast %cst_249 : f32 to vector<1x32xf32>
    %666 = arith.addf %665, %664 : vector<1x32xf32>
    %667 = arith.divf %665, %666 : vector<1x32xf32>
    %668 = arith.mulf %659, %639 : vector<1x32xf32>
    %669 = arith.mulf %653, %661 : vector<1x32xf32>
    %670 = arith.addf %668, %669 : vector<1x32xf32>
    %671 = math.tanh %670 : vector<1x32xf32>
    %672 = arith.mulf %667, %671 : vector<1x32xf32>
    %673 = vector.extract_strided_slice %647 {offsets = [0, 0], sizes = [1, 32], strides = [1, 1]} : vector<1x128xf32> to vector<1x32xf32>
    %674 = arith.negf %673 : vector<1x32xf32>
    %675 = math.exp %674 : vector<1x32xf32>
    %cst_250 = arith.constant 1.000000e+00 : f32
    %676 = vector.broadcast %cst_250 : f32 to vector<1x32xf32>
    %677 = arith.addf %676, %675 : vector<1x32xf32>
    %678 = arith.divf %676, %677 : vector<1x32xf32>
    %679 = vector.extract_strided_slice %647 {offsets = [0, 32], sizes = [1, 32], strides = [1, 1]} : vector<1x128xf32> to vector<1x32xf32>
    %680 = arith.negf %679 : vector<1x32xf32>
    %681 = math.exp %680 : vector<1x32xf32>
    %cst_251 = arith.constant 1.000000e+00 : f32
    %682 = vector.broadcast %cst_251 : f32 to vector<1x32xf32>
    %683 = arith.addf %682, %681 : vector<1x32xf32>
    %684 = arith.divf %682, %683 : vector<1x32xf32>
    %685 = vector.extract_strided_slice %647 {offsets = [0, 64], sizes = [1, 32], strides = [1, 1]} : vector<1x128xf32> to vector<1x32xf32>
    %686 = math.tanh %685 : vector<1x32xf32>
    %687 = vector.extract_strided_slice %647 {offsets = [0, 96], sizes = [1, 32], strides = [1, 1]} : vector<1x128xf32> to vector<1x32xf32>
    %688 = arith.negf %687 : vector<1x32xf32>
    %689 = math.exp %688 : vector<1x32xf32>
    %cst_252 = arith.constant 1.000000e+00 : f32
    %690 = vector.broadcast %cst_252 : f32 to vector<1x32xf32>
    %691 = arith.addf %690, %689 : vector<1x32xf32>
    %692 = arith.divf %690, %691 : vector<1x32xf32>
    %693 = arith.mulf %684, %641 : vector<1x32xf32>
    %694 = arith.mulf %678, %686 : vector<1x32xf32>
    %695 = arith.addf %693, %694 : vector<1x32xf32>
    %696 = math.tanh %695 : vector<1x32xf32>
    %697 = arith.mulf %692, %696 : vector<1x32xf32>
    %698 = vector.broadcast %c6_i32 : i32 to vector<1x1xi32>
    %699 = arith.cmpi slt, %698, %9 : vector<1x1xi32>
    %700 = vector.broadcast %631 : i32 to vector<1x1xi32>
    %701 = arith.cmpi slt, %700, %9 : vector<1x1xi32>
    %702 = vector.shape_cast %699 : vector<1x1xi1> to vector<1x1xi1>
    %703 = vector.broadcast %702 : vector<1x1xi1> to vector<1x32xi1>
    %704 = arith.select %703, %672, %638 : vector<1x32xi1>, vector<1x32xf32>
    %c0_253 = arith.constant 0 : index
    %c0_254 = arith.constant 0 : index
    %705 = vector.load %arg9[%c0_253, %c0_254] : memref<1x32xf32, #tpu.memory_space<vmem>>, vector<1x32xf32>
    tpu.vector_store %arg9[%c0_253, %c0_254], %704 {strides = array<i32>} : memref<1x32xf32, #tpu.memory_space<vmem>>, vector<1x32xf32>,
    %706 = vector.shape_cast %699 : vector<1x1xi1> to vector<1x1xi1>
    %707 = vector.broadcast %706 : vector<1x1xi1> to vector<1x32xi1>
    %708 = arith.select %707, %670, %639 : vector<1x32xi1>, vector<1x32xf32>
    %c0_255 = arith.constant 0 : index
    %c0_256 = arith.constant 0 : index
    %709 = vector.load %arg10[%c0_255, %c0_256] : memref<1x32xf32, #tpu.memory_space<vmem>>, vector<1x32xf32>
    tpu.vector_store %arg10[%c0_255, %c0_256], %708 {strides = array<i32>} : memref<1x32xf32, #tpu.memory_space<vmem>>, vector<1x32xf32>,
    %710 = vector.shape_cast %701 : vector<1x1xi1> to vector<1x1xi1>
    %711 = vector.broadcast %710 : vector<1x1xi1> to vector<1x32xi1>
    %712 = arith.select %711, %697, %640 : vector<1x32xi1>, vector<1x32xf32>
    %c0_257 = arith.constant 0 : index
    %c0_258 = arith.constant 0 : index
    %713 = vector.load %arg11[%c0_257, %c0_258] : memref<1x32xf32, #tpu.memory_space<vmem>>, vector<1x32xf32>
    tpu.vector_store %arg11[%c0_257, %c0_258], %712 {strides = array<i32>} : memref<1x32xf32, #tpu.memory_space<vmem>>, vector<1x32xf32>,
    %714 = vector.shape_cast %701 : vector<1x1xi1> to vector<1x1xi1>
    %715 = vector.broadcast %714 : vector<1x1xi1> to vector<1x32xi1>
    %716 = arith.select %715, %695, %641 : vector<1x32xi1>, vector<1x32xf32>
    %c0_259 = arith.constant 0 : index
    %c0_260 = arith.constant 0 : index
    %717 = vector.load %arg12[%c0_259, %c0_260] : memref<1x32xf32, #tpu.memory_space<vmem>>, vector<1x32xf32>
    tpu.vector_store %arg12[%c0_259, %c0_260], %716 {strides = array<i32>} : memref<1x32xf32, #tpu.memory_space<vmem>>, vector<1x32xf32>,
    %cst_261 = arith.constant 0.000000e+00 : f32
    %718 = vector.shape_cast %699 : vector<1x1xi1> to vector<1x1xi1>
    %719 = vector.broadcast %718 : vector<1x1xi1> to vector<1x32xi1>
    %720 = vector.broadcast %cst_261 : f32 to vector<1x32xf32>
    %721 = arith.select %719, %672, %720 : vector<1x32xi1>, vector<1x32xf32>
    %722 = arith.index_cast %c6_i32 : i32 to index
    %c0_262 = arith.constant 0 : index
    %c0_263 = arith.constant 0 : index
    %c0_264 = arith.constant 0 : index
    %723 = vector.load %arg6[%722, %c0_262, %c0_263, %c0_264] : memref<8x1x1x64xf32, #tpu.memory_space<vmem>>, vector<1x1x1x32xf32>
    %724 = vector.shape_cast %723 : vector<1x1x1x32xf32> to vector<1x32xf32>
    %725 = vector.shape_cast %721 : vector<1x32xf32> to vector<1x1x1x32xf32>
    tpu.vector_store %arg6[%722, %c0_262, %c0_263, %c0_264], %725 {strides = array<i32>} : memref<8x1x1x64xf32, #tpu.memory_space<vmem>>, vector<1x1x1x32xf32>,
    %cst_265 = arith.constant 0.000000e+00 : f32
    %726 = vector.shape_cast %701 : vector<1x1xi1> to vector<1x1xi1>
    %727 = vector.broadcast %726 : vector<1x1xi1> to vector<1x32xi1>
    %728 = vector.broadcast %cst_265 : f32 to vector<1x32xf32>
    %729 = arith.select %727, %697, %728 : vector<1x32xi1>, vector<1x32xf32>
    %730 = arith.index_cast %631 : i32 to index
    %c0_266 = arith.constant 0 : index
    %c0_267 = arith.constant 0 : index
    %c32_268 = arith.constant 32 : index
    %731 = vector.load %arg6[%730, %c0_266, %c0_267, %c32_268] : memref<8x1x1x64xf32, #tpu.memory_space<vmem>>, vector<1x1x1x32xf32>
    %732 = vector.shape_cast %731 : vector<1x1x1x32xf32> to vector<1x32xf32>
    %733 = vector.shape_cast %729 : vector<1x32xf32> to vector<1x1x1x32xf32>
    tpu.vector_store %arg6[%730, %c0_266, %c0_267, %c32_268], %733 {strides = array<i32>} : memref<8x1x1x64xf32, #tpu.memory_space<vmem>>, vector<1x1x1x32xf32>,
    %c7_i32_269 = arith.constant 7 : i32
    %c7_i32_270 = arith.constant 7 : i32
    %734 = arith.subi %c7_i32_270, %c7_i32_269 : i32
    %735 = arith.index_cast %c7_i32_269 : i32 to index
    %c0_271 = arith.constant 0 : index
    %c0_272 = arith.constant 0 : index
    %c0_273 = arith.constant 0 : index
    %736 = vector.load %arg1[%735, %c0_271, %c0_272, %c0_273] : memref<8x1x1x256xf32, #tpu.memory_space<vmem>>, vector<1x1x1x256xf32>
    %737 = vector.shape_cast %736 : vector<1x1x1x256xf32> to vector<1x256xf32>
    %738 = arith.addf %737, %10 : vector<1x256xf32>
    %739 = vector.extract_strided_slice %738 {offsets = [0, 0], sizes = [1, 128], strides = [1, 1]} : vector<1x256xf32> to vector<1x128xf32>
    %740 = vector.extract_strided_slice %738 {offsets = [0, 128], sizes = [1, 128], strides = [1, 1]} : vector<1x256xf32> to vector<1x128xf32>
    %c0_274 = arith.constant 0 : index
    %c0_275 = arith.constant 0 : index
    %741 = vector.load %arg9[%c0_274, %c0_275] : memref<1x32xf32, #tpu.memory_space<vmem>>, vector<1x32xf32>
    %c0_276 = arith.constant 0 : index
    %c0_277 = arith.constant 0 : index
    %742 = vector.load %arg10[%c0_276, %c0_277] : memref<1x32xf32, #tpu.memory_space<vmem>>, vector<1x32xf32>
    %c0_278 = arith.constant 0 : index
    %c0_279 = arith.constant 0 : index
    %743 = vector.load %arg11[%c0_278, %c0_279] : memref<1x32xf32, #tpu.memory_space<vmem>>, vector<1x32xf32>
    %c0_280 = arith.constant 0 : index
    %c0_281 = arith.constant 0 : index
    %744 = vector.load %arg12[%c0_280, %c0_281] : memref<1x32xf32, #tpu.memory_space<vmem>>, vector<1x32xf32>
    %745 = arith.truncf %741 : vector<1x32xf32> to vector<1x32xbf16>
    %cst_282 = arith.constant dense<0.000000e+00> : vector<1x128xf32>
    %746 = tpu.matmul %745, %11, %cst_282 {dimension_numbers = #tpu.dot_dimension_numbers<[1], [0], [0], [1], [0, 0, 1, 1], [], []>} : vector<1x32xbf16>, vector<32x128xbf16>, vector<1x128xf32> -> vector<1x128xf32>
    %747 = arith.addf %739, %746 : vector<1x128xf32>
    %748 = arith.truncf %743 : vector<1x32xf32> to vector<1x32xbf16>
    %cst_283 = arith.constant dense<0.000000e+00> : vector<1x128xf32>
    %749 = tpu.matmul %748, %12, %cst_283 {dimension_numbers = #tpu.dot_dimension_numbers<[1], [0], [0], [1], [0, 0, 1, 1], [], []>} : vector<1x32xbf16>, vector<32x128xbf16>, vector<1x128xf32> -> vector<1x128xf32>
    %750 = arith.addf %740, %749 : vector<1x128xf32>
    %751 = vector.extract_strided_slice %747 {offsets = [0, 0], sizes = [1, 32], strides = [1, 1]} : vector<1x128xf32> to vector<1x32xf32>
    %752 = arith.negf %751 : vector<1x32xf32>
    %753 = math.exp %752 : vector<1x32xf32>
    %cst_284 = arith.constant 1.000000e+00 : f32
    %754 = vector.broadcast %cst_284 : f32 to vector<1x32xf32>
    %755 = arith.addf %754, %753 : vector<1x32xf32>
    %756 = arith.divf %754, %755 : vector<1x32xf32>
    %757 = vector.extract_strided_slice %747 {offsets = [0, 32], sizes = [1, 32], strides = [1, 1]} : vector<1x128xf32> to vector<1x32xf32>
    %758 = arith.negf %757 : vector<1x32xf32>
    %759 = math.exp %758 : vector<1x32xf32>
    %cst_285 = arith.constant 1.000000e+00 : f32
    %760 = vector.broadcast %cst_285 : f32 to vector<1x32xf32>
    %761 = arith.addf %760, %759 : vector<1x32xf32>
    %762 = arith.divf %760, %761 : vector<1x32xf32>
    %763 = vector.extract_strided_slice %747 {offsets = [0, 64], sizes = [1, 32], strides = [1, 1]} : vector<1x128xf32> to vector<1x32xf32>
    %764 = math.tanh %763 : vector<1x32xf32>
    %765 = vector.extract_strided_slice %747 {offsets = [0, 96], sizes = [1, 32], strides = [1, 1]} : vector<1x128xf32> to vector<1x32xf32>
    %766 = arith.negf %765 : vector<1x32xf32>
    %767 = math.exp %766 : vector<1x32xf32>
    %cst_286 = arith.constant 1.000000e+00 : f32
    %768 = vector.broadcast %cst_286 : f32 to vector<1x32xf32>
    %769 = arith.addf %768, %767 : vector<1x32xf32>
    %770 = arith.divf %768, %769 : vector<1x32xf32>
    %771 = arith.mulf %762, %742 : vector<1x32xf32>
    %772 = arith.mulf %756, %764 : vector<1x32xf32>
    %773 = arith.addf %771, %772 : vector<1x32xf32>
    %774 = math.tanh %773 : vector<1x32xf32>
    %775 = arith.mulf %770, %774 : vector<1x32xf32>
    %776 = vector.extract_strided_slice %750 {offsets = [0, 0], sizes = [1, 32], strides = [1, 1]} : vector<1x128xf32> to vector<1x32xf32>
    %777 = arith.negf %776 : vector<1x32xf32>
    %778 = math.exp %777 : vector<1x32xf32>
    %cst_287 = arith.constant 1.000000e+00 : f32
    %779 = vector.broadcast %cst_287 : f32 to vector<1x32xf32>
    %780 = arith.addf %779, %778 : vector<1x32xf32>
    %781 = arith.divf %779, %780 : vector<1x32xf32>
    %782 = vector.extract_strided_slice %750 {offsets = [0, 32], sizes = [1, 32], strides = [1, 1]} : vector<1x128xf32> to vector<1x32xf32>
    %783 = arith.negf %782 : vector<1x32xf32>
    %784 = math.exp %783 : vector<1x32xf32>
    %cst_288 = arith.constant 1.000000e+00 : f32
    %785 = vector.broadcast %cst_288 : f32 to vector<1x32xf32>
    %786 = arith.addf %785, %784 : vector<1x32xf32>
    %787 = arith.divf %785, %786 : vector<1x32xf32>
    %788 = vector.extract_strided_slice %750 {offsets = [0, 64], sizes = [1, 32], strides = [1, 1]} : vector<1x128xf32> to vector<1x32xf32>
    %789 = math.tanh %788 : vector<1x32xf32>
    %790 = vector.extract_strided_slice %750 {offsets = [0, 96], sizes = [1, 32], strides = [1, 1]} : vector<1x128xf32> to vector<1x32xf32>
    %791 = arith.negf %790 : vector<1x32xf32>
    %792 = math.exp %791 : vector<1x32xf32>
    %cst_289 = arith.constant 1.000000e+00 : f32
    %793 = vector.broadcast %cst_289 : f32 to vector<1x32xf32>
    %794 = arith.addf %793, %792 : vector<1x32xf32>
    %795 = arith.divf %793, %794 : vector<1x32xf32>
    %796 = arith.mulf %787, %744 : vector<1x32xf32>
    %797 = arith.mulf %781, %789 : vector<1x32xf32>
    %798 = arith.addf %796, %797 : vector<1x32xf32>
    %799 = math.tanh %798 : vector<1x32xf32>
    %800 = arith.mulf %795, %799 : vector<1x32xf32>
    %801 = vector.broadcast %c7_i32_269 : i32 to vector<1x1xi32>
    %802 = arith.cmpi slt, %801, %9 : vector<1x1xi32>
    %803 = vector.broadcast %734 : i32 to vector<1x1xi32>
    %804 = arith.cmpi slt, %803, %9 : vector<1x1xi32>
    %805 = vector.shape_cast %802 : vector<1x1xi1> to vector<1x1xi1>
    %806 = vector.broadcast %805 : vector<1x1xi1> to vector<1x32xi1>
    %807 = arith.select %806, %775, %741 : vector<1x32xi1>, vector<1x32xf32>
    %c0_290 = arith.constant 0 : index
    %c0_291 = arith.constant 0 : index
    %808 = vector.load %arg9[%c0_290, %c0_291] : memref<1x32xf32, #tpu.memory_space<vmem>>, vector<1x32xf32>
    tpu.vector_store %arg9[%c0_290, %c0_291], %807 {strides = array<i32>} : memref<1x32xf32, #tpu.memory_space<vmem>>, vector<1x32xf32>,
    %809 = vector.shape_cast %802 : vector<1x1xi1> to vector<1x1xi1>
    %810 = vector.broadcast %809 : vector<1x1xi1> to vector<1x32xi1>
    %811 = arith.select %810, %773, %742 : vector<1x32xi1>, vector<1x32xf32>
    %c0_292 = arith.constant 0 : index
    %c0_293 = arith.constant 0 : index
    %812 = vector.load %arg10[%c0_292, %c0_293] : memref<1x32xf32, #tpu.memory_space<vmem>>, vector<1x32xf32>
    tpu.vector_store %arg10[%c0_292, %c0_293], %811 {strides = array<i32>} : memref<1x32xf32, #tpu.memory_space<vmem>>, vector<1x32xf32>,
    %813 = vector.shape_cast %804 : vector<1x1xi1> to vector<1x1xi1>
    %814 = vector.broadcast %813 : vector<1x1xi1> to vector<1x32xi1>
    %815 = arith.select %814, %800, %743 : vector<1x32xi1>, vector<1x32xf32>
    %c0_294 = arith.constant 0 : index
    %c0_295 = arith.constant 0 : index
    %816 = vector.load %arg11[%c0_294, %c0_295] : memref<1x32xf32, #tpu.memory_space<vmem>>, vector<1x32xf32>
    tpu.vector_store %arg11[%c0_294, %c0_295], %815 {strides = array<i32>} : memref<1x32xf32, #tpu.memory_space<vmem>>, vector<1x32xf32>,
    %817 = vector.shape_cast %804 : vector<1x1xi1> to vector<1x1xi1>
    %818 = vector.broadcast %817 : vector<1x1xi1> to vector<1x32xi1>
    %819 = arith.select %818, %798, %744 : vector<1x32xi1>, vector<1x32xf32>
    %c0_296 = arith.constant 0 : index
    %c0_297 = arith.constant 0 : index
    %820 = vector.load %arg12[%c0_296, %c0_297] : memref<1x32xf32, #tpu.memory_space<vmem>>, vector<1x32xf32>
    tpu.vector_store %arg12[%c0_296, %c0_297], %819 {strides = array<i32>} : memref<1x32xf32, #tpu.memory_space<vmem>>, vector<1x32xf32>,
    %cst_298 = arith.constant 0.000000e+00 : f32
    %821 = vector.shape_cast %802 : vector<1x1xi1> to vector<1x1xi1>
    %822 = vector.broadcast %821 : vector<1x1xi1> to vector<1x32xi1>
    %823 = vector.broadcast %cst_298 : f32 to vector<1x32xf32>
    %824 = arith.select %822, %775, %823 : vector<1x32xi1>, vector<1x32xf32>
    %825 = arith.index_cast %c7_i32_269 : i32 to index
    %c0_299 = arith.constant 0 : index
    %c0_300 = arith.constant 0 : index
    %c0_301 = arith.constant 0 : index
    %826 = vector.load %arg6[%825, %c0_299, %c0_300, %c0_301] : memref<8x1x1x64xf32, #tpu.memory_space<vmem>>, vector<1x1x1x32xf32>
    %827 = vector.shape_cast %826 : vector<1x1x1x32xf32> to vector<1x32xf32>
    %828 = vector.shape_cast %824 : vector<1x32xf32> to vector<1x1x1x32xf32>
    tpu.vector_store %arg6[%825, %c0_299, %c0_300, %c0_301], %828 {strides = array<i32>} : memref<8x1x1x64xf32, #tpu.memory_space<vmem>>, vector<1x1x1x32xf32>,
    %cst_302 = arith.constant 0.000000e+00 : f32
    %829 = vector.shape_cast %804 : vector<1x1xi1> to vector<1x1xi1>
    %830 = vector.broadcast %829 : vector<1x1xi1> to vector<1x32xi1>
    %831 = vector.broadcast %cst_302 : f32 to vector<1x32xf32>
    %832 = arith.select %830, %800, %831 : vector<1x32xi1>, vector<1x32xf32>
    %833 = arith.index_cast %734 : i32 to index
    %c0_303 = arith.constant 0 : index
    %c0_304 = arith.constant 0 : index
    %c32_305 = arith.constant 32 : index
    %834 = vector.load %arg6[%833, %c0_303, %c0_304, %c32_305] : memref<8x1x1x64xf32, #tpu.memory_space<vmem>>, vector<1x1x1x32xf32>
    %835 = vector.shape_cast %834 : vector<1x1x1x32xf32> to vector<1x32xf32>
    %836 = vector.shape_cast %832 : vector<1x32xf32> to vector<1x1x1x32xf32>
    tpu.vector_store %arg6[%833, %c0_303, %c0_304, %c32_305], %836 {strides = array<i32>} : memref<8x1x1x64xf32, #tpu.memory_space<vmem>>, vector<1x1x1x32xf32>,
    %c8_i32 = arith.constant 8 : i32
    %c0_306 = arith.constant 0 : index
    %c0_307 = arith.constant 0 : index
    %837 = vector.load %arg9[%c0_306, %c0_307] : memref<1x32xf32, #tpu.memory_space<vmem>>, vector<1x32xf32>
    %c0_308 = arith.constant 0 : index
    %c0_309 = arith.constant 0 : index
    %c0_310 = arith.constant 0 : index
    %838 = vector.load %arg7[%c0_308, %c0_309, %c0_310] : memref<1x1x64xf32, #tpu.memory_space<vmem>>, vector<1x1x32xf32>
    %839 = vector.shape_cast %838 : vector<1x1x32xf32> to vector<1x32xf32>
    %840 = vector.shape_cast %837 : vector<1x32xf32> to vector<1x1x32xf32>
    tpu.vector_store %arg7[%c0_308, %c0_309, %c0_310], %840 {strides = array<i32>} : memref<1x1x64xf32, #tpu.memory_space<vmem>>, vector<1x1x32xf32>,
    %c0_311 = arith.constant 0 : index
    %c0_312 = arith.constant 0 : index
    %841 = vector.load %arg11[%c0_311, %c0_312] : memref<1x32xf32, #tpu.memory_space<vmem>>, vector<1x32xf32>
    %c0_313 = arith.constant 0 : index
    %c0_314 = arith.constant 0 : index
    %c32_315 = arith.constant 32 : index
    %842 = vector.load %arg7[%c0_313, %c0_314, %c32_315] : memref<1x1x64xf32, #tpu.memory_space<vmem>>, vector<1x1x32xf32>
    %843 = vector.shape_cast %842 : vector<1x1x32xf32> to vector<1x32xf32>
    %844 = vector.shape_cast %841 : vector<1x32xf32> to vector<1x1x32xf32>
    tpu.vector_store %arg7[%c0_313, %c0_314, %c32_315], %844 {strides = array<i32>} : memref<1x1x64xf32, #tpu.memory_space<vmem>>, vector<1x1x32xf32>,
    %c0_316 = arith.constant 0 : index
    %c0_317 = arith.constant 0 : index
    %845 = vector.load %arg10[%c0_316, %c0_317] : memref<1x32xf32, #tpu.memory_space<vmem>>, vector<1x32xf32>
    %c0_318 = arith.constant 0 : index
    %c0_319 = arith.constant 0 : index
    %c0_320 = arith.constant 0 : index
    %846 = vector.load %arg8[%c0_318, %c0_319, %c0_320] : memref<1x1x64xf32, #tpu.memory_space<vmem>>, vector<1x1x32xf32>
    %847 = vector.shape_cast %846 : vector<1x1x32xf32> to vector<1x32xf32>
    %848 = vector.shape_cast %845 : vector<1x32xf32> to vector<1x1x32xf32>
    tpu.vector_store %arg8[%c0_318, %c0_319, %c0_320], %848 {strides = array<i32>} : memref<1x1x64xf32, #tpu.memory_space<vmem>>, vector<1x1x32xf32>,
    %c0_321 = arith.constant 0 : index
    %c0_322 = arith.constant 0 : index
    %849 = vector.load %arg12[%c0_321, %c0_322] : memref<1x32xf32, #tpu.memory_space<vmem>>, vector<1x32xf32>
    %c0_323 = arith.constant 0 : index
    %c0_324 = arith.constant 0 : index
    %c32_325 = arith.constant 32 : index
    %850 = vector.load %arg8[%c0_323, %c0_324, %c32_325] : memref<1x1x64xf32, #tpu.memory_space<vmem>>, vector<1x1x32xf32>
    %851 = vector.shape_cast %850 : vector<1x1x32xf32> to vector<1x32xf32>
    %852 = vector.shape_cast %849 : vector<1x32xf32> to vector<1x1x32xf32>
    tpu.vector_store %arg8[%c0_323, %c0_324, %c32_325], %852 {strides = array<i32>} : memref<1x1x64xf32, #tpu.memory_space<vmem>>, vector<1x1x32xf32>,
    return
  }
  func.func @transform_0(%arg0: i32) -> (i32, i32, i32, i32) {
    %c0_i32 = arith.constant 0 : i32
    %c0_i32_0 = arith.constant 0 : i32
    %c0_i32_1 = arith.constant 0 : i32
    %c0_i32_2 = arith.constant 0 : i32
    return %c0_i32, %arg0, %c0_i32_0, %c0_i32_1 : i32, i32, i32, i32
  }
  func.func @transform_1(%arg0: i32) -> (i32, i32, i32) {
    %c0_i32 = arith.constant 0 : i32
    %c0_i32_0 = arith.constant 0 : i32
    %c0_i32_1 = arith.constant 0 : i32
    return %arg0, %c0_i32, %c0_i32_0 : i32, i32, i32
  }
  func.func @transform_2(%arg0: i32) -> (i32, i32) {
    %c0_i32 = arith.constant 0 : i32
    %c0_i32_0 = arith.constant 0 : i32
    %c0_i32_1 = arith.constant 0 : i32
    return %c0_i32, %c0_i32_0 : i32, i32
  }
  func.func @transform_3(%arg0: i32) -> (i32, i32) {
    %c0_i32 = arith.constant 0 : i32
    %c0_i32_0 = arith.constant 0 : i32
    %c0_i32_1 = arith.constant 0 : i32
    return %c0_i32, %c0_i32_0 : i32, i32
  }
  func.func @transform_4(%arg0: i32) -> (i32, i32) {
    %c0_i32 = arith.constant 0 : i32
    %c0_i32_0 = arith.constant 0 : i32
    %c0_i32_1 = arith.constant 0 : i32
    return %c0_i32, %c0_i32_0 : i32, i32
  }
  func.func @transform_5(%arg0: i32) -> (i32, i32, i32, i32) {
    %c0_i32 = arith.constant 0 : i32
    %c0_i32_0 = arith.constant 0 : i32
    %c0_i32_1 = arith.constant 0 : i32
    %c0_i32_2 = arith.constant 0 : i32
    return %c0_i32, %arg0, %c0_i32_0, %c0_i32_1 : i32, i32, i32, i32
  }
  func.func @transform_6(%arg0: i32) -> (i32, i32, i32) {
    %c0_i32 = arith.constant 0 : i32
    %c0_i32_0 = arith.constant 0 : i32
    %c0_i32_1 = arith.constant 0 : i32
    return %arg0, %c0_i32, %c0_i32_0 : i32, i32, i32
  }
  func.func @transform_7(%arg0: i32) -> (i32, i32, i32) {
    %c0_i32 = arith.constant 0 : i32
    %c0_i32_0 = arith.constant 0 : i32
    %c0_i32_1 = arith.constant 0 : i32
    return %arg0, %c0_i32, %c0_i32_0 : i32, i32, i32
  }
}

module attributes {stable_mosaic.version = 11 : i64} {
  func.func @_gated_attn_kernel(%arg0: i32, %arg1: memref<1x8x64xf32, #tpu.memory_space<vmem>>, %arg2: memref<1x1x8xf32, #tpu.memory_space<vmem>>, %arg3: memref<64x64xbf16, #tpu.memory_space<vmem>>, %arg4: memref<1x64xf32, #tpu.memory_space<vmem>>, %arg5: memref<64x128xbf16, #tpu.memory_space<vmem>>, %arg6: memref<64x128xbf16, #tpu.memory_space<vmem>>, %arg7: memref<1x8x64xf32, #tpu.memory_space<vmem>>) attributes {dimension_semantics = [#tpu.dimension_semantics<parallel>], iteration_bounds = array<i64: 2>, scalar_prefetch = 0 : i64, scratch_operands = 0 : i64, tpu.core_type = #tpu.core_type<tc>, window_params = [{transform_indices = @transform_0, window_bounds = array<i64: 1, 8, 64>}, {transform_indices = @transform_1, window_bounds = array<i64: 1, 1, 8>}, {pipeline_mode = #tpu.pipeline_mode<synchronous>, transform_indices = @transform_2, window_bounds = array<i64: 64, 64>}, {pipeline_mode = #tpu.pipeline_mode<synchronous>, transform_indices = @transform_3, window_bounds = array<i64: 1, 64>}, {pipeline_mode = #tpu.pipeline_mode<synchronous>, transform_indices = @transform_4, window_bounds = array<i64: 64, 128>}, {pipeline_mode = #tpu.pipeline_mode<synchronous>, transform_indices = @transform_5, window_bounds = array<i64: 64, 128>}, {transform_indices = @transform_6, window_bounds = array<i64: 1, 8, 64>}]} {
    %c0 = arith.constant 0 : index
    %c0_0 = arith.constant 0 : index
    %c0_1 = arith.constant 0 : index
    %0 = vector.load %arg1[%c0, %c0_0, %c0_1] : memref<1x8x64xf32, #tpu.memory_space<vmem>>, vector<1x8x64xf32>
    %1 = arith.truncf %0 : vector<1x8x64xf32> to vector<1x8x64xbf16>
    %2 = vector.shape_cast %1 : vector<1x8x64xbf16> to vector<8x64xbf16>
    %c0_2 = arith.constant 0 : index
    %c0_3 = arith.constant 0 : index
    %3 = vector.load %arg3[%c0_2, %c0_3] : memref<64x64xbf16, #tpu.memory_space<vmem>>, vector<64x64xbf16>
    %cst = arith.constant dense<0.000000e+00> : vector<8x64xf32>
    %4 = tpu.matmul %2, %3, %cst {dimension_numbers = #tpu.dot_dimension_numbers<[1], [0], [0], [1], [0, 0, 1, 1], [], []>} : vector<8x64xbf16>, vector<64x64xbf16>, vector<8x64xf32> -> vector<8x64xf32>
    %c0_4 = arith.constant 0 : index
    %c0_5 = arith.constant 0 : index
    %5 = vector.load %arg4[%c0_4, %c0_5] : memref<1x64xf32, #tpu.memory_space<vmem>>, vector<1x64xf32>
    %6 = vector.broadcast %5 : vector<1x64xf32> to vector<8x64xf32>
    %7 = arith.addf %4, %6 : vector<8x64xf32>
    %8 = arith.truncf %7 : vector<8x64xf32> to vector<8x64xbf16>
    %9 = vector.shape_cast %8 : vector<8x64xbf16> to vector<1x8x64xbf16>
    "tpu.trace_start"() <{level = 10 : i32, message = "btd,bsd->bts"}> : () -> ()
    %cst_6 = arith.constant dense<0.000000e+00> : vector<1x8x8xf32>
    %10 = tpu.matmul %1, %9, %cst_6 {dimension_numbers = #tpu.dot_dimension_numbers<[2], [2], [1], [1], [0, 0, 0, 1, 1, 1], [0], [0]>} : vector<1x8x64xbf16>, vector<1x8x64xbf16>, vector<1x8x8xf32> -> vector<1x8x8xf32>
    "tpu.trace_stop"() : () -> ()
    %c0_7 = arith.constant 0 : index
    %c0_8 = arith.constant 0 : index
    %c0_9 = arith.constant 0 : index
    %11 = vector.load %arg2[%c0_7, %c0_8, %c0_9] : memref<1x1x8xf32, #tpu.memory_space<vmem>>, vector<1x1x8xf32>
    %12 = vector.broadcast %11 : vector<1x1x8xf32> to vector<1x8x8xf32>
    %13 = arith.addf %10, %12 : vector<1x8x8xf32>
    %cst_10 = arith.constant dense<0xFF800000> : vector<1x8xf32>
    %14 = vector.multi_reduction <maximumf>, %13, %cst_10 [2] : vector<1x8x8xf32> to vector<1x8xf32>
    %15 = vector.shape_cast %14 : vector<1x8xf32> to vector<1x8x1xf32>
    %16 = vector.broadcast %15 : vector<1x8x1xf32> to vector<1x8x8xf32>
    %17 = arith.subf %13, %16 : vector<1x8x8xf32>
    %18 = math.exp %17 : vector<1x8x8xf32>
    %cst_11 = arith.constant dense<0.000000e+00> : vector<1x8xf32>
    %19 = vector.multi_reduction <add>, %18, %cst_11 [2] : vector<1x8x8xf32> to vector<1x8xf32>
    %20 = vector.shape_cast %19 : vector<1x8xf32> to vector<1x8x1xf32>
    %21 = tpu.reciprocal %20 {approx = true} : vector<1x8x1xf32> -> vector<1x8x1xf32>
    %22 = vector.broadcast %21 : vector<1x8x1xf32> to vector<1x8x8xf32>
    %23 = arith.mulf %18, %22 : vector<1x8x8xf32>
    %24 = arith.truncf %23 : vector<1x8x8xf32> to vector<1x8x8xbf16>
    "tpu.trace_start"() <{level = 10 : i32, message = "bts,bsd->btd"}> : () -> ()
    %cst_12 = arith.constant dense<0.000000e+00> : vector<1x8x64xf32>
    %25 = tpu.matmul %24, %1, %cst_12 {dimension_numbers = #tpu.dot_dimension_numbers<[2], [1], [1], [2], [0, 0, 0, 1, 1, 2], [0], [0]>} : vector<1x8x8xbf16>, vector<1x8x64xbf16>, vector<1x8x64xf32> -> vector<1x8x64xf32>
    "tpu.trace_stop"() : () -> ()
    %26 = arith.truncf %25 : vector<1x8x64xf32> to vector<1x8x64xbf16>
    %27 = vector.shape_cast %26 : vector<1x8x64xbf16> to vector<8x64xbf16>
    %c0_13 = arith.constant 0 : index
    %c0_14 = arith.constant 0 : index
    %28 = vector.load %arg5[%c0_13, %c0_14] : memref<64x128xbf16, #tpu.memory_space<vmem>>, vector<64x128xbf16>
    %cst_15 = arith.constant dense<0.000000e+00> : vector<8x128xf32>
    %29 = tpu.matmul %2, %28, %cst_15 {dimension_numbers = #tpu.dot_dimension_numbers<[1], [0], [0], [1], [0, 0, 1, 1], [], []>} : vector<8x64xbf16>, vector<64x128xbf16>, vector<8x128xf32> -> vector<8x128xf32>
    %c0_16 = arith.constant 0 : index
    %c0_17 = arith.constant 0 : index
    %30 = vector.load %arg6[%c0_16, %c0_17] : memref<64x128xbf16, #tpu.memory_space<vmem>>, vector<64x128xbf16>
    %cst_18 = arith.constant dense<0.000000e+00> : vector<8x128xf32>
    %31 = tpu.matmul %27, %30, %cst_18 {dimension_numbers = #tpu.dot_dimension_numbers<[1], [0], [0], [1], [0, 0, 1, 1], [], []>} : vector<8x64xbf16>, vector<64x128xbf16>, vector<8x128xf32> -> vector<8x128xf32>
    %32 = arith.addf %29, %31 : vector<8x128xf32>
    %33 = vector.extract_strided_slice %32 {offsets = [0, 0], sizes = [8, 64], strides = [1, 1]} : vector<8x128xf32> to vector<8x64xf32>
    %34 = math.tanh %33 : vector<8x64xf32>
    %35 = vector.shape_cast %34 : vector<8x64xf32> to vector<1x8x64xf32>
    %36 = vector.extract_strided_slice %32 {offsets = [0, 64], sizes = [8, 64], strides = [1, 1]} : vector<8x128xf32> to vector<8x64xf32>
    %37 = arith.negf %36 : vector<8x64xf32>
    %38 = math.exp %37 : vector<8x64xf32>
    %cst_19 = arith.constant 1.000000e+00 : f32
    %39 = vector.broadcast %cst_19 : f32 to vector<8x64xf32>
    %40 = arith.addf %39, %38 : vector<8x64xf32>
    %41 = arith.divf %39, %40 : vector<8x64xf32>
    %42 = vector.shape_cast %41 : vector<8x64xf32> to vector<1x8x64xf32>
    %43 = arith.mulf %42, %35 : vector<1x8x64xf32>
    %cst_20 = arith.constant 1.000000e+00 : f32
    %44 = vector.broadcast %cst_20 : f32 to vector<1x8x64xf32>
    %45 = arith.subf %44, %42 : vector<1x8x64xf32>
    %46 = arith.mulf %45, %0 : vector<1x8x64xf32>
    %47 = arith.addf %43, %46 : vector<1x8x64xf32>
    %c0_21 = arith.constant 0 : index
    %c0_22 = arith.constant 0 : index
    %c0_23 = arith.constant 0 : index
    %48 = vector.load %arg7[%c0_21, %c0_22, %c0_23] : memref<1x8x64xf32, #tpu.memory_space<vmem>>, vector<1x8x64xf32>
    tpu.vector_store %arg7[%c0_21, %c0_22, %c0_23], %47 {strides = array<i32>} : memref<1x8x64xf32, #tpu.memory_space<vmem>>, vector<1x8x64xf32>,
    return
  }
  func.func @transform_0(%arg0: i32) -> (i32, i32, i32) {
    %c0_i32 = arith.constant 0 : i32
    %c0_i32_0 = arith.constant 0 : i32
    %c0_i32_1 = arith.constant 0 : i32
    return %arg0, %c0_i32, %c0_i32_0 : i32, i32, i32
  }
  func.func @transform_1(%arg0: i32) -> (i32, i32, i32) {
    %c0_i32 = arith.constant 0 : i32
    %c0_i32_0 = arith.constant 0 : i32
    %c0_i32_1 = arith.constant 0 : i32
    return %arg0, %c0_i32, %c0_i32_0 : i32, i32, i32
  }
  func.func @transform_2(%arg0: i32) -> (i32, i32) {
    %c0_i32 = arith.constant 0 : i32
    %c0_i32_0 = arith.constant 0 : i32
    %c0_i32_1 = arith.constant 0 : i32
    return %c0_i32, %c0_i32_0 : i32, i32
  }
  func.func @transform_3(%arg0: i32) -> (i32, i32) {
    %c0_i32 = arith.constant 0 : i32
    %c0_i32_0 = arith.constant 0 : i32
    %c0_i32_1 = arith.constant 0 : i32
    return %c0_i32, %c0_i32_0 : i32, i32
  }
  func.func @transform_4(%arg0: i32) -> (i32, i32) {
    %c0_i32 = arith.constant 0 : i32
    %c0_i32_0 = arith.constant 0 : i32
    %c0_i32_1 = arith.constant 0 : i32
    return %c0_i32, %c0_i32_0 : i32, i32
  }
  func.func @transform_5(%arg0: i32) -> (i32, i32) {
    %c0_i32 = arith.constant 0 : i32
    %c0_i32_0 = arith.constant 0 : i32
    %c0_i32_1 = arith.constant 0 : i32
    return %c0_i32, %c0_i32_0 : i32, i32
  }
  func.func @transform_6(%arg0: i32) -> (i32, i32, i32) {
    %c0_i32 = arith.constant 0 : i32
    %c0_i32_0 = arith.constant 0 : i32
    %c0_i32_1 = arith.constant 0 : i32
    return %arg0, %c0_i32, %c0_i32_0 : i32, i32, i32
  }
}

</mosaic_0001>

<llo_original>
// kernel: encoder_forward.5
$region0: #{encoder_forward.5}
  #allocation0 [shape = 'u32[]', space=smem, size = 0x4, offset = 0x4, fixed_abs, tag = 'smem constant byte address 0x4 - core index']
  #allocation1 [shape = 'u32[72,128]{1,0:T(1,128)}', space=vmem, size = 0x9000, scoped, tag = 'internal scratch']
  %s0 = inlined_call_operand.vmem [shape: f32[2,8,64], index: 0, kind: input, shape index: {}]
  %s1 = inlined_call_operand.vmem [shape: f32[2,1,8], index: 1, kind: input, shape index: {}]
  %s2 = inlined_call_operand.vmem [shape: bf16[64,64], index: 2, kind: input, shape index: {}]
  %s3 = inlined_call_operand.vmem [shape: f32[1,64], index: 3, kind: input, shape index: {}]
  %s4 = inlined_call_operand.vmem [shape: bf16[64,128], index: 4, kind: input, shape index: {}]
  %s5 = inlined_call_operand.vmem [shape: bf16[64,128], index: 5, kind: input, shape index: {}]
  %s6 = inlined_call_operand.hbm [shape: f32[2,8,64], index: 6, kind: output, shape index: {}]
  %s7 = sld [smem:[#allocation0]]
  $region57: #{encoder_forward.5} parent=0
    _
  %s9 = ssub.s32 1, %s7
  %s10 = scalar_select 0, %s9, %s7
  $region1: #{encoder_forward.5} parent=0
    #allocation2 [shape = 'u8[8192]{0}', space=vmem, size = 0x2000, scoped, tag = 'output window, operand 0']
    #allocation3 [shape = 's32[2]{0}', space=sflag, size = 0x8, scoped, tag = 'scoped memory for encoder_forward.5']
    %11 = vsyncpa [#allocation3], 0
    %s12 = scalar_lea.sflag [#allocation3], 1
    %13 = vsyncpa %s12, 0
    loop: start=0, step=1, limit=4
    $region2: #{encoder_forward.5} parent=1 // loop_pre_header
      _
    $region3: #{encoder_forward.5} parent=1 // loop_header
      %s15 = sphi 0, %s19
      %p16 = scmp.ge.s32.totalorder %s15, 4
      %s25 = sphi 0, %s27
      %s28 = sphi 0, %s25
      %s29 = sphi 0, %s28
      %s45 = sphi 0, %s29
      %s51 = sphi 0, %s53
      %s54 = sphi 0, %s51
      %s55 = sphi 0, %s54
      %s71 = sphi 0, %s55
      %s75 = sphi 0, %s75
      %s77 = sphi 0, %s75
      %s78 = sphi 0, %s77
      %s92 = sphi 0, %s78
      %s96 = sphi 0, %s96
      %s98 = sphi 0, %s96
      %s99 = sphi 0, %s98
      %s113 = sphi 0, %s99
      %s117 = sphi 0, %s117
      %s119 = sphi 0, %s117
      %s120 = sphi 0, %s119
      %s134 = sphi 0, %s120
      %s138 = sphi 0, %s138
      %s140 = sphi 0, %s138
      %s141 = sphi 0, %s140
      %s155 = sphi 0, %s141
      %s161 = sphi 0, %s163
      %s164 = sphi 0, %s161
      %s165 = sphi 0, %s164
      %s181 = sphi 0, %s165
    $region4: #{encoder_forward.5} parent=1 // loop_header_branch
      %18 = sbr.rel (%p16) target = $region8
    $region5: #{encoder_forward.5} parent=1 // loop_body
      %s20 = ssub.s32 %s15, 1
      %s21 = ssub.s32 %s15, 2
      %s22 = sadd.s32 %s15, 1
      %s23 = ssub.s32 %s15, %s22
      %p24 = scmp.eq.s32.totalorder %s23, 0
      %s26 = sadd.s32 %s25, 1
      %s27 = scalar_select %p24, %s25, %s26
      %p30 = pneg %p24
      %p31 = scmp.eq.s32.totalorder %s15, 1
      %p32 = por %p30, %p31
      %p33 = scmp.ne.s32.totalorder %s25, %s28
      %p34 = scmp.eq.s32.totalorder %s15, 0
      %p35 = por %p33, %p34
      %p36 = scmp.ne.s32.totalorder %s25, %s28
      %p37 = scmp.eq.s32.totalorder %s20, 1
      %p38 = por %p36, %p37
      %p39 = scmp.ne.s32.totalorder %s28, %s29
      %p40 = scmp.eq.s32.totalorder %s20, 0
      %p41 = por %p39, %p40
      %p42 = scmp.ne.s32.totalorder %s28, %s29
      %p43 = scmp.eq.s32.totalorder %s21, 1
      %p44 = por %p42, %p43
      %p46 = scmp.ne.s32.totalorder %s29, %s45
      %p47 = scmp.eq.s32.totalorder %s21, 0
      %p48 = por %p46, %p47
      %s49 = ssub.s32 %s15, %s22
      %p50 = scmp.eq.s32.totalorder %s49, 0
      %s52 = sadd.s32 %s51, 1
      %s53 = scalar_select %p50, %s51, %s52
      %p56 = pneg %p50
      %p57 = scmp.eq.s32.totalorder %s15, 1
      %p58 = por %p56, %p57
      %p59 = scmp.ne.s32.totalorder %s51, %s54
      %p60 = scmp.eq.s32.totalorder %s15, 0
      %p61 = por %p59, %p60
      %p62 = scmp.ne.s32.totalorder %s51, %s54
      %p63 = scmp.eq.s32.totalorder %s20, 1
      %p64 = por %p62, %p63
      %p65 = scmp.ne.s32.totalorder %s54, %s55
      %p66 = scmp.eq.s32.totalorder %s20, 0
      %p67 = por %p65, %p66
      %p68 = scmp.ne.s32.totalorder %s54, %s55
      %p69 = scmp.eq.s32.totalorder %s21, 1
      %p70 = por %p68, %p69
      %p72 = scmp.ne.s32.totalorder %s55, %s71
      %p73 = scmp.eq.s32.totalorder %s21, 0
      %p74 = por %p72, %p73
      %s76 = sadd.s32 %s75, 1
      %p79 = scmp.eq.s32.totalorder %s15, 1
      %p80 = scmp.ne.s32.totalorder %s75, %s77
      %p81 = scmp.eq.s32.totalorder %s15, 0
      %p82 = por %p80, %p81
      %p83 = scmp.ne.s32.totalorder %s75, %s77
      %p84 = scmp.eq.s32.totalorder %s20, 1
      %p85 = por %p83, %p84
      %p86 = scmp.ne.s32.totalorder %s77, %s78
      %p87 = scmp.eq.s32.totalorder %s20, 0
      %p88 = por %p86, %p87
      %p89 = scmp.ne.s32.totalorder %s77, %s78
      %p90 = scmp.eq.s32.totalorder %s21, 1
      %p91 = por %p89, %p90
      %p93 = scmp.ne.s32.totalorder %s78, %s92
      %p94 = scmp.eq.s32.totalorder %s21, 0
      %p95 = por %p93, %p94
      %s97 = sadd.s32 %s96, 1
      %p100 = scmp.eq.s32.totalorder %s15, 1
      %p101 = scmp.ne.s32.totalorder %s96, %s98
      %p102 = scmp.eq.s32.totalorder %s15, 0
      %p103 = por %p101, %p102
      %p104 = scmp.ne.s32.totalorder %s96, %s98
      %p105 = scmp.eq.s32.totalorder %s20, 1
      %p106 = por %p104, %p105
      %p107 = scmp.ne.s32.totalorder %s98, %s99
      %p108 = scmp.eq.s32.totalorder %s20, 0
      %p109 = por %p107, %p108
      %p110 = scmp.ne.s32.totalorder %s98, %s99
      %p111 = scmp.eq.s32.totalorder %s21, 1
      %p112 = por %p110, %p111
      %p114 = scmp.ne.s32.totalorder %s99, %s113
      %p115 = scmp.eq.s32.totalorder %s21, 0
      %p116 = por %p114, %p115
      %s118 = sadd.s32 %s117, 1
      %p121 = scmp.eq.s32.totalorder %s15, 1
      %p122 = scmp.ne.s32.totalorder %s117, %s119
      %p123 = scmp.eq.s32.totalorder %s15, 0
      %p124 = por %p122, %p123
      %p125 = scmp.ne.s32.totalorder %s117, %s119
      %p126 = scmp.eq.s32.totalorder %s20, 1
      %p127 = por %p125, %p126
      %p128 = scmp.ne.s32.totalorder %s119, %s120
      %p129 = scmp.eq.s32.totalorder %s20, 0
      %p130 = por %p128, %p129
      %p131 = scmp.ne.s32.totalorder %s119, %s120
      %p132 = scmp.eq.s32.totalorder %s21, 1
      %p133 = por %p131, %p132
      %p135 = scmp.ne.s32.totalorder %s120, %s134
      %p136 = scmp.eq.s32.totalorder %s21, 0
      %p137 = por %p135, %p136
      %s139 = sadd.s32 %s138, 1
      %p142 = scmp.eq.s32.totalorder %s15, 1
      %p143 = scmp.ne.s32.totalorder %s138, %s140
      %p144 = scmp.eq.s32.totalorder %s15, 0
      %p145 = por %p143, %p144
      %p146 = scmp.ne.s32.totalorder %s138, %s140
      %p147 = scmp.eq.s32.totalorder %s20, 1
      %p148 = por %p146, %p147
      %p149 = scmp.ne.s32.totalorder %s140, %s141
      %p150 = scmp.eq.s32.totalorder %s20, 0
      %p151 = por %p149, %p150
      %p152 = scmp.ne.s32.totalorder %s140, %s141
      %p153 = scmp.eq.s32.totalorder %s21, 1
      %p154 = por %p152, %p153
      %p156 = scmp.ne.s32.totalorder %s141, %s155
      %p157 = scmp.eq.s32.totalorder %s21, 0
      %p158 = por %p156, %p157
      %s159 = ssub.s32 %s15, %s22
      %p160 = scmp.eq.s32.totalorder %s159, 0
      %s162 = sadd.s32 %s161, 1
      %s163 = scalar_select %p160, %s161, %s162
      %p166 = pneg %p160
      %p167 = scmp.eq.s32.totalorder %s15, 1
      %p168 = por %p166, %p167
      %p169 = scmp.ne.s32.totalorder %s161, %s164
      %p170 = scmp.eq.s32.totalorder %s15, 0
      %p171 = por %p169, %p170
      %p172 = scmp.ne.s32.totalorder %s161, %s164
      %p173 = scmp.eq.s32.totalorder %s20, 1
      %p174 = por %p172, %p173
      %p175 = scmp.ne.s32.totalorder %s164, %s165
      %p176 = scmp.eq.s32.totalorder %s20, 0
      %p177 = por %p175, %p176
      %p178 = scmp.ne.s32.totalorder %s164, %s165
      %p179 = scmp.eq.s32.totalorder %s21, 1
      %p180 = por %p178, %p179
      %p182 = scmp.ne.s32.totalorder %s165, %s181
      %p183 = scmp.eq.s32.totalorder %s21, 0
      %p184 = por %p182, %p183
      %p185 = scmp.le.s32.totalorder 1, %s15
      %p186 = scmp.lt.s32.totalorder %s15, 3
      %p187 = pnand %p185, %p186
      %p188 = pneg %p187
      // Predicated region
      $region9: #{encoder_forward.5} parent=5 // pred_check
        _
      $region10: #{encoder_forward.5} parent=5 // pred_check_branch
        %190 = sbr.rel (%p187) target = $region12
      $region11: #{encoder_forward.5} parent=5 // pred_region
        %s191 = ssub.s32 %s15, 1
        // Predicated region
        $region13: #{encoder_forward.5} parent=11 // pred_check
          %p192 = pneg %p88
        $region14: #{encoder_forward.5} parent=11 // pred_check_branch
          %194 = sbr.rel (%p192) target = $region16
        $region15: #{encoder_forward.5} parent=11 // pred_region
          _
        $region16: #{encoder_forward.5} parent=11 // pred_fallthru
          _
        // Predicated region
        $region17: #{encoder_forward.5} parent=11 // pred_check
          %p195 = pneg %p109
        $region18: #{encoder_forward.5} parent=11 // pred_check_branch
          %197 = sbr.rel (%p195) target = $region20
        $region19: #{encoder_forward.5} parent=11 // pred_region
          _
        $region20: #{encoder_forward.5} parent=11 // pred_fallthru
          _
        // Predicated region
        $region21: #{encoder_forward.5} parent=11 // pred_check
          %p198 = pneg %p130
        $region22: #{encoder_forward.5} parent=11 // pred_check_branch
          %200 = sbr.rel (%p198) target = $region24
        $region23: #{encoder_forward.5} parent=11 // pred_region
          _
        $region24: #{encoder_forward.5} parent=11 // pred_fallthru
          _
        // Predicated region
        $region25: #{encoder_forward.5} parent=11 // pred_check
          %p201 = pneg %p151
        $region26: #{encoder_forward.5} parent=11 // pred_check_branch
          %203 = sbr.rel (%p201) target = $region28
        $region27: #{encoder_forward.5} parent=11 // pred_region
          _
        $region28: #{encoder_forward.5} parent=11 // pred_fallthru
          _
      $region12: #{encoder_forward.5} parent=5 // pred_fallthru
        _
      %p204 = scmp.lt.s32.totalorder %s15, 2
      // Predicated region
      $region29: #{encoder_forward.5} parent=5 // pred_check
        %p205 = pneg %p204
      $region30: #{encoder_forward.5} parent=5 // pred_check_branch
        %207 = sbr.rel (%p205) target = $region32
      $region31: #{encoder_forward.5} parent=5 // pred_region
        // Predicated region
        $region33: #{encoder_forward.5} parent=31 // pred_check
          %p208 = pneg %p35
        $region34: #{encoder_forward.5} parent=31 // pred_check_branch
          %210 = sbr.rel (%p208) target = $region36
        $region35: #{encoder_forward.5} parent=31 // pred_region
          %p211 = scmp.lt.s32.totalorder %s15, 1
          %s212 = scalar_select %p211, %s15, 1
          %s213 = smul.addr %s212, 8
          %s214 = scalar_lea.vmem %s0, %s213
        $region36: #{encoder_forward.5} parent=31 // pred_fallthru
          _
        // Predicated region
        $region37: #{encoder_forward.5} parent=31 // pred_check
          %p215 = pneg %p61
        $region38: #{encoder_forward.5} parent=31 // pred_check_branch
          %217 = sbr.rel (%p215) target = $region40
        $region39: #{encoder_forward.5} parent=31 // pred_region
          %p218 = scmp.lt.s32.totalorder %s15, 1
          %s219 = scalar_select %p218, %s15, 1
          %s220 = scalar_lea.vmem %s1, %s219
        $region40: #{encoder_forward.5} parent=31 // pred_fallthru
          _
      $region32: #{encoder_forward.5} parent=5 // pred_fallthru
        _
      %p221 = scmp.le.s32.totalorder 1, %s15
      %p222 = scmp.lt.s32.totalorder %s15, 3
      %p223 = pnand %p221, %p222
      %p224 = pneg %p223
      // Predicated region
      $region41: #{encoder_forward.5} parent=5 // pred_check
        _
      $region42: #{encoder_forward.5} parent=5 // pred_check_branch
        %226 = sbr.rel (%p223) target = $region44
      $region43: #{encoder_forward.5} parent=5 // pred_region
        %s227 = ssub.s32 %s15, 1
        %p228 = scmp.lt.s32.totalorder %s20, 1
        %s229 = scalar_select %p228, %s20, 1
        %s230 = smul.addr %s229, 8
        %s231 = scalar_lea.vmem %s0, %s230
        %p232 = pneg %p41
        %p233 = pneg %p38
        %p234 = scmp.lt.s32.totalorder %s20, 1
        %s235 = scalar_select %p234, %s20, 1
        %s236 = scalar_lea.vmem %s1, %s235
        %p237 = pneg %p67
        %p238 = pneg %p64
        %p239 = pneg %p88
        %p240 = pneg %p85
        %p241 = pneg %p109
        %p242 = pneg %p106
        %p243 = pneg %p130
        %p244 = pneg %p127
        %p245 = pneg %p151
        %p246 = pneg %p148
        %p247 = pneg %p177
        %p248 = pneg %p174
        %s249 = sand.u32 %s164, 1
        %s250 = scalar_lea.sflag [#allocation3], %s249
        %s251 = sand.u32 %s164, 1
        %s252 = smul.addr %s251, 8
        %s253 = scalar_lea.vmem [#allocation2], %s252
        %p254 = scmp.lt.s32.totalorder %s20, 1
        %s255 = scalar_select %p254, %s20, 1
        %s256 = smul.addr %s255, 8
        %s257 = scalar_lea.vmem %s0, %s256
        %p258 = scmp.lt.s32.totalorder %s20, 1
        %s259 = scalar_select %p258, %s20, 1
        %s260 = scalar_lea.vmem %s1, %s259
        %v262 = vld [vmem:[%s257] sm:$0xff]
        %v263 = vpack.c.bf16 %v262, %v262
        %v264 = vld [vmem:[%s2] sm:$0xf]
        %v265 = vld [vmem:[%s2 + $0x4] sm:$0xf]
        %v266 = vld [vmem:[%s2 + $0x8] sm:$0xf]
        %v267 = vld [vmem:[%s2 + $0xc] sm:$0xf]
        %v268 = vld [vmem:[%s2 + $0x10] sm:$0xf]
        %v269 = vld [vmem:[%s2 + $0x14] sm:$0xf]
        %v270 = vld [vmem:[%s2 + $0x18] sm:$0xf]
        %v271 = vld [vmem:[%s2 + $0x1c] sm:$0xf]
        %v272 = vld [vmem:[%s3] sm:$0x1]
        %v274 = vperm.slane %v272, 0
        %v284 = vunpack.c.l.b16 %v264
        %v285 = vunpack.c.l.b16 %v265
        %v286 = vunpack.c.l.b16 %v266
        %v287 = vunpack.c.l.b16 %v267
        %v288 = vunpack.c.l.b16 %v268
        %v289 = vunpack.c.l.b16 %v269
        %v290 = vunpack.c.l.b16 %v270
        %v291 = vunpack.c.l.b16 %v271
        %v292 = vpack.c.b16 %v285, %v284
        %v293 = vpack.c.b16 %v287, %v286
        %v294 = vpack.c.b16 %v289, %v288
        %v295 = vpack.c.b16 %v291, %v290
        %vm300 = vcmask 523264
        %v302 = vsel %vm300, %v263, 0
        %304 = vmatpush.bf16.msra.mxu0 0
        %305 = vmatpush.bf16.msra.mxu0 0
        %306 = vmatpush.bf16.msra.mxu0 0
        %307 = vmatpush.bf16.msra.mxu0 0
        %308 = vmatpush.bf16.msra.mxu0 %v295
        %309 = vmatpush.bf16.msra.mxu0 %v294
        %310 = vmatpush.bf16.msra.mxu0 %v293
        %311 = vmatpush.bf16.msra.mxu0 %v292
        %312 = vmatmul.bf16.gmra.mxu0 %v302
        %v313 = vpop.f32.mrf.mxu0
        %v314 = vadd.f32 %v274, %v313
        %v315 = vpop.f32.mrf.mxu0
        %316 = vdwg.mxu0
        %v317 = vpack.c.bf16 %v314, %v314
        %v318 = vld [vmem:[%s260] sm:$0x1]
        %v320 = vperm.slane %v318, 0
        %v323 = vsel %vm300, %v317, 0
        %325 = vmatpush.bf16.xpose.msra.mxu0 0
        %326 = vmatpush.bf16.xpose.msra.mxu0 0
        %327 = vmatpush.bf16.xpose.msra.mxu0 0
        %328 = vmatpush.bf16.xpose.msra.mxu0 0
        %329 = vmatpush.bf16.xpose.msra.mxu0 0
        %330 = vmatpush.bf16.xpose.msra.mxu0 0
        %331 = vmatpush.bf16.xpose.msra.mxu0 0
        %332 = vmatpush.bf16.xpose.msra.mxu0 %v323
        %333 = vmatmul.bf16.gmra.mxu0 %v302
        %v334 = vpop.f32.mrf.mxu0
        %v335 = vadd.f32 %v320, %v334
        %v336 = vpop.f32.mrf.mxu0
        %337 = vdwg.mxu0
        %vm338 = vcmask 64512
        %v339 = vsel %vm338, %v335, -inf
        %340 = vmax.xlane.f32.xlu0 %v339
        %v341 = vpop.xlane.xlu0 %340
        %v342 = vsub.f32 %v335, %v341
        %v343 = vmul.f32 %v342, 1.442695
        %v344 = vpow.pop %v343
        %v345 = vsel %vm338, %v344, 0.0
        %346 = vadd.xlane.f32.xlu0 %v345
        %v347 = vpop.xlane.xlu0 %346
        %v348 = vrcp.pop %v347
        %v349 = vmul.f32 %v344, %v348
        %v350 = vpack.c.bf16 %v349, %v349
        %v352 = vsel %vm338, %v350, 0
        %vm354 = vcmask 1043456
        %v355 = vsel %vm354, %v263, 0
        %357 = vmatpush.bf16.msra.mxu0 0
        %358 = vmatpush.bf16.msra.mxu0 0
        %359 = vmatpush.bf16.msra.mxu0 0
        %360 = vmatpush.bf16.msra.mxu0 0
        %361 = vmatpush.bf16.msra.mxu0 0
        %362 = vmatpush.bf16.msra.mxu0 0
        %363 = vmatpush.bf16.msra.mxu0 0
        %364 = vmatpush.bf16.msra.mxu0 %v355
        %365 = vmatmul.bf16.gmra.mxu0 %v352
        %v366 = vpop.f32.mrf.mxu0
        %v367 = vadd.f32 0.0, %v366
        %v368 = vpop.f32.mrf.mxu0
        %369 = vdwg.mxu0
        %v370 = vpack.c.bf16 %v367, %v367
        %v371 = vld [vmem:[%s4] sm:$0xf]
        %v372 = vld [vmem:[%s4 + $0x4] sm:$0xf]
        %v373 = vld [vmem:[%s4 + $0x8] sm:$0xf]
        %v374 = vld [vmem:[%s4 + $0xc] sm:$0xf]
        %v375 = vld [vmem:[%s4 + $0x10] sm:$0xf]
        %v376 = vld [vmem:[%s4 + $0x14] sm:$0xf]
        %v377 = vld [vmem:[%s4 + $0x18] sm:$0xf]
        %v378 = vld [vmem:[%s4 + $0x1c] sm:$0xf]
        %v379 = vld [vmem:[%s5] sm:$0xf]
        %v380 = vld [vmem:[%s5 + $0x4] sm:$0xf]
        %v381 = vld [vmem:[%s5 + $0x8] sm:$0xf]
        %v382 = vld [vmem:[%s5 + $0xc] sm:$0xf]
        %v383 = vld [vmem:[%s5 + $0x10] sm:$0xf]
        %v384 = vld [vmem:[%s5 + $0x14] sm:$0xf]
        %v385 = vld [vmem:[%s5 + $0x18] sm:$0xf]
        %v386 = vld [vmem:[%s5 + $0x1c] sm:$0xf]
        %v395 = vunpack.c.l.b16 %v379
        %v396 = vunpack.c.l.b16 %v380
        %v397 = vunpack.c.l.b16 %v381
        %v398 = vunpack.c.l.b16 %v382
        %v399 = vunpack.c.l.b16 %v383
        %v400 = vunpack.c.l.b16 %v384
        %v401 = vunpack.c.l.b16 %v385
        %v402 = vunpack.c.l.b16 %v386
        %v403 = vpack.c.b16 %v396, %v395
        %v404 = vpack.c.b16 %v398, %v397
        %v405 = vpack.c.b16 %v400, %v399
        %v406 = vpack.c.b16 %v402, %v401
        %v412 = vsel %vm300, %v370, 0
        %414 = vmatpush.bf16.msra.mxu0 0
        %415 = vmatpush.bf16.msra.mxu0 0
        %416 = vmatpush.bf16.msra.mxu0 0
        %417 = vmatpush.bf16.msra.mxu0 0
        %418 = vmatpush.bf16.msra.mxu0 %v406
        %419 = vmatpush.bf16.msra.mxu0 %v405
        %420 = vmatpush.bf16.msra.mxu0 %v404
        %421 = vmatpush.bf16.msra.mxu0 %v403
        %422 = vmatmul.bf16.gmra.mxu0 %v412
        %v423 = vpop.f32.mrf.mxu0
        %v424 = vadd.f32 0.0, %v423
        %v425 = vpop.f32.mrf.mxu0
        %426 = vdwg.mxu0
        %v435 = vunpack.c.l.b16 %v371
        %v436 = vunpack.c.l.b16 %v372
        %v437 = vunpack.c.l.b16 %v373
        %v438 = vunpack.c.l.b16 %v374
        %v439 = vunpack.c.l.b16 %v375
        %v440 = vunpack.c.l.b16 %v376
        %v441 = vunpack.c.l.b16 %v377
        %v442 = vunpack.c.l.b16 %v378
        %v443 = vpack.c.b16 %v436, %v435
        %v444 = vpack.c.b16 %v438, %v437
        %v445 = vpack.c.b16 %v440, %v439
        %v446 = vpack.c.b16 %v442, %v441
        %451 = vmatpush.bf16.msra.mxu0 0
        %452 = vmatpush.bf16.msra.mxu0 0
        %453 = vmatpush.bf16.msra.mxu0 0
        %454 = vmatpush.bf16.msra.mxu0 0
        %455 = vmatpush.bf16.msra.mxu0 %v446
        %456 = vmatpush.bf16.msra.mxu0 %v445
        %457 = vmatpush.bf16.msra.mxu0 %v444
        %458 = vmatpush.bf16.msra.mxu0 %v443
        %459 = vmatmul.bf16.gmra.mxu0 %v302
        %v460 = vpop.f32.mrf.mxu0
        %v461 = vadd.f32 %v424, %v460
        %v462 = vpop.f32.mrf.mxu0
        %463 = vdwg.mxu0
        %v464 = vtanh.pop %v461
        %v465 = vxor.u32 %v461, 2147483648
        %v466 = vmul.f32 %v465, 1.442695
        %v467 = vpow.pop %v466
        %v468 = vadd.f32 %v467, 1.0
        %v469 = vrcp.pop %v468
        %v470 = vmul.f32 %v468, %v469
        %v471 = vsub.f32 1.0, %v470
        %v472 = vmul.f32 %v469, %v471
        %v473 = vadd.f32 %v469, %v472
        %vm474 = vweird.f32 %v468
        %vm475 = vweird.f32 %v469
        %vm476 = vmor %vm474, %vm475
        %v477 = vsel %vm476, %v469, %v473
        %v478 = vand.u32 2147483647, %v468
        %vm479 = vcmp.eq.f32.partialorder %v478, 8.507059e+37
        %v480 = vand.u32 %v468, 2147483648
        %v481 = vor.u32 1.1754944e-38, %v480
        %v482 = vsel %vm479, %v481, %v477
        %v483 = vmul.f32 1.0, %v482
        %485 = vrot.lane.b32.xlu0 %v464, 64
        %v486 = vpop.permute.xlu0 %485
        %v488 = vmul.f32 %v483, %v486
        %v489 = vsub.f32 1.0, %v483
        %491 = vrot.lane.b32.xlu0 %v262, 64
        %v492 = vpop.permute.xlu0 %491
        %v494 = vmul.f32 %v489, %v492
        %v495 = vadd.f32 %v488, %v494
        %497 = vrot.lane.b32.xlu0 %v495, 64
        %v498 = vpop.permute.xlu0 %497
        %500 = vst.msk [vmem:[%s253] sm:$0xff] %vm300, %v498
        %s501 = sand.u32 %s164, 1
        %s502 = scalar_lea.sflag [#allocation3], %s501
        %s503 = sand.u32 %s164, 1
        %s504 = smul.addr %s503, 8
        %s505 = scalar_lea.vmem [#allocation2], %s504
        // Predicated region
        $region45: #{encoder_forward.5} parent=43 // pred_check
          %p506 = pneg %p174
        $region46: #{encoder_forward.5} parent=43 // pred_check_branch
          %508 = sbr.rel (%p506) target = $region48
        $region47: #{encoder_forward.5} parent=43 // pred_region
          %510 = vsyncadd %s502, 0
          %s511 = smul.addr %s20, 8
          %s512 = scalar_lea.hbm %s6, %s511
          %s514 = sshll.u32 %s505, 4
          %s515 = int_to_ptr.vmem [resolvable:$true] %s514
          %s516 = sshll.u32 %s512, 4
          %s517 = int_to_ptr.hbm [resolvable:$true] %s516
          %519 = dma.vmem_to_hbm [thread:$0]  %s515, 128, %s517, %s502
        $region48: #{encoder_forward.5} parent=43 // pred_fallthru
          _
      $region44: #{encoder_forward.5} parent=5 // pred_fallthru
        _
      %p520 = scmp.le.s32.totalorder 2, %s15
      // Predicated region
      $region49: #{encoder_forward.5} parent=5 // pred_check
        %p521 = pneg %p520
      $region50: #{encoder_forward.5} parent=5 // pred_check_branch
        %523 = sbr.rel (%p521) target = $region52
      $region51: #{encoder_forward.5} parent=5 // pred_region
        %s524 = ssub.s32 %s15, 2
        // Predicated region
        $region53: #{encoder_forward.5} parent=51 // pred_check
          %p525 = pneg %p180
        $region54: #{encoder_forward.5} parent=51 // pred_check_branch
          %527 = sbr.rel (%p525) target = $region56
        $region55: #{encoder_forward.5} parent=51 // pred_region
          %s528 = sand.u32 %s165, 1
          %s529 = scalar_lea.sflag [#allocation3], %s528
          %s530 = sand.u32 %s165, 1
          %s531 = smul.addr %s530, 8
          %s532 = scalar_lea.vmem [#allocation2], %s531
          %534 = dma.done %s529, 128
        $region56: #{encoder_forward.5} parent=51 // pred_fallthru
          _
      $region52: #{encoder_forward.5} parent=5 // pred_fallthru
        _
    $region6: #{encoder_forward.5} parent=1 // loop_footer
      %s19 = sadd.s32 1, %s15
    $region7: #{encoder_forward.5} parent=1 // loop_footer_branch
      %14 = sbr.rel target = $region3
    $region8: #{encoder_forward.5} parent=1 // loop_exit
      _
    %535 = vsyncpa [#allocation3], 1
    %s536 = scalar_lea.sflag [#allocation3], 1
    %537 = vsyncpa %s536, 1

// kernel: encoder_forward.3
$region0: #{encoder_forward.3}
  #allocation0 [shape = 'u32[]', space=smem, size = 0x4, offset = 0x4, fixed_abs, tag = 'smem constant byte address 0x4 - core index']
  #allocation1 [shape = 'u32[72,128]{1,0:T(1,128)}', space=vmem, size = 0x9000, scoped, tag = 'internal scratch']
  #allocation2 [shape = 'f32[1,32]{1,0:T(1,128)}', space=vmem, size = 0x200, scoped, tag = 'scratch operand']
  #allocation3 [shape = 'f32[1,32]{1,0:T(1,128)}', space=vmem, size = 0x200, scoped, tag = 'scratch operand']
  #allocation4 [shape = 'f32[1,32]{1,0:T(1,128)}', space=vmem, size = 0x200, scoped, tag = 'scratch operand']
  #allocation5 [shape = 'f32[1,32]{1,0:T(1,128)}', space=vmem, size = 0x200, scoped, tag = 'scratch operand']
  %s0 = inlined_call_operand.vmem [shape: f32[8,2,1,256], index: 0, kind: input, shape index: {}]
  %s1 = inlined_call_operand.vmem [shape: s32[2,1,1], index: 1, kind: input, shape index: {}]
  %s2 = inlined_call_operand.vmem [shape: f32[1,256], index: 2, kind: input, shape index: {}]
  %s3 = inlined_call_operand.vmem [shape: bf16[32,128], index: 3, kind: input, shape index: {}]
  %s4 = inlined_call_operand.vmem [shape: bf16[32,128], index: 4, kind: input, shape index: {}]
  %s5 = inlined_call_operand.vmem [shape: f32[8,2,1,64], index: 5, kind: output, shape index: {0}]
  %s6 = inlined_call_operand.vmem [shape: f32[2,1,64], index: 6, kind: output, shape index: {1}]
  %s7 = inlined_call_operand.vmem [shape: f32[2,1,64], index: 7, kind: output, shape index: {2}]
  %8 = xla_tuple %s5, %s6, %s7
  %s9 = sld [smem:[#allocation0]]
  $region147: #{encoder_forward.3} parent=0
    _
  %s11 = ssub.s32 1, %s9
  %s12 = scalar_select 0, %s11, %s9
  $region1: #{encoder_forward.3} parent=0
    #allocation6 [shape = 'u8[16384]{0}', space=vmem, size = 0x4000, scoped, tag = 'input window, operand 0']
    #allocation7 [shape = 'u8[8192]{0}', space=vmem, size = 0x2000, scoped, tag = 'output window, operand 0']
    loop: start=0, step=1, limit=4
    $region2: #{encoder_forward.3} parent=1 // loop_pre_header
      _
    $region3: #{encoder_forward.3} parent=1 // loop_header
      %s14 = sphi 0, %s18
      %p15 = scmp.ge.s32.totalorder %s14, 4
      %s24 = sphi 0, %s26
      %s27 = sphi 0, %s24
      %s28 = sphi 0, %s27
      %s44 = sphi 0, %s28
      %s50 = sphi 0, %s52
      %s53 = sphi 0, %s50
      %s54 = sphi 0, %s53
      %s70 = sphi 0, %s54
      %s74 = sphi 0, %s74
      %s76 = sphi 0, %s74
      %s77 = sphi 0, %s76
      %s91 = sphi 0, %s77
      %s95 = sphi 0, %s95
      %s97 = sphi 0, %s95
      %s98 = sphi 0, %s97
      %s112 = sphi 0, %s98
      %s116 = sphi 0, %s116
      %s118 = sphi 0, %s116
      %s119 = sphi 0, %s118
      %s133 = sphi 0, %s119
      %s139 = sphi 0, %s141
      %s142 = sphi 0, %s139
      %s143 = sphi 0, %s142
      %s159 = sphi 0, %s143
      %s165 = sphi 0, %s167
      %s168 = sphi 0, %s165
      %s169 = sphi 0, %s168
      %s185 = sphi 0, %s169
      %s191 = sphi 0, %s193
      %s194 = sphi 0, %s191
      %s195 = sphi 0, %s194
      %s211 = sphi 0, %s195
    $region4: #{encoder_forward.3} parent=1 // loop_header_branch
      %17 = sbr.rel (%p15) target = $region8
    $region5: #{encoder_forward.3} parent=1 // loop_body
      %s19 = ssub.s32 %s14, 1
      %s20 = ssub.s32 %s14, 2
      %s21 = sadd.s32 %s14, 1
      %s22 = ssub.s32 %s14, %s21
      %p23 = scmp.eq.s32.totalorder %s22, 0
      %s25 = sadd.s32 %s24, 1
      %s26 = scalar_select %p23, %s24, %s25
      %p29 = pneg %p23
      %p30 = scmp.eq.s32.totalorder %s14, 1
      %p31 = por %p29, %p30
      %p32 = scmp.ne.s32.totalorder %s24, %s27
      %p33 = scmp.eq.s32.totalorder %s14, 0
      %p34 = por %p32, %p33
      %p35 = scmp.ne.s32.totalorder %s24, %s27
      %p36 = scmp.eq.s32.totalorder %s19, 1
      %p37 = por %p35, %p36
      %p38 = scmp.ne.s32.totalorder %s27, %s28
      %p39 = scmp.eq.s32.totalorder %s19, 0
      %p40 = por %p38, %p39
      %p41 = scmp.ne.s32.totalorder %s27, %s28
      %p42 = scmp.eq.s32.totalorder %s20, 1
      %p43 = por %p41, %p42
      %p45 = scmp.ne.s32.totalorder %s28, %s44
      %p46 = scmp.eq.s32.totalorder %s20, 0
      %p47 = por %p45, %p46
      %s48 = ssub.s32 %s14, %s21
      %p49 = scmp.eq.s32.totalorder %s48, 0
      %s51 = sadd.s32 %s50, 1
      %s52 = scalar_select %p49, %s50, %s51
      %p55 = pneg %p49
      %p56 = scmp.eq.s32.totalorder %s14, 1
      %p57 = por %p55, %p56
      %p58 = scmp.ne.s32.totalorder %s50, %s53
      %p59 = scmp.eq.s32.totalorder %s14, 0
      %p60 = por %p58, %p59
      %p61 = scmp.ne.s32.totalorder %s50, %s53
      %p62 = scmp.eq.s32.totalorder %s19, 1
      %p63 = por %p61, %p62
      %p64 = scmp.ne.s32.totalorder %s53, %s54
      %p65 = scmp.eq.s32.totalorder %s19, 0
      %p66 = por %p64, %p65
      %p67 = scmp.ne.s32.totalorder %s53, %s54
      %p68 = scmp.eq.s32.totalorder %s20, 1
      %p69 = por %p67, %p68
      %p71 = scmp.ne.s32.totalorder %s54, %s70
      %p72 = scmp.eq.s32.totalorder %s20, 0
      %p73 = por %p71, %p72
      %s75 = sadd.s32 %s74, 1
      %p78 = scmp.eq.s32.totalorder %s14, 1
      %p79 = scmp.ne.s32.totalorder %s74, %s76
      %p80 = scmp.eq.s32.totalorder %s14, 0
      %p81 = por %p79, %p80
      %p82 = scmp.ne.s32.totalorder %s74, %s76
      %p83 = scmp.eq.s32.totalorder %s19, 1
      %p84 = por %p82, %p83
      %p85 = scmp.ne.s32.totalorder %s76, %s77
      %p86 = scmp.eq.s32.totalorder %s19, 0
      %p87 = por %p85, %p86
      %p88 = scmp.ne.s32.totalorder %s76, %s77
      %p89 = scmp.eq.s32.totalorder %s20, 1
      %p90 = por %p88, %p89
      %p92 = scmp.ne.s32.totalorder %s77, %s91
      %p93 = scmp.eq.s32.totalorder %s20, 0
      %p94 = por %p92, %p93
      %s96 = sadd.s32 %s95, 1
      %p99 = scmp.eq.s32.totalorder %s14, 1
      %p100 = scmp.ne.s32.totalorder %s95, %s97
      %p101 = scmp.eq.s32.totalorder %s14, 0
      %p102 = por %p100, %p101
      %p103 = scmp.ne.s32.totalorder %s95, %s97
      %p104 = scmp.eq.s32.totalorder %s19, 1
      %p105 = por %p103, %p104
      %p106 = scmp.ne.s32.totalorder %s97, %s98
      %p107 = scmp.eq.s32.totalorder %s19, 0
      %p108 = por %p106, %p107
      %p109 = scmp.ne.s32.totalorder %s97, %s98
      %p110 = scmp.eq.s32.totalorder %s20, 1
      %p111 = por %p109, %p110
      %p113 = scmp.ne.s32.totalorder %s98, %s112
      %p114 = scmp.eq.s32.totalorder %s20, 0
      %p115 = por %p113, %p114
      %s117 = sadd.s32 %s116, 1
      %p120 = scmp.eq.s32.totalorder %s14, 1
      %p121 = scmp.ne.s32.totalorder %s116, %s118
      %p122 = scmp.eq.s32.totalorder %s14, 0
      %p123 = por %p121, %p122
      %p124 = scmp.ne.s32.totalorder %s116, %s118
      %p125 = scmp.eq.s32.totalorder %s19, 1
      %p126 = por %p124, %p125
      %p127 = scmp.ne.s32.totalorder %s118, %s119
      %p128 = scmp.eq.s32.totalorder %s19, 0
      %p129 = por %p127, %p128
      %p130 = scmp.ne.s32.totalorder %s118, %s119
      %p131 = scmp.eq.s32.totalorder %s20, 1
      %p132 = por %p130, %p131
      %p134 = scmp.ne.s32.totalorder %s119, %s133
      %p135 = scmp.eq.s32.totalorder %s20, 0
      %p136 = por %p134, %p135
      %s137 = ssub.s32 %s14, %s21
      %p138 = scmp.eq.s32.totalorder %s137, 0
      %s140 = sadd.s32 %s139, 1
      %s141 = scalar_select %p138, %s139, %s140
      %p144 = pneg %p138
      %p145 = scmp.eq.s32.totalorder %s14, 1
      %p146 = por %p144, %p145
      %p147 = scmp.ne.s32.totalorder %s139, %s142
      %p148 = scmp.eq.s32.totalorder %s14, 0
      %p149 = por %p147, %p148
      %p150 = scmp.ne.s32.totalorder %s139, %s142
      %p151 = scmp.eq.s32.totalorder %s19, 1
      %p152 = por %p150, %p151
      %p153 = scmp.ne.s32.totalorder %s142, %s143
      %p154 = scmp.eq.s32.totalorder %s19, 0
      %p155 = por %p153, %p154
      %p156 = scmp.ne.s32.totalorder %s142, %s143
      %p157 = scmp.eq.s32.totalorder %s20, 1
      %p158 = por %p156, %p157
      %p160 = scmp.ne.s32.totalorder %s143, %s159
      %p161 = scmp.eq.s32.totalorder %s20, 0
      %p162 = por %p160, %p161
      %s163 = ssub.s32 %s14, %s21
      %p164 = scmp.eq.s32.totalorder %s163, 0
      %s166 = sadd.s32 %s165, 1
      %s167 = scalar_select %p164, %s165, %s166
      %p170 = pneg %p164
      %p171 = scmp.eq.s32.totalorder %s14, 1
      %p172 = por %p170, %p171
      %p173 = scmp.ne.s32.totalorder %s165, %s168
      %p174 = scmp.eq.s32.totalorder %s14, 0
      %p175 = por %p173, %p174
      %p176 = scmp.ne.s32.totalorder %s165, %s168
      %p177 = scmp.eq.s32.totalorder %s19, 1
      %p178 = por %p176, %p177
      %p179 = scmp.ne.s32.totalorder %s168, %s169
      %p180 = scmp.eq.s32.totalorder %s19, 0
      %p181 = por %p179, %p180
      %p182 = scmp.ne.s32.totalorder %s168, %s169
      %p183 = scmp.eq.s32.totalorder %s20, 1
      %p184 = por %p182, %p183
      %p186 = scmp.ne.s32.totalorder %s169, %s185
      %p187 = scmp.eq.s32.totalorder %s20, 0
      %p188 = por %p186, %p187
      %s189 = ssub.s32 %s14, %s21
      %p190 = scmp.eq.s32.totalorder %s189, 0
      %s192 = sadd.s32 %s191, 1
      %s193 = scalar_select %p190, %s191, %s192
      %p196 = pneg %p190
      %p197 = scmp.eq.s32.totalorder %s14, 1
      %p198 = por %p196, %p197
      %p199 = scmp.ne.s32.totalorder %s191, %s194
      %p200 = scmp.eq.s32.totalorder %s14, 0
      %p201 = por %p199, %p200
      %p202 = scmp.ne.s32.totalorder %s191, %s194
      %p203 = scmp.eq.s32.totalorder %s19, 1
      %p204 = por %p202, %p203
      %p205 = scmp.ne.s32.totalorder %s194, %s195
      %p206 = scmp.eq.s32.totalorder %s19, 0
      %p207 = por %p205, %p206
      %p208 = scmp.ne.s32.totalorder %s194, %s195
      %p209 = scmp.eq.s32.totalorder %s20, 1
      %p210 = por %p208, %p209
      %p212 = scmp.ne.s32.totalorder %s195, %s211
      %p213 = scmp.eq.s32.totalorder %s20, 0
      %p214 = por %p212, %p213
      %p215 = scmp.le.s32.totalorder 1, %s14
      %p216 = scmp.lt.s32.totalorder %s14, 3
      %p217 = pnand %p215, %p216
      %p218 = pneg %p217
      // Predicated region
      $region9: #{encoder_forward.3} parent=5 // pred_check
        _
      $region10: #{encoder_forward.3} parent=5 // pred_check_branch
        %220 = sbr.rel (%p217) target = $region12
      $region11: #{encoder_forward.3} parent=5 // pred_region
        %s221 = ssub.s32 %s14, 1
        // Predicated region
        $region13: #{encoder_forward.3} parent=11 // pred_check
          %p222 = pneg %p87
        $region14: #{encoder_forward.3} parent=11 // pred_check_branch
          %224 = sbr.rel (%p222) target = $region16
        $region15: #{encoder_forward.3} parent=11 // pred_region
          _
        $region16: #{encoder_forward.3} parent=11 // pred_fallthru
          _
        // Predicated region
        $region17: #{encoder_forward.3} parent=11 // pred_check
          %p225 = pneg %p108
        $region18: #{encoder_forward.3} parent=11 // pred_check_branch
          %227 = sbr.rel (%p225) target = $region20
        $region19: #{encoder_forward.3} parent=11 // pred_region
          _
        $region20: #{encoder_forward.3} parent=11 // pred_fallthru
          _
        // Predicated region
        $region21: #{encoder_forward.3} parent=11 // pred_check
          %p228 = pneg %p129
        $region22: #{encoder_forward.3} parent=11 // pred_check_branch
          %230 = sbr.rel (%p228) target = $region24
        $region23: #{encoder_forward.3} parent=11 // pred_region
          _
        $region24: #{encoder_forward.3} parent=11 // pred_fallthru
          _
      $region12: #{encoder_forward.3} parent=5 // pred_fallthru
        _
      %p231 = scmp.lt.s32.totalorder %s14, 2
      // Predicated region
      $region25: #{encoder_forward.3} parent=5 // pred_check
        %p232 = pneg %p231
      $region26: #{encoder_forward.3} parent=5 // pred_check_branch
        %234 = sbr.rel (%p232) target = $region28
      $region27: #{encoder_forward.3} parent=5 // pred_region
        // Predicated region
        $region29: #{encoder_forward.3} parent=27 // pred_check
          %p235 = pneg %p34
        $region30: #{encoder_forward.3} parent=27 // pred_check_branch
          %237 = sbr.rel (%p235) target = $region32
        $region31: #{encoder_forward.3} parent=27 // pred_region
          %s238 = sand.u32 %s24, 1
          %s239 = sand.u32 %s24, 1
          %s240 = smul.addr %s239, 16
          %s241 = scalar_lea.vmem [#allocation6], %s240
          %s242 = smul.addr %s14, 2
          %s243 = scalar_lea.vmem %s0, %s242
          // Predicated region
          $region33: #{encoder_forward.3} parent=31 // pred_check
            _
          $region34: #{encoder_forward.3} parent=31 // pred_check_branch
            %245 = sbr.rel (0) target = $region36
          $region35: #{encoder_forward.3} parent=31 // pred_region
            // Predicated region
            $region37: #{encoder_forward.3} parent=35 // pred_check
              _
            $region38: #{encoder_forward.3} parent=35 // pred_check_branch
              %247 = sbr.rel target = $region40
            $region39: #{encoder_forward.3} parent=35 // pred_region
              // Predicated region
              $region52: #{encoder_forward.3} parent=39 // pred_check
                _
              $region53: #{encoder_forward.3} parent=39 // pred_check_branch
                %277 = sbr.rel (0) target = $region55
              $region54: #{encoder_forward.3} parent=39 // pred_region
                loop: start=0, step=1, limit=1
                $region56: #{encoder_forward.3} parent=54 // loop_pre_header
                  _
                $region57: #{encoder_forward.3} parent=54 // loop_header
                  %s279 = sphi 0, %s283
                  %p280 = scmp.ge.s32.totalorder %s279, 1
                  %s284 = sphi %s243, %s243
                  %s285 = sphi %s241, %s241
                $region58: #{encoder_forward.3} parent=54 // loop_header_branch
                  %282 = sbr.rel (%p280) target = $region62
                $region59: #{encoder_forward.3} parent=54 // loop_body
                  _
                $region60: #{encoder_forward.3} parent=54 // loop_footer
                  %s283 = sadd.s32 1, %s279
                $region61: #{encoder_forward.3} parent=54 // loop_footer_branch
                  %278 = sbr.rel target = $region57
                $region62: #{encoder_forward.3} parent=54 // loop_exit
                  _
                %s287 = ssub.s32 4, 1
                loop: start=0, step=1, limit=1
                $region63: #{encoder_forward.3} parent=54 // loop_pre_header
                  _
                $region64: #{encoder_forward.3} parent=54 // loop_header
                  %s289 = sphi 0, %s293
                  %p290 = scmp.ge.s32.totalorder %s289, 1
                  %s294 = sphi %s243, %s243
                  %s295 = sphi %s241, %s241
                $region65: #{encoder_forward.3} parent=54 // loop_header_branch
                  %292 = sbr.rel (%p290) target = $region69
                $region66: #{encoder_forward.3} parent=54 // loop_body
                  %v296 = vld [vmem:[%s294] sm:%s287]
                  %297 = vst [vmem:[%s295] sm:%s287] %v296
                  %v298 = vld [vmem:[%s294 + $0x4] sm:%s287]
                  %299 = vst [vmem:[%s295 + $0x2] sm:%s287] %v298
                  %v300 = vld [vmem:[%s294 + $0x8] sm:%s287]
                  %301 = vst [vmem:[%s295 + $0x4] sm:%s287] %v300
                  %v302 = vld [vmem:[%s294 + $0xc] sm:%s287]
                  %303 = vst [vmem:[%s295 + $0x6] sm:%s287] %v302
                  %v304 = vld [vmem:[%s294 + $0x10] sm:%s287]
                  %305 = vst [vmem:[%s295 + $0x8] sm:%s287] %v304
                  %v306 = vld [vmem:[%s294 + $0x14] sm:%s287]
                  %307 = vst [vmem:[%s295 + $0xa] sm:%s287] %v306
                  %v308 = vld [vmem:[%s294 + $0x18] sm:%s287]
                  %309 = vst [vmem:[%s295 + $0xc] sm:%s287] %v308
                  %v310 = vld [vmem:[%s294 + $0x1c] sm:%s287]
                  %311 = vst [vmem:[%s295 + $0xe] sm:%s287] %v310
                $region67: #{encoder_forward.3} parent=54 // loop_footer
                  %s293 = sadd.s32 1, %s289
                $region68: #{encoder_forward.3} parent=54 // loop_footer_branch
                  %288 = sbr.rel target = $region64
                $region69: #{encoder_forward.3} parent=54 // loop_exit
                  _
              $region55: #{encoder_forward.3} parent=39 // pred_fallthru
                _
            $region40: #{encoder_forward.3} parent=35 // pred_fallthru
              _
            // Predicated region
            $region41: #{encoder_forward.3} parent=35 // pred_check
              _
            $region42: #{encoder_forward.3} parent=35 // pred_check_branch
              %249 = sbr.rel (0) target = $region44
            $region43: #{encoder_forward.3} parent=35 // pred_region
              %s251 = ssub.s32 4, 1
              loop: start=0, step=1, limit=1
              $region45: #{encoder_forward.3} parent=43 // loop_pre_header
                _
              $region46: #{encoder_forward.3} parent=43 // loop_header
                %s253 = sphi 0, %s257
                %p254 = scmp.ge.s32.totalorder %s253, 1
                %s258 = sphi %s243, %s243
                %s259 = sphi %s241, %s241
              $region47: #{encoder_forward.3} parent=43 // loop_header_branch
                %256 = sbr.rel (%p254) target = $region51
              $region48: #{encoder_forward.3} parent=43 // loop_body
                %v260 = vld [vmem:[%s258] sm:%s251]
                %261 = vst [vmem:[%s259] sm:%s251] %v260
                %v262 = vld [vmem:[%s258 + $0x4] sm:%s251]
                %263 = vst [vmem:[%s259 + $0x2] sm:%s251] %v262
                %v264 = vld [vmem:[%s258 + $0x8] sm:%s251]
                %265 = vst [vmem:[%s259 + $0x4] sm:%s251] %v264
                %v266 = vld [vmem:[%s258 + $0xc] sm:%s251]
                %267 = vst [vmem:[%s259 + $0x6] sm:%s251] %v266
                %v268 = vld [vmem:[%s258 + $0x10] sm:%s251]
                %269 = vst [vmem:[%s259 + $0x8] sm:%s251] %v268
                %v270 = vld [vmem:[%s258 + $0x14] sm:%s251]
                %271 = vst [vmem:[%s259 + $0xa] sm:%s251] %v270
                %v272 = vld [vmem:[%s258 + $0x18] sm:%s251]
                %273 = vst [vmem:[%s259 + $0xc] sm:%s251] %v272
                %v274 = vld [vmem:[%s258 + $0x1c] sm:%s251]
                %275 = vst [vmem:[%s259 + $0xe] sm:%s251] %v274
              $region49: #{encoder_forward.3} parent=43 // loop_footer
                %s257 = sadd.s32 1, %s253
              $region50: #{encoder_forward.3} parent=43 // loop_footer_branch
                %252 = sbr.rel target = $region46
              $region51: #{encoder_forward.3} parent=43 // loop_exit
                _
            $region44: #{encoder_forward.3} parent=35 // pred_fallthru
              _
          $region36: #{encoder_forward.3} parent=31 // pred_fallthru
            _
          %312 = vnop
        $region32: #{encoder_forward.3} parent=27 // pred_fallthru
          _
        // Predicated region
        $region70: #{encoder_forward.3} parent=27 // pred_check
          %p313 = pneg %p60
        $region71: #{encoder_forward.3} parent=27 // pred_check_branch
          %315 = sbr.rel (%p313) target = $region73
        $region72: #{encoder_forward.3} parent=27 // pred_region
          %p316 = scmp.lt.s32.totalorder %s14, 1
          %s317 = scalar_select %p316, %s14, 1
          %s318 = scalar_lea.vmem %s1, %s317
        $region73: #{encoder_forward.3} parent=27 // pred_fallthru
          _
      $region28: #{encoder_forward.3} parent=5 // pred_fallthru
        _
      %p319 = scmp.le.s32.totalorder 1, %s14
      %p320 = scmp.lt.s32.totalorder %s14, 3
      %p321 = pnand %p319, %p320
      %p322 = pneg %p321
      // Predicated region
      $region74: #{encoder_forward.3} parent=5 // pred_check
        _
      $region75: #{encoder_forward.3} parent=5 // pred_check_branch
        %324 = sbr.rel (%p321) target = $region77
      $region76: #{encoder_forward.3} parent=5 // pred_region
        %s325 = ssub.s32 %s14, 1
        %s326 = sand.u32 %s27, 1
        %s327 = sand.u32 %s27, 1
        %s328 = smul.addr %s327, 16
        %s329 = scalar_lea.vmem [#allocation6], %s328
        // Predicated region
        $region78: #{encoder_forward.3} parent=76 // pred_check
          %p330 = pneg %p40
        $region79: #{encoder_forward.3} parent=76 // pred_check_branch
          %332 = sbr.rel (%p330) target = $region81
        $region80: #{encoder_forward.3} parent=76 // pred_region
          _
        $region81: #{encoder_forward.3} parent=76 // pred_fallthru
          _
        %s333 = sand.u32 %s27, 1
        %s334 = sand.u32 %s27, 1
        %s335 = smul.addr %s334, 16
        %s336 = scalar_lea.vmem [#allocation6], %s335
        %p337 = pneg %p40
        %p338 = pneg %p37
        %p339 = scmp.lt.s32.totalorder %s19, 1
        %s340 = scalar_select %p339, %s19, 1
        %s341 = scalar_lea.vmem %s1, %s340
        %p342 = pneg %p66
        %p343 = pneg %p63
        %p344 = pneg %p87
        %p345 = pneg %p84
        %p346 = pneg %p108
        %p347 = pneg %p105
        %p348 = pneg %p129
        %p349 = pneg %p126
        %p350 = pneg %p155
        %p351 = pneg %p152
        %s352 = sand.u32 %s142, 1
        %s353 = sand.u32 %s142, 1
        %s354 = smul.addr %s353, 8
        %s355 = scalar_lea.vmem [#allocation7], %s354
        %p356 = pneg %p181
        %p357 = pneg %p178
        %p358 = scmp.lt.s32.totalorder %s19, 1
        %s359 = scalar_select %p358, %s19, 1
        %s360 = scalar_lea.vmem %s6, %s359
        %p361 = pneg %p207
        %p362 = pneg %p204
        %p363 = scmp.lt.s32.totalorder %s19, 1
        %s364 = scalar_select %p363, %s19, 1
        %s365 = scalar_lea.vmem %s7, %s364
        %p366 = scmp.lt.s32.totalorder %s19, 1
        %s367 = scalar_select %p366, %s19, 1
        %s368 = scalar_lea.vmem %s1, %s367
        %p369 = scmp.lt.s32.totalorder %s19, 1
        %s370 = scalar_select %p369, %s19, 1
        %s371 = scalar_lea.vmem %s6, %s370
        %p372 = scmp.lt.s32.totalorder %s19, 1
        %s373 = scalar_select %p372, %s19, 1
        %s374 = scalar_lea.vmem %s7, %s373
        %vm376 = vcmask 253952
        %377 = vst.msk [vmem:[#allocation2] sm:$0x1] %vm376, 0.0
        %378 = vst.msk [vmem:[#allocation3] sm:$0x1] %vm376, 0.0
        %379 = vst.msk [vmem:[#allocation4] sm:$0x1] %vm376, 0.0
        %380 = vst.msk [vmem:[#allocation5] sm:$0x1] %vm376, 0.0
        %v381 = vld [vmem:[%s368] sm:$0x1]
        %v382 = vld [vmem:[%s2] sm:$0x3]
        %v383 = vld [vmem:[%s3] sm:$0xf]
        %v384 = vld [vmem:[%s3 + $0x4] sm:$0xf]
        %v385 = vld [vmem:[%s3 + $0x8] sm:$0xf]
        %v386 = vld [vmem:[%s3 + $0xc] sm:$0xf]
        %v387 = vld [vmem:[%s4] sm:$0xf]
        %v388 = vld [vmem:[%s4 + $0x4] sm:$0xf]
        %v389 = vld [vmem:[%s4 + $0x8] sm:$0xf]
        %v390 = vld [vmem:[%s4 + $0xc] sm:$0xf]
        %v391 = vld [vmem:[%s329] sm:$0x3]
        %v392 = vadd.f32 %v391, %v382
        %v393 = vld [vmem:[#allocation2] sm:$0x1]
        %v394 = vld [vmem:[#allocation3] sm:$0x1]
        %v395 = vld [vmem:[#allocation4] sm:$0x1]
        %v396 = vld [vmem:[#allocation5] sm:$0x1]
        %v397 = vpack.c.bf16 %v393, %v393
        %v402 = vunpack.c.l.b16 %v383
        %v403 = vunpack.c.l.b16 %v384
        %v404 = vunpack.c.l.b16 %v385
        %v405 = vunpack.c.l.b16 %v386
        %v406 = vpack.c.b16 %v403, %v402
        %v407 = vpack.c.b16 %v405, %v404
        %vm410 = vcmask 261120
        %v412 = vsel %vm410, %v397, 0
        %414 = vmatpush.bf16.msra.mxu0 0
        %415 = vmatpush.bf16.msra.mxu0 0
        %416 = vmatpush.bf16.msra.mxu0 0
        %417 = vmatpush.bf16.msra.mxu0 0
        %418 = vmatpush.bf16.msra.mxu0 0
        %419 = vmatpush.bf16.msra.mxu0 0
        %420 = vmatpush.bf16.msra.mxu0 %v407
        %421 = vmatpush.bf16.msra.mxu0 %v406
        %422 = vmatmul.bf16.gmra.mxu0 %v412
        %v423 = vpop.f32.mrf.mxu0
        %v424 = vadd.f32 0.0, %v423
        %v425 = vpop.f32.mrf.mxu0
        %426 = vdwg.mxu0
        %v427 = vadd.f32 %v392, %v424
        %v428 = vpack.c.bf16 %v395, %v395
        %v433 = vunpack.c.l.b16 %v387
        %v434 = vunpack.c.l.b16 %v388
        %v435 = vunpack.c.l.b16 %v389
        %v436 = vunpack.c.l.b16 %v390
        %v437 = vpack.c.b16 %v434, %v433
        %v438 = vpack.c.b16 %v436, %v435
        %v442 = vsel %vm410, %v428, 0
        %444 = vmatpush.bf16.msra.mxu0 0
        %445 = vmatpush.bf16.msra.mxu0 0
        %446 = vmatpush.bf16.msra.mxu0 0
        %447 = vmatpush.bf16.msra.mxu0 0
        %448 = vmatpush.bf16.msra.mxu0 0
        %449 = vmatpush.bf16.msra.mxu0 0
        %450 = vmatpush.bf16.msra.mxu0 %v438
        %451 = vmatpush.bf16.msra.mxu0 %v437
        %452 = vmatmul.bf16.gmra.mxu0 %v442
        %v453 = vpop.f32.mrf.mxu0
        %v454 = vadd.f32 0.0, %v453
        %v455 = vpop.f32.mrf.mxu0
        %456 = vdwg.mxu0
        %v458 = vrot.slane %v392, 1
        %v460 = vadd.f32 %v458, %v454
        %v461 = vxor.u32 %v427, 2147483648
        %v462 = vmul.f32 %v461, 1.442695
        %v463 = vpow.pop %v462
        %v464 = vadd.f32 %v463, 1.0
        %v465 = vrcp.pop %v464
        %v466 = vmul.f32 %v464, %v465
        %v467 = vsub.f32 1.0, %v466
        %v468 = vmul.f32 %v465, %v467
        %v469 = vadd.f32 %v465, %v468
        %vm470 = vweird.f32 %v464
        %vm471 = vweird.f32 %v465
        %vm472 = vmor %vm470, %vm471
        %v473 = vsel %vm472, %v465, %v469
        %v474 = vand.u32 2147483647, %v464
        %vm475 = vcmp.eq.f32.partialorder %v474, 8.507059e+37
        %v476 = vand.u32 %v464, 2147483648
        %v477 = vor.u32 1.1754944e-38, %v476
        %v478 = vsel %vm475, %v477, %v473
        %v479 = vmul.f32 1.0, %v478
        %v480 = vtanh.pop %v427
        %482 = vrot.lane.b32.xlu0 %v394, 32
        %v483 = vpop.permute.xlu0 %482
        %v485 = vmul.f32 %v479, %v483
        %487 = vrot.lane.b32.xlu0 %v480, 64
        %v488 = vpop.permute.xlu0 %487
        %v490 = vmul.f32 %v479, %v488
        %492 = vrot.lane.b32.xlu0 %v490, 32
        %v493 = vpop.permute.xlu0 %492
        %v495 = vadd.f32 %v485, %v493
        %v496 = vtanh.pop %v495
        %498 = vrot.lane.b32.xlu0 %v496, 64
        %v499 = vpop.permute.xlu0 %498
        %v501 = vmul.f32 %v479, %v499
        %v502 = vxor.u32 %v460, 2147483648
        %v503 = vmul.f32 %v502, 1.442695
        %v504 = vpow.pop %v503
        %v505 = vadd.f32 %v504, 1.0
        %v506 = vrcp.pop %v505
        %v507 = vmul.f32 %v505, %v506
        %v508 = vsub.f32 1.0, %v507
        %v509 = vmul.f32 %v506, %v508
        %v510 = vadd.f32 %v506, %v509
        %vm511 = vweird.f32 %v505
        %vm512 = vweird.f32 %v506
        %vm513 = vmor %vm511, %vm512
        %v514 = vsel %vm513, %v506, %v510
        %v515 = vand.u32 2147483647, %v505
        %vm516 = vcmp.eq.f32.partialorder %v515, 8.507059e+37
        %v517 = vand.u32 %v505, 2147483648
        %v518 = vor.u32 1.1754944e-38, %v517
        %v519 = vsel %vm516, %v518, %v514
        %v520 = vmul.f32 1.0, %v519
        %v521 = vtanh.pop %v460
        %523 = vrot.lane.b32.xlu0 %v396, 32
        %v524 = vpop.permute.xlu0 %523
        %v526 = vmul.f32 %v520, %v524
        %528 = vrot.lane.b32.xlu0 %v521, 64
        %v529 = vpop.permute.xlu0 %528
        %v531 = vmul.f32 %v520, %v529
        %533 = vrot.lane.b32.xlu0 %v531, 32
        %v534 = vpop.permute.xlu0 %533
        %v536 = vadd.f32 %v526, %v534
        %v537 = vtanh.pop %v536
        %539 = vrot.lane.b32.xlu0 %v537, 64
        %v540 = vpop.permute.xlu0 %539
        %v542 = vmul.f32 %v520, %v540
        %vm543 = vcmp.gt.s32.totalorder %v381, 0
        %vm544 = vcmp.gt.s32.totalorder %v381, 7
        %v545 = vsel %vm543, 1, 0
        %546 = vset.pattern.permute.xlu0 0
        %547 = vperm.xlu0 %546, %v545
        %v548 = vpop.permute.xlu0 %547
        %v549 = vperm.slane %v548, 0
        %vm550 = vcmp.eq.s32.totalorder %v549, 1
        %552 = vrot.lane.b32.xlu0 %v393, 96
        %v553 = vpop.permute.xlu0 %552
        %v555 = vsel %vm550, %v501, %v553
        %v557 = vperm.slane %v555, 0
        %558 = vrot.lane.b32.xlu0 %v557, 32
        %v559 = vpop.permute.xlu0 %558
        %561 = vst.msk [vmem:[#allocation2] sm:$0x1] %vm376, %v559
        %v562 = vsel %vm550, %v495, %v483
        %v564 = vperm.slane %v562, 0
        %565 = vrot.lane.b32.xlu0 %v564, 96
        %v566 = vpop.permute.xlu0 %565
        %568 = vst.msk [vmem:[#allocation3] sm:$0x1] %vm376, %v566
        %v569 = vsel %vm544, 1, 0
        %570 = vset.pattern.permute.xlu0 0
        %571 = vperm.xlu0 %570, %v569
        %v572 = vpop.permute.xlu0 %571
        %v573 = vperm.slane %v572, 0
        %vm574 = vcmp.eq.s32.totalorder %v573, 1
        %576 = vrot.lane.b32.xlu0 %v395, 96
        %v577 = vpop.permute.xlu0 %576
        %v579 = vsel %vm574, %v542, %v577
        %v581 = vperm.slane %v579, 0
        %582 = vrot.lane.b32.xlu0 %v581, 32
        %v583 = vpop.permute.xlu0 %582
        %585 = vst.msk [vmem:[#allocation4] sm:$0x1] %vm376, %v583
        %v586 = vsel %vm574, %v536, %v524
        %v588 = vperm.slane %v586, 0
        %589 = vrot.lane.b32.xlu0 %v588, 96
        %v590 = vpop.permute.xlu0 %589
        %592 = vst.msk [vmem:[#allocation5] sm:$0x1] %vm376, %v590
        %v593 = vsel %vm550, %v501, 0.0
        %v595 = vperm.slane %v593, 0
        %596 = vrot.lane.b32.xlu0 %v595, 32
        %v597 = vpop.permute.xlu0 %596
        %599 = vst.msk [vmem:[%s355] sm:$0x1] %vm376, %v597
        %v600 = vsel %vm574, %v542, 0.0
        %v602 = vperm.slane %v600, 0
        %603 = vrot.lane.b32.xlu0 %v602, 64
        %v604 = vpop.permute.xlu0 %603
        %s606 = scalar_lea.vmem %s355, 7 [#allocation7]
        %vm607 = vcmask 516352
        %608 = vst.msk [vmem:[%s606] sm:$0x1] %vm607, %v604
        %s609 = scalar_lea.vmem %s329, 2 [#allocation6]
        %v610 = vld [vmem:[%s609] sm:$0x3]
        %v611 = vadd.f32 %v610, %v382
        %v612 = vld [vmem:[#allocation2] sm:$0x1]
        %v613 = vld [vmem:[#allocation3] sm:$0x1]
        %v614 = vld [vmem:[#allocation4] sm:$0x1]
        %v615 = vld [vmem:[#allocation5] sm:$0x1]
        %v616 = vpack.c.bf16 %v612, %v612
        %v618 = vsel %vm410, %v616, 0
        %620 = vmatpush.bf16.msra.mxu0 0
        %621 = vmatpush.bf16.msra.mxu0 0
        %622 = vmatpush.bf16.msra.mxu0 0
        %623 = vmatpush.bf16.msra.mxu0 0
        %624 = vmatpush.bf16.msra.mxu0 0
        %625 = vmatpush.bf16.msra.mxu0 0
        %626 = vmatpush.bf16.msra.mxu0 %v407
        %627 = vmatpush.bf16.msra.mxu0 %v406
        %628 = vmatmul.bf16.gmra.mxu0 %v618
        %v629 = vpop.f32.mrf.mxu0
        %v630 = vadd.f32 0.0, %v629
        %v631 = vpop.f32.mrf.mxu0
        %632 = vdwg.mxu0
        %v633 = vadd.f32 %v611, %v630
        %v634 = vpack.c.bf16 %v614, %v614
        %v636 = vsel %vm410, %v634, 0
        %638 = vmatpush.bf16.msra.mxu0 0
        %639 = vmatpush.bf16.msra.mxu0 0
        %640 = vmatpush.bf16.msra.mxu0 0
        %641 = vmatpush.bf16.msra.mxu0 0
        %642 = vmatpush.bf16.msra.mxu0 0
        %643 = vmatpush.bf16.msra.mxu0 0
        %644 = vmatpush.bf16.msra.mxu0 %v438
        %645 = vmatpush.bf16.msra.mxu0 %v437
        %646 = vmatmul.bf16.gmra.mxu0 %v636
        %v647 = vpop.f32.mrf.mxu0
        %v648 = vadd.f32 0.0, %v647
        %v649 = vpop.f32.mrf.mxu0
        %650 = vdwg.mxu0
        %v652 = vrot.slane %v611, 1
        %v654 = vadd.f32 %v652, %v648
        %v655 = vxor.u32 %v633, 2147483648
        %v656 = vmul.f32 %v655, 1.442695
        %v657 = vpow.pop %v656
        %v658 = vadd.f32 %v657, 1.0
        %v659 = vrcp.pop %v658
        %v660 = vmul.f32 %v658, %v659
        %v661 = vsub.f32 1.0, %v660
        %v662 = vmul.f32 %v659, %v661
        %v663 = vadd.f32 %v659, %v662
        %vm664 = vweird.f32 %v658
        %vm665 = vweird.f32 %v659
        %vm666 = vmor %vm664, %vm665
        %v667 = vsel %vm666, %v659, %v663
        %v668 = vand.u32 2147483647, %v658
        %vm669 = vcmp.eq.f32.partialorder %v668, 8.507059e+37
        %v670 = vand.u32 %v658, 2147483648
        %v671 = vor.u32 1.1754944e-38, %v670
        %v672 = vsel %vm669, %v671, %v667
        %v673 = vmul.f32 1.0, %v672
        %v674 = vtanh.pop %v633
        %676 = vrot.lane.b32.xlu0 %v613, 32
        %v677 = vpop.permute.xlu0 %676
        %v679 = vmul.f32 %v673, %v677
        %681 = vrot.lane.b32.xlu0 %v674, 64
        %v682 = vpop.permute.xlu0 %681
        %v684 = vmul.f32 %v673, %v682
        %686 = vrot.lane.b32.xlu0 %v684, 32
        %v687 = vpop.permute.xlu0 %686
        %v689 = vadd.f32 %v679, %v687
        %v690 = vtanh.pop %v689
        %692 = vrot.lane.b32.xlu0 %v690, 64
        %v693 = vpop.permute.xlu0 %692
        %v695 = vmul.f32 %v673, %v693
        %v696 = vxor.u32 %v654, 2147483648
        %v697 = vmul.f32 %v696, 1.442695
        %v698 = vpow.pop %v697
        %v699 = vadd.f32 %v698, 1.0
        %v700 = vrcp.pop %v699
        %v701 = vmul.f32 %v699, %v700
        %v702 = vsub.f32 1.0, %v701
        %v703 = vmul.f32 %v700, %v702
        %v704 = vadd.f32 %v700, %v703
        %vm705 = vweird.f32 %v699
        %vm706 = vweird.f32 %v700
        %vm707 = vmor %vm705, %vm706
        %v708 = vsel %vm707, %v700, %v704
        %v709 = vand.u32 2147483647, %v699
        %vm710 = vcmp.eq.f32.partialorder %v709, 8.507059e+37
        %v711 = vand.u32 %v699, 2147483648
        %v712 = vor.u32 1.1754944e-38, %v711
        %v713 = vsel %vm710, %v712, %v708
        %v714 = vmul.f32 1.0, %v713
        %v715 = vtanh.pop %v654
        %717 = vrot.lane.b32.xlu0 %v615, 32
        %v718 = vpop.permute.xlu0 %717
        %v720 = vmul.f32 %v714, %v718
        %722 = vrot.lane.b32.xlu0 %v715, 64
        %v723 = vpop.permute.xlu0 %722
        %v725 = vmul.f32 %v714, %v723
        %727 = vrot.lane.b32.xlu0 %v725, 32
        %v728 = vpop.permute.xlu0 %727
        %v730 = vadd.f32 %v720, %v728
        %v731 = vtanh.pop %v730
        %733 = vrot.lane.b32.xlu0 %v731, 64
        %v734 = vpop.permute.xlu0 %733
        %v736 = vmul.f32 %v714, %v734
        %vm737 = vcmp.gt.s32.totalorder %v381, 1
        %vm738 = vcmp.gt.s32.totalorder %v381, 6
        %v739 = vsel %vm737, 1, 0
        %740 = vset.pattern.permute.xlu0 0
        %741 = vperm.xlu0 %740, %v739
        %v742 = vpop.permute.xlu0 %741
        %v743 = vperm.slane %v742, 0
        %vm744 = vcmp.eq.s32.totalorder %v743, 1
        %746 = vrot.lane.b32.xlu0 %v612, 96
        %v747 = vpop.permute.xlu0 %746
        %v749 = vsel %vm744, %v695, %v747
        %v751 = vperm.slane %v749, 0
        %752 = vrot.lane.b32.xlu0 %v751, 32
        %v753 = vpop.permute.xlu0 %752
        %755 = vst.msk [vmem:[#allocation2] sm:$0x1] %vm376, %v753
        %v756 = vsel %vm744, %v689, %v677
        %v758 = vperm.slane %v756, 0
        %759 = vrot.lane.b32.xlu0 %v758, 96
        %v760 = vpop.permute.xlu0 %759
        %762 = vst.msk [vmem:[#allocation3] sm:$0x1] %vm376, %v760
        %v763 = vsel %vm738, 1, 0
        %764 = vset.pattern.permute.xlu0 0
        %765 = vperm.xlu0 %764, %v763
        %v766 = vpop.permute.xlu0 %765
        %v767 = vperm.slane %v766, 0
        %vm768 = vcmp.eq.s32.totalorder %v767, 1
        %770 = vrot.lane.b32.xlu0 %v614, 96
        %v771 = vpop.permute.xlu0 %770
        %v773 = vsel %vm768, %v736, %v771
        %v775 = vperm.slane %v773, 0
        %776 = vrot.lane.b32.xlu0 %v775, 32
        %v777 = vpop.permute.xlu0 %776
        %779 = vst.msk [vmem:[#allocation4] sm:$0x1] %vm376, %v777
        %v780 = vsel %vm768, %v730, %v718
        %v782 = vperm.slane %v780, 0
        %783 = vrot.lane.b32.xlu0 %v782, 96
        %v784 = vpop.permute.xlu0 %783
        %786 = vst.msk [vmem:[#allocation5] sm:$0x1] %vm376, %v784
        %v787 = vsel %vm744, %v695, 0.0
        %v789 = vperm.slane %v787, 0
        %790 = vrot.lane.b32.xlu0 %v789, 32
        %v791 = vpop.permute.xlu0 %790
        %s793 = scalar_lea.vmem %s355, 1 [#allocation7]
        %794 = vst.msk [vmem:[%s793] sm:$0x1] %vm376, %v791
        %v795 = vsel %vm768, %v736, 0.0
        %v797 = vperm.slane %v795, 0
        %798 = vrot.lane.b32.xlu0 %v797, 64
        %v799 = vpop.permute.xlu0 %798
        %s801 = scalar_lea.vmem %s355, 6 [#allocation7]
        %802 = vst.msk [vmem:[%s801] sm:$0x1] %vm607, %v799
        %s803 = scalar_lea.vmem %s329, 4 [#allocation6]
        %v804 = vld [vmem:[%s803] sm:$0x3]
        %v805 = vadd.f32 %v804, %v382
        %v806 = vld [vmem:[#allocation2] sm:$0x1]
        %v807 = vld [vmem:[#allocation3] sm:$0x1]
        %v808 = vld [vmem:[#allocation4] sm:$0x1]
        %v809 = vld [vmem:[#allocation5] sm:$0x1]
        %v810 = vpack.c.bf16 %v806, %v806
        %v812 = vsel %vm410, %v810, 0
        %814 = vmatpush.bf16.msra.mxu0 0
        %815 = vmatpush.bf16.msra.mxu0 0
        %816 = vmatpush.bf16.msra.mxu0 0
        %817 = vmatpush.bf16.msra.mxu0 0
        %818 = vmatpush.bf16.msra.mxu0 0
        %819 = vmatpush.bf16.msra.mxu0 0
        %820 = vmatpush.bf16.msra.mxu0 %v407
        %821 = vmatpush.bf16.msra.mxu0 %v406
        %822 = vmatmul.bf16.gmra.mxu0 %v812
        %v823 = vpop.f32.mrf.mxu0
        %v824 = vadd.f32 0.0, %v823
        %v825 = vpop.f32.mrf.mxu0
        %826 = vdwg.mxu0
        %v827 = vadd.f32 %v805, %v824
        %v828 = vpack.c.bf16 %v808, %v808
        %v830 = vsel %vm410, %v828, 0
        %832 = vmatpush.bf16.msra.mxu0 0
        %833 = vmatpush.bf16.msra.mxu0 0
        %834 = vmatpush.bf16.msra.mxu0 0
        %835 = vmatpush.bf16.msra.mxu0 0
        %836 = vmatpush.bf16.msra.mxu0 0
        %837 = vmatpush.bf16.msra.mxu0 0
        %838 = vmatpush.bf16.msra.mxu0 %v438
        %839 = vmatpush.bf16.msra.mxu0 %v437
        %840 = vmatmul.bf16.gmra.mxu0 %v830
        %v841 = vpop.f32.mrf.mxu0
        %v842 = vadd.f32 0.0, %v841
        %v843 = vpop.f32.mrf.mxu0
        %844 = vdwg.mxu0
        %v846 = vrot.slane %v805, 1
        %v848 = vadd.f32 %v846, %v842
        %v849 = vxor.u32 %v827, 2147483648
        %v850 = vmul.f32 %v849, 1.442695
        %v851 = vpow.pop %v850
        %v852 = vadd.f32 %v851, 1.0
        %v853 = vrcp.pop %v852
        %v854 = vmul.f32 %v852, %v853
        %v855 = vsub.f32 1.0, %v854
        %v856 = vmul.f32 %v853, %v855
        %v857 = vadd.f32 %v853, %v856
        %vm858 = vweird.f32 %v852
        %vm859 = vweird.f32 %v853
        %vm860 = vmor %vm858, %vm859
        %v861 = vsel %vm860, %v853, %v857
        %v862 = vand.u32 2147483647, %v852
        %vm863 = vcmp.eq.f32.partialorder %v862, 8.507059e+37
        %v864 = vand.u32 %v852, 2147483648
        %v865 = vor.u32 1.1754944e-38, %v864
        %v866 = vsel %vm863, %v865, %v861
        %v867 = vmul.f32 1.0, %v866
        %v868 = vtanh.pop %v827
        %870 = vrot.lane.b32.xlu0 %v807, 32
        %v871 = vpop.permute.xlu0 %870
        %v873 = vmul.f32 %v867, %v871
        %875 = vrot.lane.b32.xlu0 %v868, 64
        %v876 = vpop.permute.xlu0 %875
        %v878 = vmul.f32 %v867, %v876
        %880 = vrot.lane.b32.xlu0 %v878, 32
        %v881 = vpop.permute.xlu0 %880
        %v883 = vadd.f32 %v873, %v881
        %v884 = vtanh.pop %v883
        %886 = vrot.lane.b32.xlu0 %v884, 64
        %v887 = vpop.permute.xlu0 %886
        %v889 = vmul.f32 %v867, %v887
        %v890 = vxor.u32 %v848, 2147483648
        %v891 = vmul.f32 %v890, 1.442695
        %v892 = vpow.pop %v891
        %v893 = vadd.f32 %v892, 1.0
        %v894 = vrcp.pop %v893
        %v895 = vmul.f32 %v893, %v894
        %v896 = vsub.f32 1.0, %v895
        %v897 = vmul.f32 %v894, %v896
        %v898 = vadd.f32 %v894, %v897
        %vm899 = vweird.f32 %v893
        %vm900 = vweird.f32 %v894
        %vm901 = vmor %vm899, %vm900
        %v902 = vsel %vm901, %v894, %v898
        %v903 = vand.u32 2147483647, %v893
        %vm904 = vcmp.eq.f32.partialorder %v903, 8.507059e+37
        %v905 = vand.u32 %v893, 2147483648
        %v906 = vor.u32 1.1754944e-38, %v905
        %v907 = vsel %vm904, %v906, %v902
        %v908 = vmul.f32 1.0, %v907
        %v909 = vtanh.pop %v848
        %911 = vrot.lane.b32.xlu0 %v809, 32
        %v912 = vpop.permute.xlu0 %911
        %v914 = vmul.f32 %v908, %v912
        %916 = vrot.lane.b32.xlu0 %v909, 64
        %v917 = vpop.permute.xlu0 %916
        %v919 = vmul.f32 %v908, %v917
        %921 = vrot.lane.b32.xlu0 %v919, 32
        %v922 = vpop.permute.xlu0 %921
        %v924 = vadd.f32 %v914, %v922
        %v925 = vtanh.pop %v924
        %927 = vrot.lane.b32.xlu0 %v925, 64
        %v928 = vpop.permute.xlu0 %927
        %v930 = vmul.f32 %v908, %v928
        %vm931 = vcmp.gt.s32.totalorder %v381, 2
        %vm932 = vcmp.gt.s32.totalorder %v381, 5
        %v933 = vsel %vm931, 1, 0
        %934 = vset.pattern.permute.xlu0 0
        %935 = vperm.xlu0 %934, %v933
        %v936 = vpop.permute.xlu0 %935
        %v937 = vperm.slane %v936, 0
        %vm938 = vcmp.eq.s32.totalorder %v937, 1
        %940 = vrot.lane.b32.xlu0 %v806, 96
        %v941 = vpop.permute.xlu0 %940
        %v943 = vsel %vm938, %v889, %v941
        %v945 = vperm.slane %v943, 0
        %946 = vrot.lane.b32.xlu0 %v945, 32
        %v947 = vpop.permute.xlu0 %946
        %949 = vst.msk [vmem:[#allocation2] sm:$0x1] %vm376, %v947
        %v950 = vsel %vm938, %v883, %v871
        %v952 = vperm.slane %v950, 0
        %953 = vrot.lane.b32.xlu0 %v952, 96
        %v954 = vpop.permute.xlu0 %953
        %956 = vst.msk [vmem:[#allocation3] sm:$0x1] %vm376, %v954
        %v957 = vsel %vm932, 1, 0
        %958 = vset.pattern.permute.xlu0 0
        %959 = vperm.xlu0 %958, %v957
        %v960 = vpop.permute.xlu0 %959
        %v961 = vperm.slane %v960, 0
        %vm962 = vcmp.eq.s32.totalorder %v961, 1
        %964 = vrot.lane.b32.xlu0 %v808, 96
        %v965 = vpop.permute.xlu0 %964
        %v967 = vsel %vm962, %v930, %v965
        %v969 = vperm.slane %v967, 0
        %970 = vrot.lane.b32.xlu0 %v969, 32
        %v971 = vpop.permute.xlu0 %970
        %973 = vst.msk [vmem:[#allocation4] sm:$0x1] %vm376, %v971
        %v974 = vsel %vm962, %v924, %v912
        %v976 = vperm.slane %v974, 0
        %977 = vrot.lane.b32.xlu0 %v976, 96
        %v978 = vpop.permute.xlu0 %977
        %980 = vst.msk [vmem:[#allocation5] sm:$0x1] %vm376, %v978
        %v981 = vsel %vm938, %v889, 0.0
        %v983 = vperm.slane %v981, 0
        %984 = vrot.lane.b32.xlu0 %v983, 32
        %v985 = vpop.permute.xlu0 %984
        %s987 = scalar_lea.vmem %s355, 2 [#allocation7]
        %988 = vst.msk [vmem:[%s987] sm:$0x1] %vm376, %v985
        %v989 = vsel %vm962, %v930, 0.0
        %v991 = vperm.slane %v989, 0
        %992 = vrot.lane.b32.xlu0 %v991, 64
        %v993 = vpop.permute.xlu0 %992
        %s995 = scalar_lea.vmem %s355, 5 [#allocation7]
        %996 = vst.msk [vmem:[%s995] sm:$0x1] %vm607, %v993
        %s997 = scalar_lea.vmem %s329, 6 [#allocation6]
        %v998 = vld [vmem:[%s997] sm:$0x3]
        %v999 = vadd.f32 %v998, %v382
        %v1000 = vld [vmem:[#allocation2] sm:$0x1]
        %v1001 = vld [vmem:[#allocation3] sm:$0x1]
        %v1002 = vld [vmem:[#allocation4] sm:$0x1]
        %v1003 = vld [vmem:[#allocation5] sm:$0x1]
        %v1004 = vpack.c.bf16 %v1000, %v1000
        %v1006 = vsel %vm410, %v1004, 0
        %1008 = vmatpush.bf16.msra.mxu0 0
        %1009 = vmatpush.bf16.msra.mxu0 0
        %1010 = vmatpush.bf16.msra.mxu0 0
        %1011 = vmatpush.bf16.msra.mxu0 0
        %1012 = vmatpush.bf16.msra.mxu0 0
        %1013 = vmatpush.bf16.msra.mxu0 0
        %1014 = vmatpush.bf16.msra.mxu0 %v407
        %1015 = vmatpush.bf16.msra.mxu0 %v406
        %1016 = vmatmul.bf16.gmra.mxu0 %v1006
        %v1017 = vpop.f32.mrf.mxu0
        %v1018 = vadd.f32 0.0, %v1017
        %v1019 = vpop.f32.mrf.mxu0
        %1020 = vdwg.mxu0
        %v1021 = vadd.f32 %v999, %v1018
        %v1022 = vpack.c.bf16 %v1002, %v1002
        %v1024 = vsel %vm410, %v1022, 0
        %1026 = vmatpush.bf16.msra.mxu0 0
        %1027 = vmatpush.bf16.msra.mxu0 0
        %1028 = vmatpush.bf16.msra.mxu0 0
        %1029 = vmatpush.bf16.msra.mxu0 0
        %1030 = vmatpush.bf16.msra.mxu0 0
        %1031 = vmatpush.bf16.msra.mxu0 0
        %1032 = vmatpush.bf16.msra.mxu0 %v438
        %1033 = vmatpush.bf16.msra.mxu0 %v437
        %1034 = vmatmul.bf16.gmra.mxu0 %v1024
        %v1035 = vpop.f32.mrf.mxu0
        %v1036 = vadd.f32 0.0, %v1035
        %v1037 = vpop.f32.mrf.mxu0
        %1038 = vdwg.mxu0
        %v1040 = vrot.slane %v999, 1
        %v1042 = vadd.f32 %v1040, %v1036
        %v1043 = vxor.u32 %v1021, 2147483648
        %v1044 = vmul.f32 %v1043, 1.442695
        %v1045 = vpow.pop %v1044
        %v1046 = vadd.f32 %v1045, 1.0
        %v1047 = vrcp.pop %v1046
        %v1048 = vmul.f32 %v1046, %v1047
        %v1049 = vsub.f32 1.0, %v1048
        %v1050 = vmul.f32 %v1047, %v1049
        %v1051 = vadd.f32 %v1047, %v1050
        %vm1052 = vweird.f32 %v1046
        %vm1053 = vweird.f32 %v1047
        %vm1054 = vmor %vm1052, %vm1053
        %v1055 = vsel %vm1054, %v1047, %v1051
        %v1056 = vand.u32 2147483647, %v1046
        %vm1057 = vcmp.eq.f32.partialorder %v1056, 8.507059e+37
        %v1058 = vand.u32 %v1046, 2147483648
        %v1059 = vor.u32 1.1754944e-38, %v1058
        %v1060 = vsel %vm1057, %v1059, %v1055
        %v1061 = vmul.f32 1.0, %v1060
        %v1062 = vtanh.pop %v1021
        %1064 = vrot.lane.b32.xlu0 %v1001, 32
        %v1065 = vpop.permute.xlu0 %1064
        %v1067 = vmul.f32 %v1061, %v1065
        %1069 = vrot.lane.b32.xlu0 %v1062, 64
        %v1070 = vpop.permute.xlu0 %1069
        %v1072 = vmul.f32 %v1061, %v1070
        %1074 = vrot.lane.b32.xlu0 %v1072, 32
        %v1075 = vpop.permute.xlu0 %1074
        %v1077 = vadd.f32 %v1067, %v1075
        %v1078 = vtanh.pop %v1077
        %1080 = vrot.lane.b32.xlu0 %v1078, 64
        %v1081 = vpop.permute.xlu0 %1080
        %v1083 = vmul.f32 %v1061, %v1081
        %v1084 = vxor.u32 %v1042, 2147483648
        %v1085 = vmul.f32 %v1084, 1.442695
        %v1086 = vpow.pop %v1085
        %v1087 = vadd.f32 %v1086, 1.0
        %v1088 = vrcp.pop %v1087
        %v1089 = vmul.f32 %v1087, %v1088
        %v1090 = vsub.f32 1.0, %v1089
        %v1091 = vmul.f32 %v1088, %v1090
        %v1092 = vadd.f32 %v1088, %v1091
        %vm1093 = vweird.f32 %v1087
        %vm1094 = vweird.f32 %v1088
        %vm1095 = vmor %vm1093, %vm1094
        %v1096 = vsel %vm1095, %v1088, %v1092
        %v1097 = vand.u32 2147483647, %v1087
        %vm1098 = vcmp.eq.f32.partialorder %v1097, 8.507059e+37
        %v1099 = vand.u32 %v1087, 2147483648
        %v1100 = vor.u32 1.1754944e-38, %v1099
        %v1101 = vsel %vm1098, %v1100, %v1096
        %v1102 = vmul.f32 1.0, %v1101
        %v1103 = vtanh.pop %v1042
        %1105 = vrot.lane.b32.xlu0 %v1003, 32
        %v1106 = vpop.permute.xlu0 %1105
        %v1108 = vmul.f32 %v1102, %v1106
        %1110 = vrot.lane.b32.xlu0 %v1103, 64
        %v1111 = vpop.permute.xlu0 %1110
        %v1113 = vmul.f32 %v1102, %v1111
        %1115 = vrot.lane.b32.xlu0 %v1113, 32
        %v1116 = vpop.permute.xlu0 %1115
        %v1118 = vadd.f32 %v1108, %v1116
        %v1119 = vtanh.pop %v1118
        %1121 = vrot.lane.b32.xlu0 %v1119, 64
        %v1122 = vpop.permute.xlu0 %1121
        %v1124 = vmul.f32 %v1102, %v1122
        %vm1125 = vcmp.gt.s32.totalorder %v381, 3
        %vm1126 = vcmp.gt.s32.totalorder %v381, 4
        %v1127 = vsel %vm1125, 1, 0
        %1128 = vset.pattern.permute.xlu0 0
        %1129 = vperm.xlu0 %1128, %v1127
        %v1130 = vpop.permute.xlu0 %1129
        %v1131 = vperm.slane %v1130, 0
        %vm1132 = vcmp.eq.s32.totalorder %v1131, 1
        %1134 = vrot.lane.b32.xlu0 %v1000, 96
        %v1135 = vpop.permute.xlu0 %1134
        %v1137 = vsel %vm1132, %v1083, %v1135
        %v1139 = vperm.slane %v1137, 0
        %1140 = vrot.lane.b32.xlu0 %v1139, 32
        %v1141 = vpop.permute.xlu0 %1140
        %1143 = vst.msk [vmem:[#allocation2] sm:$0x1] %vm376, %v1141
        %v1144 = vsel %vm1132, %v1077, %v1065
        %v1146 = vperm.slane %v1144, 0
        %1147 = vrot.lane.b32.xlu0 %v1146, 96
        %v1148 = vpop.permute.xlu0 %1147
        %1150 = vst.msk [vmem:[#allocation3] sm:$0x1] %vm376, %v1148
        %v1151 = vsel %vm1126, 1, 0
        %1152 = vset.pattern.permute.xlu0 0
        %1153 = vperm.xlu0 %1152, %v1151
        %v1154 = vpop.permute.xlu0 %1153
        %v1155 = vperm.slane %v1154, 0
        %vm1156 = vcmp.eq.s32.totalorder %v1155, 1
        %1158 = vrot.lane.b32.xlu0 %v1002, 96
        %v1159 = vpop.permute.xlu0 %1158
        %v1161 = vsel %vm1156, %v1124, %v1159
        %v1163 = vperm.slane %v1161, 0
        %1164 = vrot.lane.b32.xlu0 %v1163, 32
        %v1165 = vpop.permute.xlu0 %1164
        %1167 = vst.msk [vmem:[#allocation4] sm:$0x1] %vm376, %v1165
        %v1168 = vsel %vm1156, %v1118, %v1106
        %v1170 = vperm.slane %v1168, 0
        %1171 = vrot.lane.b32.xlu0 %v1170, 96
        %v1172 = vpop.permute.xlu0 %1171
        %1174 = vst.msk [vmem:[#allocation5] sm:$0x1] %vm376, %v1172
        %v1175 = vsel %vm1132, %v1083, 0.0
        %v1177 = vperm.slane %v1175, 0
        %1178 = vrot.lane.b32.xlu0 %v1177, 32
        %v1179 = vpop.permute.xlu0 %1178
        %s1181 = scalar_lea.vmem %s355, 3 [#allocation7]
        %1182 = vst.msk [vmem:[%s1181] sm:$0x1] %vm376, %v1179
        %v1183 = vsel %vm1156, %v1124, 0.0
        %v1185 = vperm.slane %v1183, 0
        %1186 = vrot.lane.b32.xlu0 %v1185, 64
        %v1187 = vpop.permute.xlu0 %1186
        %s1189 = scalar_lea.vmem %s355, 4 [#allocation7]
        %1190 = vst.msk [vmem:[%s1189] sm:$0x1] %vm607, %v1187
        %s1191 = scalar_lea.vmem %s329, 8 [#allocation6]
        %v1192 = vld [vmem:[%s1191] sm:$0x3]
        %v1193 = vadd.f32 %v1192, %v382
        %v1194 = vld [vmem:[#allocation2] sm:$0x1]
        %v1195 = vld [vmem:[#allocation3] sm:$0x1]
        %v1196 = vld [vmem:[#allocation4] sm:$0x1]
        %v1197 = vld [vmem:[#allocation5] sm:$0x1]
        %v1198 = vpack.c.bf16 %v1194, %v1194
        %v1200 = vsel %vm410, %v1198, 0
        %1202 = vmatpush.bf16.msra.mxu0 0
        %1203 = vmatpush.bf16.msra.mxu0 0
        %1204 = vmatpush.bf16.msra.mxu0 0
        %1205 = vmatpush.bf16.msra.mxu0 0
        %1206 = vmatpush.bf16.msra.mxu0 0
        %1207 = vmatpush.bf16.msra.mxu0 0
        %1208 = vmatpush.bf16.msra.mxu0 %v407
        %1209 = vmatpush.bf16.msra.mxu0 %v406
        %1210 = vmatmul.bf16.gmra.mxu0 %v1200
        %v1211 = vpop.f32.mrf.mxu0
        %v1212 = vadd.f32 0.0, %v1211
        %v1213 = vpop.f32.mrf.mxu0
        %1214 = vdwg.mxu0
        %v1215 = vadd.f32 %v1193, %v1212
        %v1216 = vpack.c.bf16 %v1196, %v1196
        %v1218 = vsel %vm410, %v1216, 0
        %1220 = vmatpush.bf16.msra.mxu0 0
        %1221 = vmatpush.bf16.msra.mxu0 0
        %1222 = vmatpush.bf16.msra.mxu0 0
        %1223 = vmatpush.bf16.msra.mxu0 0
        %1224 = vmatpush.bf16.msra.mxu0 0
        %1225 = vmatpush.bf16.msra.mxu0 0
        %1226 = vmatpush.bf16.msra.mxu0 %v438
        %1227 = vmatpush.bf16.msra.mxu0 %v437
        %1228 = vmatmul.bf16.gmra.mxu0 %v1218
        %v1229 = vpop.f32.mrf.mxu0
        %v1230 = vadd.f32 0.0, %v1229
        %v1231 = vpop.f32.mrf.mxu0
        %1232 = vdwg.mxu0
        %v1234 = vrot.slane %v1193, 1
        %v1236 = vadd.f32 %v1234, %v1230
        %v1237 = vxor.u32 %v1215, 2147483648
        %v1238 = vmul.f32 %v1237, 1.442695
        %v1239 = vpow.pop %v1238
        %v1240 = vadd.f32 %v1239, 1.0
        %v1241 = vrcp.pop %v1240
        %v1242 = vmul.f32 %v1240, %v1241
        %v1243 = vsub.f32 1.0, %v1242
        %v1244 = vmul.f32 %v1241, %v1243
        %v1245 = vadd.f32 %v1241, %v1244
        %vm1246 = vweird.f32 %v1240
        %vm1247 = vweird.f32 %v1241
        %vm1248 = vmor %vm1246, %vm1247
        %v1249 = vsel %vm1248, %v1241, %v1245
        %v1250 = vand.u32 2147483647, %v1240
        %vm1251 = vcmp.eq.f32.partialorder %v1250, 8.507059e+37
        %v1252 = vand.u32 %v1240, 2147483648
        %v1253 = vor.u32 1.1754944e-38, %v1252
        %v1254 = vsel %vm1251, %v1253, %v1249
        %v1255 = vmul.f32 1.0, %v1254
        %v1256 = vtanh.pop %v1215
        %1258 = vrot.lane.b32.xlu0 %v1195, 32
        %v1259 = vpop.permute.xlu0 %1258
        %v1261 = vmul.f32 %v1255, %v1259
        %1263 = vrot.lane.b32.xlu0 %v1256, 64
        %v1264 = vpop.permute.xlu0 %1263
        %v1266 = vmul.f32 %v1255, %v1264
        %1268 = vrot.lane.b32.xlu0 %v1266, 32
        %v1269 = vpop.permute.xlu0 %1268
        %v1271 = vadd.f32 %v1261, %v1269
        %v1272 = vtanh.pop %v1271
        %1274 = vrot.lane.b32.xlu0 %v1272, 64
        %v1275 = vpop.permute.xlu0 %1274
        %v1277 = vmul.f32 %v1255, %v1275
        %v1278 = vxor.u32 %v1236, 2147483648
        %v1279 = vmul.f32 %v1278, 1.442695
        %v1280 = vpow.pop %v1279
        %v1281 = vadd.f32 %v1280, 1.0
        %v1282 = vrcp.pop %v1281
        %v1283 = vmul.f32 %v1281, %v1282
        %v1284 = vsub.f32 1.0, %v1283
        %v1285 = vmul.f32 %v1282, %v1284
        %v1286 = vadd.f32 %v1282, %v1285
        %vm1287 = vweird.f32 %v1281
        %vm1288 = vweird.f32 %v1282
        %vm1289 = vmor %vm1287, %vm1288
        %v1290 = vsel %vm1289, %v1282, %v1286
        %v1291 = vand.u32 2147483647, %v1281
        %vm1292 = vcmp.eq.f32.partialorder %v1291, 8.507059e+37
        %v1293 = vand.u32 %v1281, 2147483648
        %v1294 = vor.u32 1.1754944e-38, %v1293
        %v1295 = vsel %vm1292, %v1294, %v1290
        %v1296 = vmul.f32 1.0, %v1295
        %v1297 = vtanh.pop %v1236
        %1299 = vrot.lane.b32.xlu0 %v1197, 32
        %v1300 = vpop.permute.xlu0 %1299
        %v1302 = vmul.f32 %v1296, %v1300
        %1304 = vrot.lane.b32.xlu0 %v1297, 64
        %v1305 = vpop.permute.xlu0 %1304
        %v1307 = vmul.f32 %v1296, %v1305
        %1309 = vrot.lane.b32.xlu0 %v1307, 32
        %v1310 = vpop.permute.xlu0 %1309
        %v1312 = vadd.f32 %v1302, %v1310
        %v1313 = vtanh.pop %v1312
        %1315 = vrot.lane.b32.xlu0 %v1313, 64
        %v1316 = vpop.permute.xlu0 %1315
        %v1318 = vmul.f32 %v1296, %v1316
        %1320 = vrot.lane.b32.xlu0 %v1194, 96
        %v1321 = vpop.permute.xlu0 %1320
        %v1323 = vsel %vm1156, %v1277, %v1321
        %v1325 = vperm.slane %v1323, 0
        %1326 = vrot.lane.b32.xlu0 %v1325, 32
        %v1327 = vpop.permute.xlu0 %1326
        %1329 = vst.msk [vmem:[#allocation2] sm:$0x1] %vm376, %v1327
        %v1330 = vsel %vm1156, %v1271, %v1259
        %v1332 = vperm.slane %v1330, 0
        %1333 = vrot.lane.b32.xlu0 %v1332, 96
        %v1334 = vpop.permute.xlu0 %1333
        %1336 = vst.msk [vmem:[#allocation3] sm:$0x1] %vm376, %v1334
        %1338 = vrot.lane.b32.xlu0 %v1196, 96
        %v1339 = vpop.permute.xlu0 %1338
        %v1341 = vsel %vm1132, %v1318, %v1339
        %v1343 = vperm.slane %v1341, 0
        %1344 = vrot.lane.b32.xlu0 %v1343, 32
        %v1345 = vpop.permute.xlu0 %1344
        %1347 = vst.msk [vmem:[#allocation4] sm:$0x1] %vm376, %v1345
        %v1348 = vsel %vm1132, %v1312, %v1300
        %v1350 = vperm.slane %v1348, 0
        %1351 = vrot.lane.b32.xlu0 %v1350, 96
        %v1352 = vpop.permute.xlu0 %1351
        %1354 = vst.msk [vmem:[#allocation5] sm:$0x1] %vm376, %v1352
        %v1355 = vsel %vm1156, %v1277, 0.0
        %v1357 = vperm.slane %v1355, 0
        %1358 = vrot.lane.b32.xlu0 %v1357, 32
        %v1359 = vpop.permute.xlu0 %1358
        %1361 = vst.msk [vmem:[%s1189] sm:$0x1] %vm376, %v1359
        %v1362 = vsel %vm1132, %v1318, 0.0
        %v1364 = vperm.slane %v1362, 0
        %1365 = vrot.lane.b32.xlu0 %v1364, 64
        %v1366 = vpop.permute.xlu0 %1365
        %1368 = vst.msk [vmem:[%s1181] sm:$0x1] %vm607, %v1366
        %s1369 = scalar_lea.vmem %s329, 10 [#allocation6]
        %v1370 = vld [vmem:[%s1369] sm:$0x3]
        %v1371 = vadd.f32 %v1370, %v382
        %v1372 = vld [vmem:[#allocation2] sm:$0x1]
        %v1373 = vld [vmem:[#allocation3] sm:$0x1]
        %v1374 = vld [vmem:[#allocation4] sm:$0x1]
        %v1375 = vld [vmem:[#allocation5] sm:$0x1]
        %v1376 = vpack.c.bf16 %v1372, %v1372
        %v1378 = vsel %vm410, %v1376, 0
        %1380 = vmatpush.bf16.msra.mxu0 0
        %1381 = vmatpush.bf16.msra.mxu0 0
        %1382 = vmatpush.bf16.msra.mxu0 0
        %1383 = vmatpush.bf16.msra.mxu0 0
        %1384 = vmatpush.bf16.msra.mxu0 0
        %1385 = vmatpush.bf16.msra.mxu0 0
        %1386 = vmatpush.bf16.msra.mxu0 %v407
        %1387 = vmatpush.bf16.msra.mxu0 %v406
        %1388 = vmatmul.bf16.gmra.mxu0 %v1378
        %v1389 = vpop.f32.mrf.mxu0
        %v1390 = vadd.f32 0.0, %v1389
        %v1391 = vpop.f32.mrf.mxu0
        %1392 = vdwg.mxu0
        %v1393 = vadd.f32 %v1371, %v1390
        %v1394 = vpack.c.bf16 %v1374, %v1374
        %v1396 = vsel %vm410, %v1394, 0
        %1398 = vmatpush.bf16.msra.mxu0 0
        %1399 = vmatpush.bf16.msra.mxu0 0
        %1400 = vmatpush.bf16.msra.mxu0 0
        %1401 = vmatpush.bf16.msra.mxu0 0
        %1402 = vmatpush.bf16.msra.mxu0 0
        %1403 = vmatpush.bf16.msra.mxu0 0
        %1404 = vmatpush.bf16.msra.mxu0 %v438
        %1405 = vmatpush.bf16.msra.mxu0 %v437
        %1406 = vmatmul.bf16.gmra.mxu0 %v1396
        %v1407 = vpop.f32.mrf.mxu0
        %v1408 = vadd.f32 0.0, %v1407
        %v1409 = vpop.f32.mrf.mxu0
        %1410 = vdwg.mxu0
        %v1412 = vrot.slane %v1371, 1
        %v1414 = vadd.f32 %v1412, %v1408
        %v1415 = vxor.u32 %v1393, 2147483648
        %v1416 = vmul.f32 %v1415, 1.442695
        %v1417 = vpow.pop %v1416
        %v1418 = vadd.f32 %v1417, 1.0
        %v1419 = vrcp.pop %v1418
        %v1420 = vmul.f32 %v1418, %v1419
        %v1421 = vsub.f32 1.0, %v1420
        %v1422 = vmul.f32 %v1419, %v1421
        %v1423 = vadd.f32 %v1419, %v1422
        %vm1424 = vweird.f32 %v1418
        %vm1425 = vweird.f32 %v1419
        %vm1426 = vmor %vm1424, %vm1425
        %v1427 = vsel %vm1426, %v1419, %v1423
        %v1428 = vand.u32 2147483647, %v1418
        %vm1429 = vcmp.eq.f32.partialorder %v1428, 8.507059e+37
        %v1430 = vand.u32 %v1418, 2147483648
        %v1431 = vor.u32 1.1754944e-38, %v1430
        %v1432 = vsel %vm1429, %v1431, %v1427
        %v1433 = vmul.f32 1.0, %v1432
        %v1434 = vtanh.pop %v1393
        %1436 = vrot.lane.b32.xlu0 %v1373, 32
        %v1437 = vpop.permute.xlu0 %1436
        %v1439 = vmul.f32 %v1433, %v1437
        %1441 = vrot.lane.b32.xlu0 %v1434, 64
        %v1442 = vpop.permute.xlu0 %1441
        %v1444 = vmul.f32 %v1433, %v1442
        %1446 = vrot.lane.b32.xlu0 %v1444, 32
        %v1447 = vpop.permute.xlu0 %1446
        %v1449 = vadd.f32 %v1439, %v1447
        %v1450 = vtanh.pop %v1449
        %1452 = vrot.lane.b32.xlu0 %v1450, 64
        %v1453 = vpop.permute.xlu0 %1452
        %v1455 = vmul.f32 %v1433, %v1453
        %v1456 = vxor.u32 %v1414, 2147483648
        %v1457 = vmul.f32 %v1456, 1.442695
        %v1458 = vpow.pop %v1457
        %v1459 = vadd.f32 %v1458, 1.0
        %v1460 = vrcp.pop %v1459
        %v1461 = vmul.f32 %v1459, %v1460
        %v1462 = vsub.f32 1.0, %v1461
        %v1463 = vmul.f32 %v1460, %v1462
        %v1464 = vadd.f32 %v1460, %v1463
        %vm1465 = vweird.f32 %v1459
        %vm1466 = vweird.f32 %v1460
        %vm1467 = vmor %vm1465, %vm1466
        %v1468 = vsel %vm1467, %v1460, %v1464
        %v1469 = vand.u32 2147483647, %v1459
        %vm1470 = vcmp.eq.f32.partialorder %v1469, 8.507059e+37
        %v1471 = vand.u32 %v1459, 2147483648
        %v1472 = vor.u32 1.1754944e-38, %v1471
        %v1473 = vsel %vm1470, %v1472, %v1468
        %v1474 = vmul.f32 1.0, %v1473
        %v1475 = vtanh.pop %v1414
        %1477 = vrot.lane.b32.xlu0 %v1375, 32
        %v1478 = vpop.permute.xlu0 %1477
        %v1480 = vmul.f32 %v1474, %v1478
        %1482 = vrot.lane.b32.xlu0 %v1475, 64
        %v1483 = vpop.permute.xlu0 %1482
        %v1485 = vmul.f32 %v1474, %v1483
        %1487 = vrot.lane.b32.xlu0 %v1485, 32
        %v1488 = vpop.permute.xlu0 %1487
        %v1490 = vadd.f32 %v1480, %v1488
        %v1491 = vtanh.pop %v1490
        %1493 = vrot.lane.b32.xlu0 %v1491, 64
        %v1494 = vpop.permute.xlu0 %1493
        %v1496 = vmul.f32 %v1474, %v1494
        %1498 = vrot.lane.b32.xlu0 %v1372, 96
        %v1499 = vpop.permute.xlu0 %1498
        %v1501 = vsel %vm962, %v1455, %v1499
        %v1503 = vperm.slane %v1501, 0
        %1504 = vrot.lane.b32.xlu0 %v1503, 32
        %v1505 = vpop.permute.xlu0 %1504
        %1507 = vst.msk [vmem:[#allocation2] sm:$0x1] %vm376, %v1505
        %v1508 = vsel %vm962, %v1449, %v1437
        %v1510 = vperm.slane %v1508, 0
        %1511 = vrot.lane.b32.xlu0 %v1510, 96
        %v1512 = vpop.permute.xlu0 %1511
        %1514 = vst.msk [vmem:[#allocation3] sm:$0x1] %vm376, %v1512
        %1516 = vrot.lane.b32.xlu0 %v1374, 96
        %v1517 = vpop.permute.xlu0 %1516
        %v1519 = vsel %vm938, %v1496, %v1517
        %v1521 = vperm.slane %v1519, 0
        %1522 = vrot.lane.b32.xlu0 %v1521, 32
        %v1523 = vpop.permute.xlu0 %1522
        %1525 = vst.msk [vmem:[#allocation4] sm:$0x1] %vm376, %v1523
        %v1526 = vsel %vm938, %v1490, %v1478
        %v1528 = vperm.slane %v1526, 0
        %1529 = vrot.lane.b32.xlu0 %v1528, 96
        %v1530 = vpop.permute.xlu0 %1529
        %1532 = vst.msk [vmem:[#allocation5] sm:$0x1] %vm376, %v1530
        %v1533 = vsel %vm962, %v1455, 0.0
        %v1535 = vperm.slane %v1533, 0
        %1536 = vrot.lane.b32.xlu0 %v1535, 32
        %v1537 = vpop.permute.xlu0 %1536
        %1539 = vst.msk [vmem:[%s995] sm:$0x1] %vm376, %v1537
        %v1540 = vsel %vm938, %v1496, 0.0
        %v1542 = vperm.slane %v1540, 0
        %1543 = vrot.lane.b32.xlu0 %v1542, 64
        %v1544 = vpop.permute.xlu0 %1543
        %1546 = vst.msk [vmem:[%s987] sm:$0x1] %vm607, %v1544
        %s1547 = scalar_lea.vmem %s329, 12 [#allocation6]
        %v1548 = vld [vmem:[%s1547] sm:$0x3]
        %v1549 = vadd.f32 %v1548, %v382
        %v1550 = vld [vmem:[#allocation2] sm:$0x1]
        %v1551 = vld [vmem:[#allocation3] sm:$0x1]
        %v1552 = vld [vmem:[#allocation4] sm:$0x1]
        %v1553 = vld [vmem:[#allocation5] sm:$0x1]
        %v1554 = vpack.c.bf16 %v1550, %v1550
        %v1556 = vsel %vm410, %v1554, 0
        %1558 = vmatpush.bf16.msra.mxu0 0
        %1559 = vmatpush.bf16.msra.mxu0 0
        %1560 = vmatpush.bf16.msra.mxu0 0
        %1561 = vmatpush.bf16.msra.mxu0 0
        %1562 = vmatpush.bf16.msra.mxu0 0
        %1563 = vmatpush.bf16.msra.mxu0 0
        %1564 = vmatpush.bf16.msra.mxu0 %v407
        %1565 = vmatpush.bf16.msra.mxu0 %v406
        %1566 = vmatmul.bf16.gmra.mxu0 %v1556
        %v1567 = vpop.f32.mrf.mxu0
        %v1568 = vadd.f32 0.0, %v1567
        %v1569 = vpop.f32.mrf.mxu0
        %1570 = vdwg.mxu0
        %v1571 = vadd.f32 %v1549, %v1568
        %v1572 = vpack.c.bf16 %v1552, %v1552
        %v1574 = vsel %vm410, %v1572, 0
        %1576 = vmatpush.bf16.msra.mxu0 0
        %1577 = vmatpush.bf16.msra.mxu0 0
        %1578 = vmatpush.bf16.msra.mxu0 0
        %1579 = vmatpush.bf16.msra.mxu0 0
        %1580 = vmatpush.bf16.msra.mxu0 0
        %1581 = vmatpush.bf16.msra.mxu0 0
        %1582 = vmatpush.bf16.msra.mxu0 %v438
        %1583 = vmatpush.bf16.msra.mxu0 %v437
        %1584 = vmatmul.bf16.gmra.mxu0 %v1574
        %v1585 = vpop.f32.mrf.mxu0
        %v1586 = vadd.f32 0.0, %v1585
        %v1587 = vpop.f32.mrf.mxu0
        %1588 = vdwg.mxu0
        %v1590 = vrot.slane %v1549, 1
        %v1592 = vadd.f32 %v1590, %v1586
        %v1593 = vxor.u32 %v1571, 2147483648
        %v1594 = vmul.f32 %v1593, 1.442695
        %v1595 = vpow.pop %v1594
        %v1596 = vadd.f32 %v1595, 1.0
        %v1597 = vrcp.pop %v1596
        %v1598 = vmul.f32 %v1596, %v1597
        %v1599 = vsub.f32 1.0, %v1598
        %v1600 = vmul.f32 %v1597, %v1599
        %v1601 = vadd.f32 %v1597, %v1600
        %vm1602 = vweird.f32 %v1596
        %vm1603 = vweird.f32 %v1597
        %vm1604 = vmor %vm1602, %vm1603
        %v1605 = vsel %vm1604, %v1597, %v1601
        %v1606 = vand.u32 2147483647, %v1596
        %vm1607 = vcmp.eq.f32.partialorder %v1606, 8.507059e+37
        %v1608 = vand.u32 %v1596, 2147483648
        %v1609 = vor.u32 1.1754944e-38, %v1608
        %v1610 = vsel %vm1607, %v1609, %v1605
        %v1611 = vmul.f32 1.0, %v1610
        %v1612 = vtanh.pop %v1571
        %1614 = vrot.lane.b32.xlu0 %v1551, 32
        %v1615 = vpop.permute.xlu0 %1614
        %v1617 = vmul.f32 %v1611, %v1615
        %1619 = vrot.lane.b32.xlu0 %v1612, 64
        %v1620 = vpop.permute.xlu0 %1619
        %v1622 = vmul.f32 %v1611, %v1620
        %1624 = vrot.lane.b32.xlu0 %v1622, 32
        %v1625 = vpop.permute.xlu0 %1624
        %v1627 = vadd.f32 %v1617, %v1625
        %v1628 = vtanh.pop %v1627
        %1630 = vrot.lane.b32.xlu0 %v1628, 64
        %v1631 = vpop.permute.xlu0 %1630
        %v1633 = vmul.f32 %v1611, %v1631
        %v1634 = vxor.u32 %v1592, 2147483648
        %v1635 = vmul.f32 %v1634, 1.442695
        %v1636 = vpow.pop %v1635
        %v1637 = vadd.f32 %v1636, 1.0
        %v1638 = vrcp.pop %v1637
        %v1639 = vmul.f32 %v1637, %v1638
        %v1640 = vsub.f32 1.0, %v1639
        %v1641 = vmul.f32 %v1638, %v1640
        %v1642 = vadd.f32 %v1638, %v1641
        %vm1643 = vweird.f32 %v1637
        %vm1644 = vweird.f32 %v1638
        %vm1645 = vmor %vm1643, %vm1644
        %v1646 = vsel %vm1645, %v1638, %v1642
        %v1647 = vand.u32 2147483647, %v1637
        %vm1648 = vcmp.eq.f32.partialorder %v1647, 8.507059e+37
        %v1649 = vand.u32 %v1637, 2147483648
        %v1650 = vor.u32 1.1754944e-38, %v1649
        %v1651 = vsel %vm1648, %v1650, %v1646
        %v1652 = vmul.f32 1.0, %v1651
        %v1653 = vtanh.pop %v1592
        %1655 = vrot.lane.b32.xlu0 %v1553, 32
        %v1656 = vpop.permute.xlu0 %1655
        %v1658 = vmul.f32 %v1652, %v1656
        %1660 = vrot.lane.b32.xlu0 %v1653, 64
        %v1661 = vpop.permute.xlu0 %1660
        %v1663 = vmul.f32 %v1652, %v1661
        %1665 = vrot.lane.b32.xlu0 %v1663, 32
        %v1666 = vpop.permute.xlu0 %1665
        %v1668 = vadd.f32 %v1658, %v1666
        %v1669 = vtanh.pop %v1668
        %1671 = vrot.lane.b32.xlu0 %v1669, 64
        %v1672 = vpop.permute.xlu0 %1671
        %v1674 = vmul.f32 %v1652, %v1672
        %1676 = vrot.lane.b32.xlu0 %v1550, 96
        %v1677 = vpop.permute.xlu0 %1676
        %v1679 = vsel %vm768, %v1633, %v1677
        %v1681 = vperm.slane %v1679, 0
        %1682 = vrot.lane.b32.xlu0 %v1681, 32
        %v1683 = vpop.permute.xlu0 %1682
        %1685 = vst.msk [vmem:[#allocation2] sm:$0x1] %vm376, %v1683
        %v1686 = vsel %vm768, %v1627, %v1615
        %v1688 = vperm.slane %v1686, 0
        %1689 = vrot.lane.b32.xlu0 %v1688, 96
        %v1690 = vpop.permute.xlu0 %1689
        %1692 = vst.msk [vmem:[#allocation3] sm:$0x1] %vm376, %v1690
        %1694 = vrot.lane.b32.xlu0 %v1552, 96
        %v1695 = vpop.permute.xlu0 %1694
        %v1697 = vsel %vm744, %v1674, %v1695
        %v1699 = vperm.slane %v1697, 0
        %1700 = vrot.lane.b32.xlu0 %v1699, 32
        %v1701 = vpop.permute.xlu0 %1700
        %1703 = vst.msk [vmem:[#allocation4] sm:$0x1] %vm376, %v1701
        %v1704 = vsel %vm744, %v1668, %v1656
        %v1706 = vperm.slane %v1704, 0
        %1707 = vrot.lane.b32.xlu0 %v1706, 96
        %v1708 = vpop.permute.xlu0 %1707
        %1710 = vst.msk [vmem:[#allocation5] sm:$0x1] %vm376, %v1708
        %v1711 = vsel %vm768, %v1633, 0.0
        %v1713 = vperm.slane %v1711, 0
        %1714 = vrot.lane.b32.xlu0 %v1713, 32
        %v1715 = vpop.permute.xlu0 %1714
        %1717 = vst.msk [vmem:[%s801] sm:$0x1] %vm376, %v1715
        %v1718 = vsel %vm744, %v1674, 0.0
        %v1720 = vperm.slane %v1718, 0
        %1721 = vrot.lane.b32.xlu0 %v1720, 64
        %v1722 = vpop.permute.xlu0 %1721
        %1724 = vst.msk [vmem:[%s793] sm:$0x1] %vm607, %v1722
        %s1725 = scalar_lea.vmem %s329, 14 [#allocation6]
        %v1726 = vld [vmem:[%s1725] sm:$0x3]
        %v1727 = vadd.f32 %v1726, %v382
        %v1728 = vld [vmem:[#allocation2] sm:$0x1]
        %v1729 = vld [vmem:[#allocation3] sm:$0x1]
        %v1730 = vld [vmem:[#allocation4] sm:$0x1]
        %v1731 = vld [vmem:[#allocation5] sm:$0x1]
        %v1732 = vpack.c.bf16 %v1728, %v1728
        %v1734 = vsel %vm410, %v1732, 0
        %1736 = vmatpush.bf16.msra.mxu0 0
        %1737 = vmatpush.bf16.msra.mxu0 0
        %1738 = vmatpush.bf16.msra.mxu0 0
        %1739 = vmatpush.bf16.msra.mxu0 0
        %1740 = vmatpush.bf16.msra.mxu0 0
        %1741 = vmatpush.bf16.msra.mxu0 0
        %1742 = vmatpush.bf16.msra.mxu0 %v407
        %1743 = vmatpush.bf16.msra.mxu0 %v406
        %1744 = vmatmul.bf16.gmra.mxu0 %v1734
        %v1745 = vpop.f32.mrf.mxu0
        %v1746 = vadd.f32 0.0, %v1745
        %v1747 = vpop.f32.mrf.mxu0
        %1748 = vdwg.mxu0
        %v1749 = vadd.f32 %v1727, %v1746
        %v1750 = vpack.c.bf16 %v1730, %v1730
        %v1752 = vsel %vm410, %v1750, 0
        %1754 = vmatpush.bf16.msra.mxu0 0
        %1755 = vmatpush.bf16.msra.mxu0 0
        %1756 = vmatpush.bf16.msra.mxu0 0
        %1757 = vmatpush.bf16.msra.mxu0 0
        %1758 = vmatpush.bf16.msra.mxu0 0
        %1759 = vmatpush.bf16.msra.mxu0 0
        %1760 = vmatpush.bf16.msra.mxu0 %v438
        %1761 = vmatpush.bf16.msra.mxu0 %v437
        %1762 = vmatmul.bf16.gmra.mxu0 %v1752
        %v1763 = vpop.f32.mrf.mxu0
        %v1764 = vadd.f32 0.0, %v1763
        %v1765 = vpop.f32.mrf.mxu0
        %1766 = vdwg.mxu0
        %v1768 = vrot.slane %v1727, 1
        %v1770 = vadd.f32 %v1768, %v1764
        %v1771 = vxor.u32 %v1749, 2147483648
        %v1772 = vmul.f32 %v1771, 1.442695
        %v1773 = vpow.pop %v1772
        %v1774 = vadd.f32 %v1773, 1.0
        %v1775 = vrcp.pop %v1774
        %v1776 = vmul.f32 %v1774, %v1775
        %v1777 = vsub.f32 1.0, %v1776
        %v1778 = vmul.f32 %v1775, %v1777
        %v1779 = vadd.f32 %v1775, %v1778
        %vm1780 = vweird.f32 %v1774
        %vm1781 = vweird.f32 %v1775
        %vm1782 = vmor %vm1780, %vm1781
        %v1783 = vsel %vm1782, %v1775, %v1779
        %v1784 = vand.u32 2147483647, %v1774
        %vm1785 = vcmp.eq.f32.partialorder %v1784, 8.507059e+37
        %v1786 = vand.u32 %v1774, 2147483648
        %v1787 = vor.u32 1.1754944e-38, %v1786
        %v1788 = vsel %vm1785, %v1787, %v1783
        %v1789 = vmul.f32 1.0, %v1788
        %v1790 = vtanh.pop %v1749
        %1792 = vrot.lane.b32.xlu0 %v1729, 32
        %v1793 = vpop.permute.xlu0 %1792
        %v1795 = vmul.f32 %v1789, %v1793
        %1797 = vrot.lane.b32.xlu0 %v1790, 64
        %v1798 = vpop.permute.xlu0 %1797
        %v1800 = vmul.f32 %v1789, %v1798
        %1802 = vrot.lane.b32.xlu0 %v1800, 32
        %v1803 = vpop.permute.xlu0 %1802
        %v1805 = vadd.f32 %v1795, %v1803
        %v1806 = vtanh.pop %v1805
        %1808 = vrot.lane.b32.xlu0 %v1806, 64
        %v1809 = vpop.permute.xlu0 %1808
        %v1811 = vmul.f32 %v1789, %v1809
        %v1812 = vxor.u32 %v1770, 2147483648
        %v1813 = vmul.f32 %v1812, 1.442695
        %v1814 = vpow.pop %v1813
        %v1815 = vadd.f32 %v1814, 1.0
        %v1816 = vrcp.pop %v1815
        %v1817 = vmul.f32 %v1815, %v1816
        %v1818 = vsub.f32 1.0, %v1817
        %v1819 = vmul.f32 %v1816, %v1818
        %v1820 = vadd.f32 %v1816, %v1819
        %vm1821 = vweird.f32 %v1815
        %vm1822 = vweird.f32 %v1816
        %vm1823 = vmor %vm1821, %vm1822
        %v1824 = vsel %vm1823, %v1816, %v1820
        %v1825 = vand.u32 2147483647, %v1815
        %vm1826 = vcmp.eq.f32.partialorder %v1825, 8.507059e+37
        %v1827 = vand.u32 %v1815, 2147483648
        %v1828 = vor.u32 1.1754944e-38, %v1827
        %v1829 = vsel %vm1826, %v1828, %v1824
        %v1830 = vmul.f32 1.0, %v1829
        %v1831 = vtanh.pop %v1770
        %1833 = vrot.lane.b32.xlu0 %v1731, 32
        %v1834 = vpop.permute.xlu0 %1833
        %v1836 = vmul.f32 %v1830, %v1834
        %1838 = vrot.lane.b32.xlu0 %v1831, 64
        %v1839 = vpop.permute.xlu0 %1838
        %v1841 = vmul.f32 %v1830, %v1839
        %1843 = vrot.lane.b32.xlu0 %v1841, 32
        %v1844 = vpop.permute.xlu0 %1843
        %v1846 = vadd.f32 %v1836, %v1844
        %v1847 = vtanh.pop %v1846
        %1849 = vrot.lane.b32.xlu0 %v1847, 64
        %v1850 = vpop.permute.xlu0 %1849
        %v1852 = vmul.f32 %v1830, %v1850
        %1854 = vrot.lane.b32.xlu0 %v1728, 96
        %v1855 = vpop.permute.xlu0 %1854
        %v1857 = vsel %vm574, %v1811, %v1855
        %v1859 = vperm.slane %v1857, 0
        %1860 = vrot.lane.b32.xlu0 %v1859, 32
        %v1861 = vpop.permute.xlu0 %1860
        %1863 = vst.msk [vmem:[#allocation2] sm:$0x1] %vm376, %v1861
        %v1864 = vsel %vm574, %v1805, %v1793
        %v1866 = vperm.slane %v1864, 0
        %1867 = vrot.lane.b32.xlu0 %v1866, 96
        %v1868 = vpop.permute.xlu0 %1867
        %1870 = vst.msk [vmem:[#allocation3] sm:$0x1] %vm376, %v1868
        %1872 = vrot.lane.b32.xlu0 %v1730, 96
        %v1873 = vpop.permute.xlu0 %1872
        %v1875 = vsel %vm550, %v1852, %v1873
        %v1877 = vperm.slane %v1875, 0
        %1878 = vrot.lane.b32.xlu0 %v1877, 32
        %v1879 = vpop.permute.xlu0 %1878
        %1881 = vst.msk [vmem:[#allocation4] sm:$0x1] %vm376, %v1879
        %v1882 = vsel %vm550, %v1846, %v1834
        %v1884 = vperm.slane %v1882, 0
        %1885 = vrot.lane.b32.xlu0 %v1884, 96
        %v1886 = vpop.permute.xlu0 %1885
        %1888 = vst.msk [vmem:[#allocation5] sm:$0x1] %vm376, %v1886
        %v1889 = vsel %vm574, %v1811, 0.0
        %v1891 = vperm.slane %v1889, 0
        %1892 = vrot.lane.b32.xlu0 %v1891, 32
        %v1893 = vpop.permute.xlu0 %1892
        %1895 = vst.msk [vmem:[%s606] sm:$0x1] %vm376, %v1893
        %v1896 = vsel %vm550, %v1852, 0.0
        %v1898 = vperm.slane %v1896, 0
        %1899 = vrot.lane.b32.xlu0 %v1898, 64
        %v1900 = vpop.permute.xlu0 %1899
        %1902 = vst.msk [vmem:[%s355] sm:$0x1] %vm607, %v1900
        %v1903 = vld [vmem:[#allocation2] sm:$0x1]
        %1904 = vst.msk [vmem:[%s371] sm:$0x1] %vm376, %v1903
        %v1905 = vld [vmem:[#allocation4] sm:$0x1]
        %v1907 = vperm.slane %v1905, 0
        %1908 = vrot.lane.b32.xlu0 %v1907, 32
        %v1909 = vpop.permute.xlu0 %1908
        %1911 = vst.msk [vmem:[%s371] sm:$0x1] %vm607, %v1909
        %v1912 = vld [vmem:[#allocation3] sm:$0x1]
        %1913 = vst.msk [vmem:[%s374] sm:$0x1] %vm376, %v1912
        %v1914 = vld [vmem:[#allocation5] sm:$0x1]
        %v1916 = vperm.slane %v1914, 0
        %1917 = vrot.lane.b32.xlu0 %v1916, 32
        %v1918 = vpop.permute.xlu0 %1917
        %1920 = vst.msk [vmem:[%s374] sm:$0x1] %vm607, %v1918
        %s1921 = sand.u32 %s142, 1
        %s1922 = sand.u32 %s142, 1
        %s1923 = smul.addr %s1922, 8
        %s1924 = scalar_lea.vmem [#allocation7], %s1923
        %p1925 = scmp.lt.s32.totalorder %s19, 1
        %s1926 = scalar_select %p1925, %s19, 1
        %s1927 = scalar_lea.vmem %s6, %s1926
        %p1928 = scmp.lt.s32.totalorder %s19, 1
        %s1929 = scalar_select %p1928, %s19, 1
        %s1930 = scalar_lea.vmem %s7, %s1929
        // Predicated region
        $region82: #{encoder_forward.3} parent=76 // pred_check
          %p1931 = pneg %p152
        $region83: #{encoder_forward.3} parent=76 // pred_check_branch
          %1933 = sbr.rel (%p1931) target = $region85
        $region84: #{encoder_forward.3} parent=76 // pred_region
          %s1934 = scalar_lea.vmem %s5, %s19
          // Predicated region
          $region86: #{encoder_forward.3} parent=84 // pred_check
            _
          $region87: #{encoder_forward.3} parent=84 // pred_check_branch
            %1936 = sbr.rel (0) target = $region89
          $region88: #{encoder_forward.3} parent=84 // pred_region
            // Predicated region
            $region90: #{encoder_forward.3} parent=88 // pred_check
              _
            $region91: #{encoder_forward.3} parent=88 // pred_check_branch
              %1938 = sbr.rel target = $region93
            $region92: #{encoder_forward.3} parent=88 // pred_region
              // Predicated region
              $region105: #{encoder_forward.3} parent=92 // pred_check
                _
              $region106: #{encoder_forward.3} parent=92 // pred_check_branch
                %1968 = sbr.rel (0) target = $region108
              $region107: #{encoder_forward.3} parent=92 // pred_region
                loop: start=0, step=1, limit=1
                $region109: #{encoder_forward.3} parent=107 // loop_pre_header
                  _
                $region110: #{encoder_forward.3} parent=107 // loop_header
                  %s1970 = sphi 0, %s1974
                  %p1971 = scmp.ge.s32.totalorder %s1970, 1
                  %s1975 = sphi %s1924, %s1924
                  %s1976 = sphi %s1934, %s1934
                $region111: #{encoder_forward.3} parent=107 // loop_header_branch
                  %1973 = sbr.rel (%p1971) target = $region115
                $region112: #{encoder_forward.3} parent=107 // loop_body
                  _
                $region113: #{encoder_forward.3} parent=107 // loop_footer
                  %s1974 = sadd.s32 1, %s1970
                $region114: #{encoder_forward.3} parent=107 // loop_footer_branch
                  %1969 = sbr.rel target = $region110
                $region115: #{encoder_forward.3} parent=107 // loop_exit
                  _
                %s1978 = ssub.s32 2, 1
                loop: start=0, step=1, limit=1
                $region116: #{encoder_forward.3} parent=107 // loop_pre_header
                  _
                $region117: #{encoder_forward.3} parent=107 // loop_header
                  %s1980 = sphi 0, %s1984
                  %p1981 = scmp.ge.s32.totalorder %s1980, 1
                  %s1985 = sphi %s1924, %s1924
                  %s1986 = sphi %s1934, %s1934
                $region118: #{encoder_forward.3} parent=107 // loop_header_branch
                  %1983 = sbr.rel (%p1981) target = $region122
                $region119: #{encoder_forward.3} parent=107 // loop_body
                  %v1987 = vld [vmem:[%s1985] sm:%s1978]
                  %1988 = vst [vmem:[%s1986] sm:%s1978] %v1987
                  %v1989 = vld [vmem:[%s1985 + $0x1] sm:%s1978]
                  %1990 = vst [vmem:[%s1986 + $0x2] sm:%s1978] %v1989
                  %v1991 = vld [vmem:[%s1985 + $0x2] sm:%s1978]
                  %1992 = vst [vmem:[%s1986 + $0x4] sm:%s1978] %v1991
                  %v1993 = vld [vmem:[%s1985 + $0x3] sm:%s1978]
                  %1994 = vst [vmem:[%s1986 + $0x6] sm:%s1978] %v1993
                  %v1995 = vld [vmem:[%s1985 + $0x4] sm:%s1978]
                  %1996 = vst [vmem:[%s1986 + $0x8] sm:%s1978] %v1995
                  %v1997 = vld [vmem:[%s1985 + $0x5] sm:%s1978]
                  %1998 = vst [vmem:[%s1986 + $0xa] sm:%s1978] %v1997
                  %v1999 = vld [vmem:[%s1985 + $0x6] sm:%s1978]
                  %2000 = vst [vmem:[%s1986 + $0xc] sm:%s1978] %v1999
                  %v2001 = vld [vmem:[%s1985 + $0x7] sm:%s1978]
                  %2002 = vst [vmem:[%s1986 + $0xe] sm:%s1978] %v2001
                $region120: #{encoder_forward.3} parent=107 // loop_footer
                  %s1984 = sadd.s32 1, %s1980
                $region121: #{encoder_forward.3} parent=107 // loop_footer_branch
                  %1979 = sbr.rel target = $region117
                $region122: #{encoder_forward.3} parent=107 // loop_exit
                  _
              $region108: #{encoder_forward.3} parent=92 // pred_fallthru
                _
            $region93: #{encoder_forward.3} parent=88 // pred_fallthru
              _
            // Predicated region
            $region94: #{encoder_forward.3} parent=88 // pred_check
              _
            $region95: #{encoder_forward.3} parent=88 // pred_check_branch
              %1940 = sbr.rel (0) target = $region97
            $region96: #{encoder_forward.3} parent=88 // pred_region
              %s1942 = ssub.s32 2, 1
              loop: start=0, step=1, limit=1
              $region98: #{encoder_forward.3} parent=96 // loop_pre_header
                _
              $region99: #{encoder_forward.3} parent=96 // loop_header
                %s1944 = sphi 0, %s1948
                %p1945 = scmp.ge.s32.totalorder %s1944, 1
                %s1949 = sphi %s1924, %s1924
                %s1950 = sphi %s1934, %s1934
              $region100: #{encoder_forward.3} parent=96 // loop_header_branch
                %1947 = sbr.rel (%p1945) target = $region104
              $region101: #{encoder_forward.3} parent=96 // loop_body
                %v1951 = vld [vmem:[%s1949] sm:%s1942]
                %1952 = vst [vmem:[%s1950] sm:%s1942] %v1951
                %v1953 = vld [vmem:[%s1949 + $0x1] sm:%s1942]
                %1954 = vst [vmem:[%s1950 + $0x2] sm:%s1942] %v1953
                %v1955 = vld [vmem:[%s1949 + $0x2] sm:%s1942]
                %1956 = vst [vmem:[%s1950 + $0x4] sm:%s1942] %v1955
                %v1957 = vld [vmem:[%s1949 + $0x3] sm:%s1942]
                %1958 = vst [vmem:[%s1950 + $0x6] sm:%s1942] %v1957
                %v1959 = vld [vmem:[%s1949 + $0x4] sm:%s1942]
                %1960 = vst [vmem:[%s1950 + $0x8] sm:%s1942] %v1959
                %v1961 = vld [vmem:[%s1949 + $0x5] sm:%s1942]
                %1962 = vst [vmem:[%s1950 + $0xa] sm:%s1942] %v1961
                %v1963 = vld [vmem:[%s1949 + $0x6] sm:%s1942]
                %1964 = vst [vmem:[%s1950 + $0xc] sm:%s1942] %v1963
                %v1965 = vld [vmem:[%s1949 + $0x7] sm:%s1942]
                %1966 = vst [vmem:[%s1950 + $0xe] sm:%s1942] %v1965
              $region102: #{encoder_forward.3} parent=96 // loop_footer
                %s1948 = sadd.s32 1, %s1944
              $region103: #{encoder_forward.3} parent=96 // loop_footer_branch
                %1943 = sbr.rel target = $region99
              $region104: #{encoder_forward.3} parent=96 // loop_exit
                _
            $region97: #{encoder_forward.3} parent=88 // pred_fallthru
              _
          $region89: #{encoder_forward.3} parent=84 // pred_fallthru
            _
          %2003 = vnop
        $region85: #{encoder_forward.3} parent=76 // pred_fallthru
          _
        // Predicated region
        $region123: #{encoder_forward.3} parent=76 // pred_check
          %p2004 = pneg %p178
        $region124: #{encoder_forward.3} parent=76 // pred_check_branch
          %2006 = sbr.rel (%p2004) target = $region126
        $region125: #{encoder_forward.3} parent=76 // pred_region
          _
        $region126: #{encoder_forward.3} parent=76 // pred_fallthru
          _
        // Predicated region
        $region127: #{encoder_forward.3} parent=76 // pred_check
          %p2007 = pneg %p204
        $region128: #{encoder_forward.3} parent=76 // pred_check_branch
          %2009 = sbr.rel (%p2007) target = $region130
        $region129: #{encoder_forward.3} parent=76 // pred_region
          _
        $region130: #{encoder_forward.3} parent=76 // pred_fallthru
          _
      $region77: #{encoder_forward.3} parent=5 // pred_fallthru
        _
      %p2010 = scmp.le.s32.totalorder 2, %s14
      // Predicated region
      $region131: #{encoder_forward.3} parent=5 // pred_check
        %p2011 = pneg %p2010
      $region132: #{encoder_forward.3} parent=5 // pred_check_branch
        %2013 = sbr.rel (%p2011) target = $region134
      $region133: #{encoder_forward.3} parent=5 // pred_region
        %s2014 = ssub.s32 %s14, 2
        // Predicated region
        $region135: #{encoder_forward.3} parent=133 // pred_check
          %p2015 = pneg %p158
        $region136: #{encoder_forward.3} parent=133 // pred_check_branch
          %2017 = sbr.rel (%p2015) target = $region138
        $region137: #{encoder_forward.3} parent=133 // pred_region
          %s2018 = sand.u32 %s143, 1
          %s2019 = sand.u32 %s143, 1
          %s2020 = smul.addr %s2019, 8
          %s2021 = scalar_lea.vmem [#allocation7], %s2020
        $region138: #{encoder_forward.3} parent=133 // pred_fallthru
          _
        // Predicated region
        $region139: #{encoder_forward.3} parent=133 // pred_check
          %p2022 = pneg %p184
        $region140: #{encoder_forward.3} parent=133 // pred_check_branch
          %2024 = sbr.rel (%p2022) target = $region142
        $region141: #{encoder_forward.3} parent=133 // pred_region
          %p2025 = scmp.lt.s32.totalorder %s20, 1
          %s2026 = scalar_select %p2025, %s20, 1
          %s2027 = scalar_lea.vmem %s6, %s2026
        $region142: #{encoder_forward.3} parent=133 // pred_fallthru
          _
        // Predicated region
        $region143: #{encoder_forward.3} parent=133 // pred_check
          %p2028 = pneg %p210
        $region144: #{encoder_forward.3} parent=133 // pred_check_branch
          %2030 = sbr.rel (%p2028) target = $region146
        $region145: #{encoder_forward.3} parent=133 // pred_region
          %p2031 = scmp.lt.s32.totalorder %s20, 1
          %s2032 = scalar_select %p2031, %s20, 1
          %s2033 = scalar_lea.vmem %s7, %s2032
        $region146: #{encoder_forward.3} parent=133 // pred_fallthru
          _
      $region134: #{encoder_forward.3} parent=5 // pred_fallthru
        _
    $region6: #{encoder_forward.3} parent=1 // loop_footer
      %s18 = sadd.s32 1, %s14
    $region7: #{encoder_forward.3} parent=1 // loop_footer_branch
      %13 = sbr.rel target = $region3
    $region8: #{encoder_forward.3} parent=1 // loop_exit
      _

</llo_original>
